<compile_context>
chip_gen: v5e
topology: v5e:2x2
jax: 0.10.0
libtpu: 0.0.40
codegen_flags: <defaults>
</compile_context>

<pallas_src>
import functools
import math

import jax
import jax.numpy as jnp
from jax.experimental import pallas as pl
from jax.experimental.pallas import tpu as pltpu


# ----------------------------------------------------------------------------
# Model constants (small synthetic BERT; lane-aligned)
# ----------------------------------------------------------------------------
VOCAB = 100
MAX_POS = 64
TYPE_VOCAB = 2
HIDDEN = 128
NUM_HEADS = 4
HEAD_DIM = HIDDEN // NUM_HEADS          # 32
INTERMEDIATE = 256
NUM_LAYERS = 2
LN_EPS = 1e-12

VMEM_LIMIT = 32 * 1024 * 1024           # explicit scoped-VMEM budget (safe on v5e/v6e/v7x)


# ----------------------------------------------------------------------------
# Helpers
# ----------------------------------------------------------------------------
def _gelu(x):
    # TODO(synk): HF BERT uses exact erf-GELU; tanh approximation used here for
    # Mosaic portability (numerically very close).
    c = math.sqrt(2.0 / math.pi)
    return 0.5 * x * (1.0 + jnp.tanh(c * (x + 0.044715 * x * x * x)))


def _layernorm(y, g, b, eps):
    mu = jnp.mean(y, axis=-1, keepdims=True)
    var = jnp.mean((y - mu) * (y - mu), axis=-1, keepdims=True)
    return (y - mu) * jax.lax.rsqrt(var + eps) * g + b


def _row_tile(m):
    """Row tile: whole problem if small (launch overhead dominates),
    otherwise the largest lane/sublane-friendly tile dividing m."""
    if m <= 1024:
        return m
    for t in (1024, 512, 256, 128, 64, 32, 16, 8):
        if m % t == 0:
            return t
    return m


def _bytes(*arrs):
    return int(sum(a.size * a.dtype.itemsize for a in arrs))


def _params():
    return pltpu.CompilerParams(dimension_semantics=("parallel",),
                                vmem_limit_bytes=VMEM_LIMIT)


# ----------------------------------------------------------------------------
# Pallas kernels
# ----------------------------------------------------------------------------
def ln_kernel(x_ref, g_ref, b_ref, o_ref, *, eps):
    o_ref[...] = _layernorm(x_ref[...], g_ref[...], b_ref[...], eps).astype(o_ref.dtype)


def fused_layer_kernel(hid_ref, bias_ref,
                       w_qkv_ref, b_qkv_ref,
                       wo_ref, bo_ref, g1_ref, b1_ref,
                       wi_ref, bi_ref, wd_ref, bd_ref, g2_ref, b2_ref,
                       o_ref, *, num_heads, head_dim, eps):
    """One full transformer layer for one batch element.

    hid_ref : (1, S, H)  bf16   residual stream
    bias_ref: (1, 1, S)  f32    additive attention mask (broadcast over q rows/heads)
    """
    hdim = num_heads * head_dim
    x_bf = hid_ref[0]                                    # (S, H) bf16
    x_f32 = x_bf.astype(jnp.float32)
    bias = bias_ref[0]                                   # (1, S) f32

    # --- fused QKV projection (attention scale pre-folded into Q columns) ----
    qkv = jnp.dot(x_bf, w_qkv_ref[...],
                  preferred_element_type=jnp.float32) + b_qkv_ref[...]   # (S, 3H) f32

    # --- multi-head attention with the output projection folded in ----------
    # y accumulates (residual + bo + sum_h ctx_h @ Wo[h*dh:(h+1)*dh, :]).
    # TODO(synk): per-head 32-lane slices relayout; at real sizes switch to a
    # head-batched (NH, S, Dh) contraction + query-row tiling.
    wo = wo_ref[...]                                     # (H, H) bf16
    y = x_f32 + bo_ref[...]
    for h in range(num_heads):
        lo = h * head_dim
        qh = qkv[:, lo:lo + head_dim].astype(jnp.bfloat16)
        kh = qkv[:, hdim + lo:hdim + lo + head_dim].astype(jnp.bfloat16)
        vh = qkv[:, 2 * hdim + lo:2 * hdim + lo + head_dim].astype(jnp.bfloat16)
        # contract the Dh axes directly (q @ k^T without materializing k.T)
        s = jax.lax.dot_general(qh, kh, (((1,), (1,)), ((), ())),
                                preferred_element_type=jnp.float32)      # (S, S)
        s = s + bias
        s = s - jnp.max(s, axis=-1, keepdims=True)
        p = jnp.exp(s)
        p = p * pl.reciprocal(jnp.sum(p, axis=-1, keepdims=True), approx=True)
        ctx_h = jnp.dot(p.astype(jnp.bfloat16), vh,
                        preferred_element_type=jnp.float32)              # (S, Dh)
        y = y + jnp.dot(ctx_h.astype(jnp.bfloat16), wo[lo:lo + head_dim, :],
                        preferred_element_type=jnp.float32)              # (S, H)

    h1 = _layernorm(y, g1_ref[...], b1_ref[...], eps)                    # (S, H) f32

    # --- FFN: dense -> GELU -> dense -> residual -> LayerNorm ----------------
    t = jnp.dot(h1.astype(jnp.bfloat16), wi_ref[...],
                preferred_element_type=jnp.float32) + bi_ref[...]        # (S, I)
    t = _gelu(t)
    h2 = jnp.dot(t.astype(jnp.bfloat16), wd_ref[...],
                 preferred_element_type=jnp.float32) + bd_ref[...] + h1  # (S, H)
    o_ref[0] = _layernorm(h2, g2_ref[...], b2_ref[...], eps).astype(o_ref.dtype)


# ----------------------------------------------------------------------------
# pallas_call wrappers
# ----------------------------------------------------------------------------
def layernorm(x, g, b):
    m, h = x.shape
    tm = _row_tile(m)
    cost = pl.CostEstimate(flops=int(10 * m * h), transcendentals=int(m),
                           bytes_accessed=int(_bytes(x, g, b) + 2 * m * h))
    return pl.pallas_call(
        functools.partial(ln_kernel, eps=LN_EPS),
        out_shape=jax.ShapeDtypeStruct((m, h), jnp.bfloat16),
        grid=(m // tm,),
        in_specs=[pl.BlockSpec((tm, h), lambda i: (i, 0)),
                  pl.BlockSpec((1, h), lambda i: (0, 0)),
                  pl.BlockSpec((1, h), lambda i: (0, 0))],
        out_specs=pl.BlockSpec((tm, h), lambda i: (i, 0)),
        compiler_params=_params(),
        cost_estimate=cost,
    )(x, g.reshape(1, h), b.reshape(1, h))


def transformer_layer(hidden, bias, lp):
    b, s, h = hidden.shape
    inter = lp["wi"].shape[1]
    flops = (2 * b * s * h * 3 * h                      # QKV
             + 4 * b * NUM_HEADS * s * s * HEAD_DIM     # scores + PV
             + 2 * b * s * h * h                        # output projection
             + 4 * b * s * h * inter                    # FFN
             + 20 * b * s * h)                          # LayerNorms / residuals
    trans = b * NUM_HEADS * s * s + b * s * inter + 2 * b * s
    bytes_acc = (_bytes(hidden, bias, lp["w_qkv"], lp["wo"], lp["wi"], lp["wd"])
                 + hidden.size * hidden.dtype.itemsize)
    cost = pl.CostEstimate(flops=int(flops), transcendentals=int(trans),
                           bytes_accessed=int(bytes_acc))

    kern = functools.partial(fused_layer_kernel, num_heads=NUM_HEADS,
                             head_dim=HEAD_DIM, eps=LN_EPS)
    return pl.pallas_call(
        kern,
        out_shape=jax.ShapeDtypeStruct((b, s, h), jnp.bfloat16),
        grid=(b,),
        in_specs=[
            pl.BlockSpec((1, s, h), lambda i: (i, 0, 0)),        # hidden
            pl.BlockSpec((1, 1, s), lambda i: (i, 0, 0)),        # mask bias
            pl.BlockSpec((h, 3 * h), lambda i: (0, 0)),          # w_qkv (resident)
            pl.BlockSpec((1, 3 * h), lambda i: (0, 0)),          # b_qkv
            pl.BlockSpec((h, h), lambda i: (0, 0)),              # wo
            pl.BlockSpec((1, h), lambda i: (0, 0)),              # bo
            pl.BlockSpec((1, h), lambda i: (0, 0)),              # ln1 gamma
            pl.BlockSpec((1, h), lambda i: (0, 0)),              # ln1 beta
            pl.BlockSpec((h, inter), lambda i: (0, 0)),          # wi
            pl.BlockSpec((1, inter), lambda i: (0, 0)),          # bi
            pl.BlockSpec((inter, h), lambda i: (0, 0)),          # wd
            pl.BlockSpec((1, h), lambda i: (0, 0)),              # bd
            pl.BlockSpec((1, h), lambda i: (0, 0)),              # ln2 gamma
            pl.BlockSpec((1, h), lambda i: (0, 0)),              # ln2 beta
        ],
        out_specs=pl.BlockSpec((1, s, h), lambda i: (i, 0, 0)),
        compiler_params=_params(),
        cost_estimate=cost,
    )(hidden, bias,
      lp["w_qkv"], lp["b_qkv"].reshape(1, 3 * h),
      lp["wo"], lp["bo"].reshape(1, h),
      lp["ln1_g"].reshape(1, h), lp["ln1_b"].reshape(1, h),
      lp["wi"], lp["bi"].reshape(1, inter),
      lp["wd"], lp["bd"].reshape(1, h),
      lp["ln2_g"].reshape(1, h), lp["ln2_b"].reshape(1, h))


# ----------------------------------------------------------------------------
# Parameters
# ----------------------------------------------------------------------------
def init_params(key):
    def nrm(k, shape):
        return 0.02 * jax.random.normal(k, shape, dtype=jnp.float32)

    keys = jax.random.split(key, 3 + NUM_LAYERS)
    params = {
        "word_emb": nrm(keys[0], (VOCAB, HIDDEN)),
        "pos_emb": nrm(keys[1], (MAX_POS, HIDDEN)),
        "type_emb": nrm(keys[2], (TYPE_VOCAB, HIDDEN)),
        "emb_ln_g": jnp.ones((HIDDEN,), jnp.float32),
        "emb_ln_b": jnp.zeros((HIDDEN,), jnp.float32),
        "layers": [],
    }
    scale = 1.0 / math.sqrt(HEAD_DIM)
    for layer in range(NUM_LAYERS):
        lk = jax.random.split(keys[3 + layer], 6)
        # attention scale folded into the Q weight/bias (one-time transform)
        wq = nrm(lk[0], (HIDDEN, HIDDEN)) * scale
        wk = nrm(lk[1], (HIDDEN, HIDDEN))
        wv = nrm(lk[2], (HIDDEN, HIDDEN))
        bq = jnp.zeros((HIDDEN,), jnp.float32) * scale
        bk = jnp.zeros((HIDDEN,), jnp.float32)
        bv = jnp.zeros((HIDDEN,), jnp.float32)
        params["layers"].append({
            # fused QKV weight; matmul weights stored bf16 (MXU inputs), the
            # rest (biases, LN params) stay f32.
            "w_qkv": jnp.concatenate([wq, wk, wv], axis=1).astype(jnp.bfloat16),
            "b_qkv": jnp.concatenate([bq, bk, bv], axis=0),
            "wo": nrm(lk[3], (HIDDEN, HIDDEN)).astype(jnp.bfloat16),
            "bo": jnp.zeros((HIDDEN,), jnp.float32),
            "ln1_g": jnp.ones((HIDDEN,), jnp.float32),
            "ln1_b": jnp.zeros((HIDDEN,), jnp.float32),
            "wi": nrm(lk[4], (HIDDEN, INTERMEDIATE)).astype(jnp.bfloat16),
            "bi": jnp.zeros((INTERMEDIATE,), jnp.float32),
            "wd": nrm(lk[5], (INTERMEDIATE, HIDDEN)).astype(jnp.bfloat16),
            "bd": jnp.zeros((HIDDEN,), jnp.float32),
            "ln2_g": jnp.ones((HIDDEN,), jnp.float32),
            "ln2_b": jnp.zeros((HIDDEN,), jnp.float32),
        })
    return params


# ----------------------------------------------------------------------------
# Forward (equivalent of BertEncoder.forward, standard path; task != 'detection')
# ----------------------------------------------------------------------------
def bert_encoder_forward(params, input_ids, attention_mask):
    # TODO(synk): the parallel_det/'detection' per-sample eye-mask branch is not
    # implemented; only the standard attention_mask path is reproduced.
    # TODO(synk): token_type_ids input is ignored (type id 0 is used for all tokens).
    B, S = input_ids.shape
    M = B * S

    # --- embeddings (gathers are plain-JAX glue; LN is a Pallas kernel) ------
    positions = jnp.arange(S, dtype=jnp.int32)
    emb = (jnp.take(params["word_emb"], input_ids, axis=0)
           + jnp.take(params["pos_emb"], positions, axis=0)[None, :, :]
           + params["type_emb"][0][None, None, :]).astype(jnp.float32)
    hidden = layernorm(emb.reshape(M, HIDDEN),
                       params["emb_ln_g"], params["emb_ln_b"])          # (M, H) bf16
    hidden = hidden.reshape(B, S, HIDDEN)

    # --- extended additive attention mask (per batch, shared by all heads) ---
    # TODO(synk): HF uses dtype-min as the mask fill; -1e9 is numerically
    # equivalent after the row-max subtraction.
    bias = ((1.0 - attention_mask.astype(jnp.float32)) * (-1e9)).reshape(B, 1, S)

    # --- transformer layers (one fused pallas_call per layer) ----------------
    for lp in params["layers"]:
        hidden = transformer_layer(hidden, bias, lp)                    # (B, S, H) bf16

    return {"masks": attention_mask, "hidden": hidden.astype(jnp.float32)}


# ----------------------------------------------------------------------------
# Demo
# ----------------------------------------------------------------------------
if __name__ == "__main__":
    B, S = 2, 8
    key = jax.random.PRNGKey(0)
    k_ids, k_params = jax.random.split(key)

    input_ids = jax.random.randint(k_ids, (B, S), 0, VOCAB, dtype=jnp.int32)
    lengths = jnp.array([S, 5], dtype=jnp.int32)
    attention_mask = (jnp.arange(S)[None, :] < lengths[:, None]).astype(jnp.int32)

    params = init_params(k_params)

    fwd = jax.jit(bert_encoder_forward)
    out = fwd(params, input_ids, attention_mask)
    jax.block_until_ready(out["hidden"])
    jax.block_until_ready(out["masks"])

    assert out["hidden"].shape == (B, S, HIDDEN)
    assert out["masks"].shape == (B, S)
    assert bool(jnp.all(jnp.isfinite(out["hidden"])))
    print("KERNEL_OK")
</pallas_src>

<mosaic_0001>
module attributes {stable_mosaic.version = 11 : i64} {
  func.func @ln_kernel(%arg0: i32, %arg1: memref<16x128xf32, #tpu.memory_space<vmem>>, %arg2: memref<1x128xf32, #tpu.memory_space<vmem>>, %arg3: memref<1x128xf32, #tpu.memory_space<vmem>>, %arg4: memref<16x128xbf16, #tpu.memory_space<vmem>>) attributes {dimension_semantics = [#tpu.dimension_semantics<parallel>], iteration_bounds = array<i64: 1>, scalar_prefetch = 0 : i64, scratch_operands = 0 : i64, tpu.core_type = #tpu.core_type<tc>, window_params = [{transform_indices = @transform_0, window_bounds = array<i64: 16, 128>}, {pipeline_mode = #tpu.pipeline_mode<synchronous>, transform_indices = @transform_1, window_bounds = array<i64: 1, 128>}, {pipeline_mode = #tpu.pipeline_mode<synchronous>, transform_indices = @transform_2, window_bounds = array<i64: 1, 128>}, {transform_indices = @transform_3, window_bounds = array<i64: 16, 128>}]} {
    %c0 = arith.constant 0 : index
    %c0_0 = arith.constant 0 : index
    %0 = vector.load %arg1[%c0, %c0_0] : memref<16x128xf32, #tpu.memory_space<vmem>>, vector<16x128xf32>
    %c0_1 = arith.constant 0 : index
    %c0_2 = arith.constant 0 : index
    %1 = vector.load %arg2[%c0_1, %c0_2] : memref<1x128xf32, #tpu.memory_space<vmem>>, vector<1x128xf32>
    %c0_3 = arith.constant 0 : index
    %c0_4 = arith.constant 0 : index
    %2 = vector.load %arg3[%c0_3, %c0_4] : memref<1x128xf32, #tpu.memory_space<vmem>>, vector<1x128xf32>
    %cst = arith.constant dense<0.000000e+00> : vector<16xf32>
    %3 = vector.multi_reduction <add>, %0, %cst [1] : vector<16x128xf32> to vector<16xf32>
    %4 = vector.shape_cast %3 : vector<16xf32> to vector<16x1xf32>
    %cst_5 = arith.constant 1.280000e+02 : f32
    %5 = vector.broadcast %cst_5 : f32 to vector<16x1xf32>
    %6 = arith.divf %4, %5 : vector<16x1xf32>
    %7 = vector.broadcast %6 : vector<16x1xf32> to vector<16x128xf32>
    %8 = arith.subf %0, %7 : vector<16x128xf32>
    %9 = vector.broadcast %6 : vector<16x1xf32> to vector<16x128xf32>
    %10 = arith.subf %0, %9 : vector<16x128xf32>
    %11 = arith.mulf %8, %10 : vector<16x128xf32>
    %cst_6 = arith.constant dense<0.000000e+00> : vector<16xf32>
    %12 = vector.multi_reduction <add>, %11, %cst_6 [1] : vector<16x128xf32> to vector<16xf32>
    %13 = vector.shape_cast %12 : vector<16xf32> to vector<16x1xf32>
    %cst_7 = arith.constant 1.280000e+02 : f32
    %14 = vector.broadcast %cst_7 : f32 to vector<16x1xf32>
    %15 = arith.divf %13, %14 : vector<16x1xf32>
    %16 = vector.broadcast %6 : vector<16x1xf32> to vector<16x128xf32>
    %17 = arith.subf %0, %16 : vector<16x128xf32>
    %cst_8 = arith.constant 9.99999996E-13 : f32
    %18 = vector.broadcast %cst_8 : f32 to vector<16x1xf32>
    %19 = arith.addf %15, %18 : vector<16x1xf32>
    %20 = math.rsqrt %19 : vector<16x1xf32>
    %21 = vector.broadcast %20 : vector<16x1xf32> to vector<16x128xf32>
    %22 = arith.mulf %17, %21 : vector<16x128xf32>
    %23 = vector.broadcast %1 : vector<1x128xf32> to vector<16x128xf32>
    %24 = arith.mulf %22, %23 : vector<16x128xf32>
    %25 = vector.broadcast %2 : vector<1x128xf32> to vector<16x128xf32>
    %26 = arith.addf %24, %25 : vector<16x128xf32>
    %27 = arith.truncf %26 : vector<16x128xf32> to vector<16x128xbf16>
    %c0_9 = arith.constant 0 : index
    %c0_10 = arith.constant 0 : index
    %28 = vector.load %arg4[%c0_9, %c0_10] : memref<16x128xbf16, #tpu.memory_space<vmem>>, vector<16x128xbf16>
    tpu.vector_store %arg4[%c0_9, %c0_10], %27 {strides = array<i32>} : memref<16x128xbf16, #tpu.memory_space<vmem>>, vector<16x128xbf16>,
    return
  }
  func.func @transform_0(%arg0: i32) -> (i32, i32) {
    %c0_i32 = arith.constant 0 : i32
    %c0_i32_0 = arith.constant 0 : i32
    return %arg0, %c0_i32 : i32, i32
  }
  func.func @transform_1(%arg0: i32) -> (i32, i32) {
    %c0_i32 = arith.constant 0 : i32
    %c0_i32_0 = arith.constant 0 : i32
    %c0_i32_1 = arith.constant 0 : i32
    return %c0_i32, %c0_i32_0 : i32, i32
  }
  func.func @transform_2(%arg0: i32) -> (i32, i32) {
    %c0_i32 = arith.constant 0 : i32
    %c0_i32_0 = arith.constant 0 : i32
    %c0_i32_1 = arith.constant 0 : i32
    return %c0_i32, %c0_i32_0 : i32, i32
  }
  func.func @transform_3(%arg0: i32) -> (i32, i32) {
    %c0_i32 = arith.constant 0 : i32
    %c0_i32_0 = arith.constant 0 : i32
    return %arg0, %c0_i32 : i32, i32
  }
}

module attributes {stable_mosaic.version = 11 : i64} {
  func.func @fused_layer_kernel(%arg0: i32, %arg1: memref<1x8x128xbf16, #tpu.memory_space<vmem>>, %arg2: memref<1x1x8xf32, #tpu.memory_space<vmem>>, %arg3: memref<128x384xbf16, #tpu.memory_space<vmem>>, %arg4: memref<1x384xf32, #tpu.memory_space<vmem>>, %arg5: memref<128x128xbf16, #tpu.memory_space<vmem>>, %arg6: memref<1x128xf32, #tpu.memory_space<vmem>>, %arg7: memref<1x128xf32, #tpu.memory_space<vmem>>, %arg8: memref<1x128xf32, #tpu.memory_space<vmem>>, %arg9: memref<128x256xbf16, #tpu.memory_space<vmem>>, %arg10: memref<1x256xf32, #tpu.memory_space<vmem>>, %arg11: memref<256x128xbf16, #tpu.memory_space<vmem>>, %arg12: memref<1x128xf32, #tpu.memory_space<vmem>>, %arg13: memref<1x128xf32, #tpu.memory_space<vmem>>, %arg14: memref<1x128xf32, #tpu.memory_space<vmem>>, %arg15: memref<1x8x128xbf16, #tpu.memory_space<vmem>>) attributes {dimension_semantics = [#tpu.dimension_semantics<parallel>], iteration_bounds = array<i64: 2>, scalar_prefetch = 0 : i64, scratch_operands = 0 : i64, tpu.core_type = #tpu.core_type<tc>, window_params = [{transform_indices = @transform_0, window_bounds = array<i64: 1, 8, 128>}, {transform_indices = @transform_1, window_bounds = array<i64: 1, 1, 8>}, {pipeline_mode = #tpu.pipeline_mode<synchronous>, transform_indices = @transform_2, window_bounds = array<i64: 128, 384>}, {pipeline_mode = #tpu.pipeline_mode<synchronous>, transform_indices = @transform_3, window_bounds = array<i64: 1, 384>}, {pipeline_mode = #tpu.pipeline_mode<synchronous>, transform_indices = @transform_4, window_bounds = array<i64: 128, 128>}, {pipeline_mode = #tpu.pipeline_mode<synchronous>, transform_indices = @transform_5, window_bounds = array<i64: 1, 128>}, {pipeline_mode = #tpu.pipeline_mode<synchronous>, transform_indices = @transform_6, window_bounds = array<i64: 1, 128>}, {pipeline_mode = #tpu.pipeline_mode<synchronous>, transform_indices = @transform_7, window_bounds = array<i64: 1, 128>}, {pipeline_mode = #tpu.pipeline_mode<synchronous>, transform_indices = @transform_8, window_bounds = array<i64: 128, 256>}, {pipeline_mode = #tpu.pipeline_mode<synchronous>, transform_indices = @transform_9, window_bounds = array<i64: 1, 256>}, {pipeline_mode = #tpu.pipeline_mode<synchronous>, transform_indices = @transform_10, window_bounds = array<i64: 256, 128>}, {pipeline_mode = #tpu.pipeline_mode<synchronous>, transform_indices = @transform_11, window_bounds = array<i64: 1, 128>}, {pipeline_mode = #tpu.pipeline_mode<synchronous>, transform_indices = @transform_12, window_bounds = array<i64: 1, 128>}, {pipeline_mode = #tpu.pipeline_mode<synchronous>, transform_indices = @transform_13, window_bounds = array<i64: 1, 128>}, {transform_indices = @transform_14, window_bounds = array<i64: 1, 8, 128>}]} {
    %c0 = arith.constant 0 : index
    %c0_0 = arith.constant 0 : index
    %c0_1 = arith.constant 0 : index
    %0 = vector.load %arg1[%c0, %c0_0, %c0_1] : memref<1x8x128xbf16, #tpu.memory_space<vmem>>, vector<1x8x128xbf16>
    %1 = vector.shape_cast %0 : vector<1x8x128xbf16> to vector<8x128xbf16>
    %2 = arith.extf %1 : vector<8x128xbf16> to vector<8x128xf32>
    %c0_2 = arith.constant 0 : index
    %c0_3 = arith.constant 0 : index
    %c0_4 = arith.constant 0 : index
    %3 = vector.load %arg2[%c0_2, %c0_3, %c0_4] : memref<1x1x8xf32, #tpu.memory_space<vmem>>, vector<1x1x8xf32>
    %4 = vector.shape_cast %3 : vector<1x1x8xf32> to vector<1x8xf32>
    %c0_5 = arith.constant 0 : index
    %c0_6 = arith.constant 0 : index
    %5 = vector.load %arg3[%c0_5, %c0_6] : memref<128x384xbf16, #tpu.memory_space<vmem>>, vector<128x384xbf16>
    %cst = arith.constant dense<0.000000e+00> : vector<8x384xf32>
    %6 = tpu.matmul %1, %5, %cst {dimension_numbers = #tpu.dot_dimension_numbers<[1], [0], [0], [1], [0, 0, 1, 1], [], []>} : vector<8x128xbf16>, vector<128x384xbf16>, vector<8x384xf32> -> vector<8x384xf32>
    %c0_7 = arith.constant 0 : index
    %c0_8 = arith.constant 0 : index
    %7 = vector.load %arg4[%c0_7, %c0_8] : memref<1x384xf32, #tpu.memory_space<vmem>>, vector<1x384xf32>
    %8 = vector.broadcast %7 : vector<1x384xf32> to vector<8x384xf32>
    %9 = arith.addf %6, %8 : vector<8x384xf32>
    %c0_9 = arith.constant 0 : index
    %c0_10 = arith.constant 0 : index
    %10 = vector.load %arg5[%c0_9, %c0_10] : memref<128x128xbf16, #tpu.memory_space<vmem>>, vector<128x128xbf16>
    %c0_11 = arith.constant 0 : index
    %c0_12 = arith.constant 0 : index
    %11 = vector.load %arg6[%c0_11, %c0_12] : memref<1x128xf32, #tpu.memory_space<vmem>>, vector<1x128xf32>
    %12 = vector.broadcast %11 : vector<1x128xf32> to vector<8x128xf32>
    %13 = arith.addf %2, %12 : vector<8x128xf32>
    %14 = vector.extract_strided_slice %9 {offsets = [0, 0], sizes = [8, 32], strides = [1, 1]} : vector<8x384xf32> to vector<8x32xf32>
    %15 = arith.truncf %14 : vector<8x32xf32> to vector<8x32xbf16>
    %16 = vector.extract_strided_slice %9 {offsets = [0, 128], sizes = [8, 32], strides = [1, 1]} : vector<8x384xf32> to vector<8x32xf32>
    %17 = arith.truncf %16 : vector<8x32xf32> to vector<8x32xbf16>
    %18 = vector.extract_strided_slice %9 {offsets = [0, 256], sizes = [8, 32], strides = [1, 1]} : vector<8x384xf32> to vector<8x32xf32>
    %19 = arith.truncf %18 : vector<8x32xf32> to vector<8x32xbf16>
    %cst_13 = arith.constant dense<0.000000e+00> : vector<8x8xf32>
    %20 = tpu.matmul %15, %17, %cst_13 {dimension_numbers = #tpu.dot_dimension_numbers<[1], [1], [0], [0], [0, 0, 1, 0], [], []>} : vector<8x32xbf16>, vector<8x32xbf16>, vector<8x8xf32> -> vector<8x8xf32>
    %21 = vector.broadcast %4 : vector<1x8xf32> to vector<8x8xf32>
    %22 = arith.addf %20, %21 : vector<8x8xf32>
    %cst_14 = arith.constant dense<0xFF800000> : vector<8xf32>
    %23 = vector.multi_reduction <maximumf>, %22, %cst_14 [1] : vector<8x8xf32> to vector<8xf32>
    %24 = vector.shape_cast %23 : vector<8xf32> to vector<8x1xf32>
    %25 = vector.broadcast %24 : vector<8x1xf32> to vector<8x8xf32>
    %26 = arith.subf %22, %25 : vector<8x8xf32>
    %27 = math.exp %26 : vector<8x8xf32>
    %cst_15 = arith.constant dense<0.000000e+00> : vector<8xf32>
    %28 = vector.multi_reduction <add>, %27, %cst_15 [1] : vector<8x8xf32> to vector<8xf32>
    %29 = vector.shape_cast %28 : vector<8xf32> to vector<8x1xf32>
    %30 = tpu.reciprocal %29 {approx = true} : vector<8x1xf32> -> vector<8x1xf32>
    %31 = vector.broadcast %30 : vector<8x1xf32> to vector<8x8xf32>
    %32 = arith.mulf %27, %31 : vector<8x8xf32>
    %33 = arith.truncf %32 : vector<8x8xf32> to vector<8x8xbf16>
    %cst_16 = arith.constant dense<0.000000e+00> : vector<8x32xf32>
    %34 = tpu.matmul %33, %19, %cst_16 {dimension_numbers = #tpu.dot_dimension_numbers<[1], [0], [0], [1], [0, 0, 1, 1], [], []>} : vector<8x8xbf16>, vector<8x32xbf16>, vector<8x32xf32> -> vector<8x32xf32>
    %35 = arith.truncf %34 : vector<8x32xf32> to vector<8x32xbf16>
    %36 = vector.extract_strided_slice %10 {offsets = [0, 0], sizes = [32, 128], strides = [1, 1]} : vector<128x128xbf16> to vector<32x128xbf16>
    %cst_17 = arith.constant dense<0.000000e+00> : vector<8x128xf32>
    %37 = tpu.matmul %35, %36, %cst_17 {dimension_numbers = #tpu.dot_dimension_numbers<[1], [0], [0], [1], [0, 0, 1, 1], [], []>} : vector<8x32xbf16>, vector<32x128xbf16>, vector<8x128xf32> -> vector<8x128xf32>
    %38 = arith.addf %13, %37 : vector<8x128xf32>
    %39 = vector.extract_strided_slice %9 {offsets = [0, 32], sizes = [8, 32], strides = [1, 1]} : vector<8x384xf32> to vector<8x32xf32>
    %40 = arith.truncf %39 : vector<8x32xf32> to vector<8x32xbf16>
    %41 = vector.extract_strided_slice %9 {offsets = [0, 160], sizes = [8, 32], strides = [1, 1]} : vector<8x384xf32> to vector<8x32xf32>
    %42 = arith.truncf %41 : vector<8x32xf32> to vector<8x32xbf16>
    %43 = vector.extract_strided_slice %9 {offsets = [0, 288], sizes = [8, 32], strides = [1, 1]} : vector<8x384xf32> to vector<8x32xf32>
    %44 = arith.truncf %43 : vector<8x32xf32> to vector<8x32xbf16>
    %cst_18 = arith.constant dense<0.000000e+00> : vector<8x8xf32>
    %45 = tpu.matmul %40, %42, %cst_18 {dimension_numbers = #tpu.dot_dimension_numbers<[1], [1], [0], [0], [0, 0, 1, 0], [], []>} : vector<8x32xbf16>, vector<8x32xbf16>, vector<8x8xf32> -> vector<8x8xf32>
    %46 = vector.broadcast %4 : vector<1x8xf32> to vector<8x8xf32>
    %47 = arith.addf %45, %46 : vector<8x8xf32>
    %cst_19 = arith.constant dense<0xFF800000> : vector<8xf32>
    %48 = vector.multi_reduction <maximumf>, %47, %cst_19 [1] : vector<8x8xf32> to vector<8xf32>
    %49 = vector.shape_cast %48 : vector<8xf32> to vector<8x1xf32>
    %50 = vector.broadcast %49 : vector<8x1xf32> to vector<8x8xf32>
    %51 = arith.subf %47, %50 : vector<8x8xf32>
    %52 = math.exp %51 : vector<8x8xf32>
    %cst_20 = arith.constant dense<0.000000e+00> : vector<8xf32>
    %53 = vector.multi_reduction <add>, %52, %cst_20 [1] : vector<8x8xf32> to vector<8xf32>
    %54 = vector.shape_cast %53 : vector<8xf32> to vector<8x1xf32>
    %55 = tpu.reciprocal %54 {approx = true} : vector<8x1xf32> -> vector<8x1xf32>
    %56 = vector.broadcast %55 : vector<8x1xf32> to vector<8x8xf32>
    %57 = arith.mulf %52, %56 : vector<8x8xf32>
    %58 = arith.truncf %57 : vector<8x8xf32> to vector<8x8xbf16>
    %cst_21 = arith.constant dense<0.000000e+00> : vector<8x32xf32>
    %59 = tpu.matmul %58, %44, %cst_21 {dimension_numbers = #tpu.dot_dimension_numbers<[1], [0], [0], [1], [0, 0, 1, 1], [], []>} : vector<8x8xbf16>, vector<8x32xbf16>, vector<8x32xf32> -> vector<8x32xf32>
    %60 = arith.truncf %59 : vector<8x32xf32> to vector<8x32xbf16>
    %61 = vector.extract_strided_slice %10 {offsets = [32, 0], sizes = [32, 128], strides = [1, 1]} : vector<128x128xbf16> to vector<32x128xbf16>
    %cst_22 = arith.constant dense<0.000000e+00> : vector<8x128xf32>
    %62 = tpu.matmul %60, %61, %cst_22 {dimension_numbers = #tpu.dot_dimension_numbers<[1], [0], [0], [1], [0, 0, 1, 1], [], []>} : vector<8x32xbf16>, vector<32x128xbf16>, vector<8x128xf32> -> vector<8x128xf32>
    %63 = arith.addf %38, %62 : vector<8x128xf32>
    %64 = vector.extract_strided_slice %9 {offsets = [0, 64], sizes = [8, 32], strides = [1, 1]} : vector<8x384xf32> to vector<8x32xf32>
    %65 = arith.truncf %64 : vector<8x32xf32> to vector<8x32xbf16>
    %66 = vector.extract_strided_slice %9 {offsets = [0, 192], sizes = [8, 32], strides = [1, 1]} : vector<8x384xf32> to vector<8x32xf32>
    %67 = arith.truncf %66 : vector<8x32xf32> to vector<8x32xbf16>
    %68 = vector.extract_strided_slice %9 {offsets = [0, 320], sizes = [8, 32], strides = [1, 1]} : vector<8x384xf32> to vector<8x32xf32>
    %69 = arith.truncf %68 : vector<8x32xf32> to vector<8x32xbf16>
    %cst_23 = arith.constant dense<0.000000e+00> : vector<8x8xf32>
    %70 = tpu.matmul %65, %67, %cst_23 {dimension_numbers = #tpu.dot_dimension_numbers<[1], [1], [0], [0], [0, 0, 1, 0], [], []>} : vector<8x32xbf16>, vector<8x32xbf16>, vector<8x8xf32> -> vector<8x8xf32>
    %71 = vector.broadcast %4 : vector<1x8xf32> to vector<8x8xf32>
    %72 = arith.addf %70, %71 : vector<8x8xf32>
    %cst_24 = arith.constant dense<0xFF800000> : vector<8xf32>
    %73 = vector.multi_reduction <maximumf>, %72, %cst_24 [1] : vector<8x8xf32> to vector<8xf32>
    %74 = vector.shape_cast %73 : vector<8xf32> to vector<8x1xf32>
    %75 = vector.broadcast %74 : vector<8x1xf32> to vector<8x8xf32>
    %76 = arith.subf %72, %75 : vector<8x8xf32>
    %77 = math.exp %76 : vector<8x8xf32>
    %cst_25 = arith.constant dense<0.000000e+00> : vector<8xf32>
    %78 = vector.multi_reduction <add>, %77, %cst_25 [1] : vector<8x8xf32> to vector<8xf32>
    %79 = vector.shape_cast %78 : vector<8xf32> to vector<8x1xf32>
    %80 = tpu.reciprocal %79 {approx = true} : vector<8x1xf32> -> vector<8x1xf32>
    %81 = vector.broadcast %80 : vector<8x1xf32> to vector<8x8xf32>
    %82 = arith.mulf %77, %81 : vector<8x8xf32>
    %83 = arith.truncf %82 : vector<8x8xf32> to vector<8x8xbf16>
    %cst_26 = arith.constant dense<0.000000e+00> : vector<8x32xf32>
    %84 = tpu.matmul %83, %69, %cst_26 {dimension_numbers = #tpu.dot_dimension_numbers<[1], [0], [0], [1], [0, 0, 1, 1], [], []>} : vector<8x8xbf16>, vector<8x32xbf16>, vector<8x32xf32> -> vector<8x32xf32>
    %85 = arith.truncf %84 : vector<8x32xf32> to vector<8x32xbf16>
    %86 = vector.extract_strided_slice %10 {offsets = [64, 0], sizes = [32, 128], strides = [1, 1]} : vector<128x128xbf16> to vector<32x128xbf16>
    %cst_27 = arith.constant dense<0.000000e+00> : vector<8x128xf32>
    %87 = tpu.matmul %85, %86, %cst_27 {dimension_numbers = #tpu.dot_dimension_numbers<[1], [0], [0], [1], [0, 0, 1, 1], [], []>} : vector<8x32xbf16>, vector<32x128xbf16>, vector<8x128xf32> -> vector<8x128xf32>
    %88 = arith.addf %63, %87 : vector<8x128xf32>
    %89 = vector.extract_strided_slice %9 {offsets = [0, 96], sizes = [8, 32], strides = [1, 1]} : vector<8x384xf32> to vector<8x32xf32>
    %90 = arith.truncf %89 : vector<8x32xf32> to vector<8x32xbf16>
    %91 = vector.extract_strided_slice %9 {offsets = [0, 224], sizes = [8, 32], strides = [1, 1]} : vector<8x384xf32> to vector<8x32xf32>
    %92 = arith.truncf %91 : vector<8x32xf32> to vector<8x32xbf16>
    %93 = vector.extract_strided_slice %9 {offsets = [0, 352], sizes = [8, 32], strides = [1, 1]} : vector<8x384xf32> to vector<8x32xf32>
    %94 = arith.truncf %93 : vector<8x32xf32> to vector<8x32xbf16>
    %cst_28 = arith.constant dense<0.000000e+00> : vector<8x8xf32>
    %95 = tpu.matmul %90, %92, %cst_28 {dimension_numbers = #tpu.dot_dimension_numbers<[1], [1], [0], [0], [0, 0, 1, 0], [], []>} : vector<8x32xbf16>, vector<8x32xbf16>, vector<8x8xf32> -> vector<8x8xf32>
    %96 = vector.broadcast %4 : vector<1x8xf32> to vector<8x8xf32>
    %97 = arith.addf %95, %96 : vector<8x8xf32>
    %cst_29 = arith.constant dense<0xFF800000> : vector<8xf32>
    %98 = vector.multi_reduction <maximumf>, %97, %cst_29 [1] : vector<8x8xf32> to vector<8xf32>
    %99 = vector.shape_cast %98 : vector<8xf32> to vector<8x1xf32>
    %100 = vector.broadcast %99 : vector<8x1xf32> to vector<8x8xf32>
    %101 = arith.subf %97, %100 : vector<8x8xf32>
    %102 = math.exp %101 : vector<8x8xf32>
    %cst_30 = arith.constant dense<0.000000e+00> : vector<8xf32>
    %103 = vector.multi_reduction <add>, %102, %cst_30 [1] : vector<8x8xf32> to vector<8xf32>
    %104 = vector.shape_cast %103 : vector<8xf32> to vector<8x1xf32>
    %105 = tpu.reciprocal %104 {approx = true} : vector<8x1xf32> -> vector<8x1xf32>
    %106 = vector.broadcast %105 : vector<8x1xf32> to vector<8x8xf32>
    %107 = arith.mulf %102, %106 : vector<8x8xf32>
    %108 = arith.truncf %107 : vector<8x8xf32> to vector<8x8xbf16>
    %cst_31 = arith.constant dense<0.000000e+00> : vector<8x32xf32>
    %109 = tpu.matmul %108, %94, %cst_31 {dimension_numbers = #tpu.dot_dimension_numbers<[1], [0], [0], [1], [0, 0, 1, 1], [], []>} : vector<8x8xbf16>, vector<8x32xbf16>, vector<8x32xf32> -> vector<8x32xf32>
    %110 = arith.truncf %109 : vector<8x32xf32> to vector<8x32xbf16>
    %111 = vector.extract_strided_slice %10 {offsets = [96, 0], sizes = [32, 128], strides = [1, 1]} : vector<128x128xbf16> to vector<32x128xbf16>
    %cst_32 = arith.constant dense<0.000000e+00> : vector<8x128xf32>
    %112 = tpu.matmul %110, %111, %cst_32 {dimension_numbers = #tpu.dot_dimension_numbers<[1], [0], [0], [1], [0, 0, 1, 1], [], []>} : vector<8x32xbf16>, vector<32x128xbf16>, vector<8x128xf32> -> vector<8x128xf32>
    %113 = arith.addf %88, %112 : vector<8x128xf32>
    %c0_33 = arith.constant 0 : index
    %c0_34 = arith.constant 0 : index
    %114 = vector.load %arg7[%c0_33, %c0_34] : memref<1x128xf32, #tpu.memory_space<vmem>>, vector<1x128xf32>
    %c0_35 = arith.constant 0 : index
    %c0_36 = arith.constant 0 : index
    %115 = vector.load %arg8[%c0_35, %c0_36] : memref<1x128xf32, #tpu.memory_space<vmem>>, vector<1x128xf32>
    %cst_37 = arith.constant dense<0.000000e+00> : vector<8xf32>
    %116 = vector.multi_reduction <add>, %113, %cst_37 [1] : vector<8x128xf32> to vector<8xf32>
    %117 = vector.shape_cast %116 : vector<8xf32> to vector<8x1xf32>
    %cst_38 = arith.constant 1.280000e+02 : f32
    %118 = vector.broadcast %cst_38 : f32 to vector<8x1xf32>
    %119 = arith.divf %117, %118 : vector<8x1xf32>
    %120 = vector.broadcast %119 : vector<8x1xf32> to vector<8x128xf32>
    %121 = arith.subf %113, %120 : vector<8x128xf32>
    %122 = vector.broadcast %119 : vector<8x1xf32> to vector<8x128xf32>
    %123 = arith.subf %113, %122 : vector<8x128xf32>
    %124 = arith.mulf %121, %123 : vector<8x128xf32>
    %cst_39 = arith.constant dense<0.000000e+00> : vector<8xf32>
    %125 = vector.multi_reduction <add>, %124, %cst_39 [1] : vector<8x128xf32> to vector<8xf32>
    %126 = vector.shape_cast %125 : vector<8xf32> to vector<8x1xf32>
    %cst_40 = arith.constant 1.280000e+02 : f32
    %127 = vector.broadcast %cst_40 : f32 to vector<8x1xf32>
    %128 = arith.divf %126, %127 : vector<8x1xf32>
    %129 = vector.broadcast %119 : vector<8x1xf32> to vector<8x128xf32>
    %130 = arith.subf %113, %129 : vector<8x128xf32>
    %cst_41 = arith.constant 9.99999996E-13 : f32
    %131 = vector.broadcast %cst_41 : f32 to vector<8x1xf32>
    %132 = arith.addf %128, %131 : vector<8x1xf32>
    %133 = math.rsqrt %132 : vector<8x1xf32>
    %134 = vector.broadcast %133 : vector<8x1xf32> to vector<8x128xf32>
    %135 = arith.mulf %130, %134 : vector<8x128xf32>
    %136 = vector.broadcast %114 : vector<1x128xf32> to vector<8x128xf32>
    %137 = arith.mulf %135, %136 : vector<8x128xf32>
    %138 = vector.broadcast %115 : vector<1x128xf32> to vector<8x128xf32>
    %139 = arith.addf %137, %138 : vector<8x128xf32>
    %140 = arith.truncf %139 : vector<8x128xf32> to vector<8x128xbf16>
    %c0_42 = arith.constant 0 : index
    %c0_43 = arith.constant 0 : index
    %141 = vector.load %arg9[%c0_42, %c0_43] : memref<128x256xbf16, #tpu.memory_space<vmem>>, vector<128x256xbf16>
    %cst_44 = arith.constant dense<0.000000e+00> : vector<8x256xf32>
    %142 = tpu.matmul %140, %141, %cst_44 {dimension_numbers = #tpu.dot_dimension_numbers<[1], [0], [0], [1], [0, 0, 1, 1], [], []>} : vector<8x128xbf16>, vector<128x256xbf16>, vector<8x256xf32> -> vector<8x256xf32>
    %c0_45 = arith.constant 0 : index
    %c0_46 = arith.constant 0 : index
    %143 = vector.load %arg10[%c0_45, %c0_46] : memref<1x256xf32, #tpu.memory_space<vmem>>, vector<1x256xf32>
    %144 = vector.broadcast %143 : vector<1x256xf32> to vector<8x256xf32>
    %145 = arith.addf %142, %144 : vector<8x256xf32>
    %cst_47 = arith.constant 5.000000e-01 : f32
    %146 = vector.broadcast %cst_47 : f32 to vector<8x256xf32>
    %147 = arith.mulf %146, %145 : vector<8x256xf32>
    %cst_48 = arith.constant 4.471500e-02 : f32
    %148 = vector.broadcast %cst_48 : f32 to vector<8x256xf32>
    %149 = arith.mulf %148, %145 : vector<8x256xf32>
    %150 = arith.mulf %149, %145 : vector<8x256xf32>
    %151 = arith.mulf %150, %145 : vector<8x256xf32>
    %152 = arith.addf %145, %151 : vector<8x256xf32>
    %cst_49 = arith.constant 0.797884583 : f32
    %153 = vector.broadcast %cst_49 : f32 to vector<8x256xf32>
    %154 = arith.mulf %153, %152 : vector<8x256xf32>
    %155 = math.tanh %154 : vector<8x256xf32>
    %cst_50 = arith.constant 1.000000e+00 : f32
    %156 = vector.broadcast %cst_50 : f32 to vector<8x256xf32>
    %157 = arith.addf %156, %155 : vector<8x256xf32>
    %158 = arith.mulf %147, %157 : vector<8x256xf32>
    %159 = arith.truncf %158 : vector<8x256xf32> to vector<8x256xbf16>
    %c0_51 = arith.constant 0 : index
    %c0_52 = arith.constant 0 : index
    %160 = vector.load %arg11[%c0_51, %c0_52] : memref<256x128xbf16, #tpu.memory_space<vmem>>, vector<256x128xbf16>
    %cst_53 = arith.constant dense<0.000000e+00> : vector<8x128xf32>
    %161 = tpu.matmul %159, %160, %cst_53 {dimension_numbers = #tpu.dot_dimension_numbers<[1], [0], [0], [1], [0, 0, 1, 1], [], []>} : vector<8x256xbf16>, vector<256x128xbf16>, vector<8x128xf32> -> vector<8x128xf32>
    %c0_54 = arith.constant 0 : index
    %c0_55 = arith.constant 0 : index
    %162 = vector.load %arg12[%c0_54, %c0_55] : memref<1x128xf32, #tpu.memory_space<vmem>>, vector<1x128xf32>
    %163 = vector.broadcast %162 : vector<1x128xf32> to vector<8x128xf32>
    %164 = arith.addf %161, %163 : vector<8x128xf32>
    %165 = arith.addf %164, %139 : vector<8x128xf32>
    %c0_56 = arith.constant 0 : index
    %c0_57 = arith.constant 0 : index
    %166 = vector.load %arg13[%c0_56, %c0_57] : memref<1x128xf32, #tpu.memory_space<vmem>>, vector<1x128xf32>
    %c0_58 = arith.constant 0 : index
    %c0_59 = arith.constant 0 : index
    %167 = vector.load %arg14[%c0_58, %c0_59] : memref<1x128xf32, #tpu.memory_space<vmem>>, vector<1x128xf32>
    %cst_60 = arith.constant dense<0.000000e+00> : vector<8xf32>
    %168 = vector.multi_reduction <add>, %165, %cst_60 [1] : vector<8x128xf32> to vector<8xf32>
    %169 = vector.shape_cast %168 : vector<8xf32> to vector<8x1xf32>
    %cst_61 = arith.constant 1.280000e+02 : f32
    %170 = vector.broadcast %cst_61 : f32 to vector<8x1xf32>
    %171 = arith.divf %169, %170 : vector<8x1xf32>
    %172 = vector.broadcast %171 : vector<8x1xf32> to vector<8x128xf32>
    %173 = arith.subf %165, %172 : vector<8x128xf32>
    %174 = vector.broadcast %171 : vector<8x1xf32> to vector<8x128xf32>
    %175 = arith.subf %165, %174 : vector<8x128xf32>
    %176 = arith.mulf %173, %175 : vector<8x128xf32>
    %cst_62 = arith.constant dense<0.000000e+00> : vector<8xf32>
    %177 = vector.multi_reduction <add>, %176, %cst_62 [1] : vector<8x128xf32> to vector<8xf32>
    %178 = vector.shape_cast %177 : vector<8xf32> to vector<8x1xf32>
    %cst_63 = arith.constant 1.280000e+02 : f32
    %179 = vector.broadcast %cst_63 : f32 to vector<8x1xf32>
    %180 = arith.divf %178, %179 : vector<8x1xf32>
    %181 = vector.broadcast %171 : vector<8x1xf32> to vector<8x128xf32>
    %182 = arith.subf %165, %181 : vector<8x128xf32>
    %cst_64 = arith.constant 9.99999996E-13 : f32
    %183 = vector.broadcast %cst_64 : f32 to vector<8x1xf32>
    %184 = arith.addf %180, %183 : vector<8x1xf32>
    %185 = math.rsqrt %184 : vector<8x1xf32>
    %186 = vector.broadcast %185 : vector<8x1xf32> to vector<8x128xf32>
    %187 = arith.mulf %182, %186 : vector<8x128xf32>
    %188 = vector.broadcast %166 : vector<1x128xf32> to vector<8x128xf32>
    %189 = arith.mulf %187, %188 : vector<8x128xf32>
    %190 = vector.broadcast %167 : vector<1x128xf32> to vector<8x128xf32>
    %191 = arith.addf %189, %190 : vector<8x128xf32>
    %192 = arith.truncf %191 : vector<8x128xf32> to vector<8x128xbf16>
    %c0_65 = arith.constant 0 : index
    %c0_66 = arith.constant 0 : index
    %c0_67 = arith.constant 0 : index
    %193 = vector.load %arg15[%c0_65, %c0_66, %c0_67] : memref<1x8x128xbf16, #tpu.memory_space<vmem>>, vector<1x8x128xbf16>
    %194 = vector.shape_cast %193 : vector<1x8x128xbf16> to vector<8x128xbf16>
    %195 = vector.shape_cast %192 : vector<8x128xbf16> to vector<1x8x128xbf16>
    tpu.vector_store %arg15[%c0_65, %c0_66, %c0_67], %195 {strides = array<i32>} : memref<1x8x128xbf16, #tpu.memory_space<vmem>>, vector<1x8x128xbf16>,
    return
  }
  func.func @transform_0(%arg0: i32) -> (i32, i32, i32) {
    %c0_i32 = arith.constant 0 : i32
    %c0_i32_0 = arith.constant 0 : i32
    %c0_i32_1 = arith.constant 0 : i32
    return %arg0, %c0_i32, %c0_i32_0 : i32, i32, i32
  }
  func.func @transform_1(%arg0: i32) -> (i32, i32, i32) {
    %c0_i32 = arith.constant 0 : i32
    %c0_i32_0 = arith.constant 0 : i32
    %c0_i32_1 = arith.constant 0 : i32
    return %arg0, %c0_i32, %c0_i32_0 : i32, i32, i32
  }
  func.func @transform_2(%arg0: i32) -> (i32, i32) {
    %c0_i32 = arith.constant 0 : i32
    %c0_i32_0 = arith.constant 0 : i32
    %c0_i32_1 = arith.constant 0 : i32
    return %c0_i32, %c0_i32_0 : i32, i32
  }
  func.func @transform_3(%arg0: i32) -> (i32, i32) {
    %c0_i32 = arith.constant 0 : i32
    %c0_i32_0 = arith.constant 0 : i32
    %c0_i32_1 = arith.constant 0 : i32
    return %c0_i32, %c0_i32_0 : i32, i32
  }
  func.func @transform_4(%arg0: i32) -> (i32, i32) {
    %c0_i32 = arith.constant 0 : i32
    %c0_i32_0 = arith.constant 0 : i32
    %c0_i32_1 = arith.constant 0 : i32
    return %c0_i32, %c0_i32_0 : i32, i32
  }
  func.func @transform_5(%arg0: i32) -> (i32, i32) {
    %c0_i32 = arith.constant 0 : i32
    %c0_i32_0 = arith.constant 0 : i32
    %c0_i32_1 = arith.constant 0 : i32
    return %c0_i32, %c0_i32_0 : i32, i32
  }
  func.func @transform_6(%arg0: i32) -> (i32, i32) {
    %c0_i32 = arith.constant 0 : i32
    %c0_i32_0 = arith.constant 0 : i32
    %c0_i32_1 = arith.constant 0 : i32
    return %c0_i32, %c0_i32_0 : i32, i32
  }
  func.func @transform_7(%arg0: i32) -> (i32, i32) {
    %c0_i32 = arith.constant 0 : i32
    %c0_i32_0 = arith.constant 0 : i32
    %c0_i32_1 = arith.constant 0 : i32
    return %c0_i32, %c0_i32_0 : i32, i32
  }
  func.func @transform_8(%arg0: i32) -> (i32, i32) {
    %c0_i32 = arith.constant 0 : i32
    %c0_i32_0 = arith.constant 0 : i32
    %c0_i32_1 = arith.constant 0 : i32
    return %c0_i32, %c0_i32_0 : i32, i32
  }
  func.func @transform_9(%arg0: i32) -> (i32, i32) {
    %c0_i32 = arith.constant 0 : i32
    %c0_i32_0 = arith.constant 0 : i32
    %c0_i32_1 = arith.constant 0 : i32
    return %c0_i32, %c0_i32_0 : i32, i32
  }
  func.func @transform_10(%arg0: i32) -> (i32, i32) {
    %c0_i32 = arith.constant 0 : i32
    %c0_i32_0 = arith.constant 0 : i32
    %c0_i32_1 = arith.constant 0 : i32
    return %c0_i32, %c0_i32_0 : i32, i32
  }
  func.func @transform_11(%arg0: i32) -> (i32, i32) {
    %c0_i32 = arith.constant 0 : i32
    %c0_i32_0 = arith.constant 0 : i32
    %c0_i32_1 = arith.constant 0 : i32
    return %c0_i32, %c0_i32_0 : i32, i32
  }
  func.func @transform_12(%arg0: i32) -> (i32, i32) {
    %c0_i32 = arith.constant 0 : i32
    %c0_i32_0 = arith.constant 0 : i32
    %c0_i32_1 = arith.constant 0 : i32
    return %c0_i32, %c0_i32_0 : i32, i32
  }
  func.func @transform_13(%arg0: i32) -> (i32, i32) {
    %c0_i32 = arith.constant 0 : i32
    %c0_i32_0 = arith.constant 0 : i32
    %c0_i32_1 = arith.constant 0 : i32
    return %c0_i32, %c0_i32_0 : i32, i32
  }
  func.func @transform_14(%arg0: i32) -> (i32, i32, i32) {
    %c0_i32 = arith.constant 0 : i32
    %c0_i32_0 = arith.constant 0 : i32
    %c0_i32_1 = arith.constant 0 : i32
    return %arg0, %c0_i32, %c0_i32_0 : i32, i32, i32
  }
}

module attributes {stable_mosaic.version = 11 : i64} {
  func.func @fused_layer_kernel(%arg0: i32, %arg1: memref<1x8x128xbf16, #tpu.memory_space<vmem>>, %arg2: memref<1x1x8xf32, #tpu.memory_space<vmem>>, %arg3: memref<128x384xbf16, #tpu.memory_space<vmem>>, %arg4: memref<1x384xf32, #tpu.memory_space<vmem>>, %arg5: memref<128x128xbf16, #tpu.memory_space<vmem>>, %arg6: memref<1x128xf32, #tpu.memory_space<vmem>>, %arg7: memref<1x128xf32, #tpu.memory_space<vmem>>, %arg8: memref<1x128xf32, #tpu.memory_space<vmem>>, %arg9: memref<128x256xbf16, #tpu.memory_space<vmem>>, %arg10: memref<1x256xf32, #tpu.memory_space<vmem>>, %arg11: memref<256x128xbf16, #tpu.memory_space<vmem>>, %arg12: memref<1x128xf32, #tpu.memory_space<vmem>>, %arg13: memref<1x128xf32, #tpu.memory_space<vmem>>, %arg14: memref<1x128xf32, #tpu.memory_space<vmem>>, %arg15: memref<1x8x128xbf16, #tpu.memory_space<vmem>>) attributes {dimension_semantics = [#tpu.dimension_semantics<parallel>], iteration_bounds = array<i64: 2>, scalar_prefetch = 0 : i64, scratch_operands = 0 : i64, tpu.core_type = #tpu.core_type<tc>, window_params = [{transform_indices = @transform_0, window_bounds = array<i64: 1, 8, 128>}, {transform_indices = @transform_1, window_bounds = array<i64: 1, 1, 8>}, {pipeline_mode = #tpu.pipeline_mode<synchronous>, transform_indices = @transform_2, window_bounds = array<i64: 128, 384>}, {pipeline_mode = #tpu.pipeline_mode<synchronous>, transform_indices = @transform_3, window_bounds = array<i64: 1, 384>}, {pipeline_mode = #tpu.pipeline_mode<synchronous>, transform_indices = @transform_4, window_bounds = array<i64: 128, 128>}, {pipeline_mode = #tpu.pipeline_mode<synchronous>, transform_indices = @transform_5, window_bounds = array<i64: 1, 128>}, {pipeline_mode = #tpu.pipeline_mode<synchronous>, transform_indices = @transform_6, window_bounds = array<i64: 1, 128>}, {pipeline_mode = #tpu.pipeline_mode<synchronous>, transform_indices = @transform_7, window_bounds = array<i64: 1, 128>}, {pipeline_mode = #tpu.pipeline_mode<synchronous>, transform_indices = @transform_8, window_bounds = array<i64: 128, 256>}, {pipeline_mode = #tpu.pipeline_mode<synchronous>, transform_indices = @transform_9, window_bounds = array<i64: 1, 256>}, {pipeline_mode = #tpu.pipeline_mode<synchronous>, transform_indices = @transform_10, window_bounds = array<i64: 256, 128>}, {pipeline_mode = #tpu.pipeline_mode<synchronous>, transform_indices = @transform_11, window_bounds = array<i64: 1, 128>}, {pipeline_mode = #tpu.pipeline_mode<synchronous>, transform_indices = @transform_12, window_bounds = array<i64: 1, 128>}, {pipeline_mode = #tpu.pipeline_mode<synchronous>, transform_indices = @transform_13, window_bounds = array<i64: 1, 128>}, {transform_indices = @transform_14, window_bounds = array<i64: 1, 8, 128>}]} {
    %c0 = arith.constant 0 : index
    %c0_0 = arith.constant 0 : index
    %c0_1 = arith.constant 0 : index
    %0 = vector.load %arg1[%c0, %c0_0, %c0_1] : memref<1x8x128xbf16, #tpu.memory_space<vmem>>, vector<1x8x128xbf16>
    %1 = vector.shape_cast %0 : vector<1x8x128xbf16> to vector<8x128xbf16>
    %2 = arith.extf %1 : vector<8x128xbf16> to vector<8x128xf32>
    %c0_2 = arith.constant 0 : index
    %c0_3 = arith.constant 0 : index
    %c0_4 = arith.constant 0 : index
    %3 = vector.load %arg2[%c0_2, %c0_3, %c0_4] : memref<1x1x8xf32, #tpu.memory_space<vmem>>, vector<1x1x8xf32>
    %4 = vector.shape_cast %3 : vector<1x1x8xf32> to vector<1x8xf32>
    %c0_5 = arith.constant 0 : index
    %c0_6 = arith.constant 0 : index
    %5 = vector.load %arg3[%c0_5, %c0_6] : memref<128x384xbf16, #tpu.memory_space<vmem>>, vector<128x384xbf16>
    %cst = arith.constant dense<0.000000e+00> : vector<8x384xf32>
    %6 = tpu.matmul %1, %5, %cst {dimension_numbers = #tpu.dot_dimension_numbers<[1], [0], [0], [1], [0, 0, 1, 1], [], []>} : vector<8x128xbf16>, vector<128x384xbf16>, vector<8x384xf32> -> vector<8x384xf32>
    %c0_7 = arith.constant 0 : index
    %c0_8 = arith.constant 0 : index
    %7 = vector.load %arg4[%c0_7, %c0_8] : memref<1x384xf32, #tpu.memory_space<vmem>>, vector<1x384xf32>
    %8 = vector.broadcast %7 : vector<1x384xf32> to vector<8x384xf32>
    %9 = arith.addf %6, %8 : vector<8x384xf32>
    %c0_9 = arith.constant 0 : index
    %c0_10 = arith.constant 0 : index
    %10 = vector.load %arg5[%c0_9, %c0_10] : memref<128x128xbf16, #tpu.memory_space<vmem>>, vector<128x128xbf16>
    %c0_11 = arith.constant 0 : index
    %c0_12 = arith.constant 0 : index
    %11 = vector.load %arg6[%c0_11, %c0_12] : memref<1x128xf32, #tpu.memory_space<vmem>>, vector<1x128xf32>
    %12 = vector.broadcast %11 : vector<1x128xf32> to vector<8x128xf32>
    %13 = arith.addf %2, %12 : vector<8x128xf32>
    %14 = vector.extract_strided_slice %9 {offsets = [0, 0], sizes = [8, 32], strides = [1, 1]} : vector<8x384xf32> to vector<8x32xf32>
    %15 = arith.truncf %14 : vector<8x32xf32> to vector<8x32xbf16>
    %16 = vector.extract_strided_slice %9 {offsets = [0, 128], sizes = [8, 32], strides = [1, 1]} : vector<8x384xf32> to vector<8x32xf32>
    %17 = arith.truncf %16 : vector<8x32xf32> to vector<8x32xbf16>
    %18 = vector.extract_strided_slice %9 {offsets = [0, 256], sizes = [8, 32], strides = [1, 1]} : vector<8x384xf32> to vector<8x32xf32>
    %19 = arith.truncf %18 : vector<8x32xf32> to vector<8x32xbf16>
    %cst_13 = arith.constant dense<0.000000e+00> : vector<8x8xf32>
    %20 = tpu.matmul %15, %17, %cst_13 {dimension_numbers = #tpu.dot_dimension_numbers<[1], [1], [0], [0], [0, 0, 1, 0], [], []>} : vector<8x32xbf16>, vector<8x32xbf16>, vector<8x8xf32> -> vector<8x8xf32>
    %21 = vector.broadcast %4 : vector<1x8xf32> to vector<8x8xf32>
    %22 = arith.addf %20, %21 : vector<8x8xf32>
    %cst_14 = arith.constant dense<0xFF800000> : vector<8xf32>
    %23 = vector.multi_reduction <maximumf>, %22, %cst_14 [1] : vector<8x8xf32> to vector<8xf32>
    %24 = vector.shape_cast %23 : vector<8xf32> to vector<8x1xf32>
    %25 = vector.broadcast %24 : vector<8x1xf32> to vector<8x8xf32>
    %26 = arith.subf %22, %25 : vector<8x8xf32>
    %27 = math.exp %26 : vector<8x8xf32>
    %cst_15 = arith.constant dense<0.000000e+00> : vector<8xf32>
    %28 = vector.multi_reduction <add>, %27, %cst_15 [1] : vector<8x8xf32> to vector<8xf32>
    %29 = vector.shape_cast %28 : vector<8xf32> to vector<8x1xf32>
    %30 = tpu.reciprocal %29 {approx = true} : vector<8x1xf32> -> vector<8x1xf32>
    %31 = vector.broadcast %30 : vector<8x1xf32> to vector<8x8xf32>
    %32 = arith.mulf %27, %31 : vector<8x8xf32>
    %33 = arith.truncf %32 : vector<8x8xf32> to vector<8x8xbf16>
    %cst_16 = arith.constant dense<0.000000e+00> : vector<8x32xf32>
    %34 = tpu.matmul %33, %19, %cst_16 {dimension_numbers = #tpu.dot_dimension_numbers<[1], [0], [0], [1], [0, 0, 1, 1], [], []>} : vector<8x8xbf16>, vector<8x32xbf16>, vector<8x32xf32> -> vector<8x32xf32>
    %35 = arith.truncf %34 : vector<8x32xf32> to vector<8x32xbf16>
    %36 = vector.extract_strided_slice %10 {offsets = [0, 0], sizes = [32, 128], strides = [1, 1]} : vector<128x128xbf16> to vector<32x128xbf16>
    %cst_17 = arith.constant dense<0.000000e+00> : vector<8x128xf32>
    %37 = tpu.matmul %35, %36, %cst_17 {dimension_numbers = #tpu.dot_dimension_numbers<[1], [0], [0], [1], [0, 0, 1, 1], [], []>} : vector<8x32xbf16>, vector<32x128xbf16>, vector<8x128xf32> -> vector<8x128xf32>
    %38 = arith.addf %13, %37 : vector<8x128xf32>
    %39 = vector.extract_strided_slice %9 {offsets = [0, 32], sizes = [8, 32], strides = [1, 1]} : vector<8x384xf32> to vector<8x32xf32>
    %40 = arith.truncf %39 : vector<8x32xf32> to vector<8x32xbf16>
    %41 = vector.extract_strided_slice %9 {offsets = [0, 160], sizes = [8, 32], strides = [1, 1]} : vector<8x384xf32> to vector<8x32xf32>
    %42 = arith.truncf %41 : vector<8x32xf32> to vector<8x32xbf16>
    %43 = vector.extract_strided_slice %9 {offsets = [0, 288], sizes = [8, 32], strides = [1, 1]} : vector<8x384xf32> to vector<8x32xf32>
    %44 = arith.truncf %43 : vector<8x32xf32> to vector<8x32xbf16>
    %cst_18 = arith.constant dense<0.000000e+00> : vector<8x8xf32>
    %45 = tpu.matmul %40, %42, %cst_18 {dimension_numbers = #tpu.dot_dimension_numbers<[1], [1], [0], [0], [0, 0, 1, 0], [], []>} : vector<8x32xbf16>, vector<8x32xbf16>, vector<8x8xf32> -> vector<8x8xf32>
    %46 = vector.broadcast %4 : vector<1x8xf32> to vector<8x8xf32>
    %47 = arith.addf %45, %46 : vector<8x8xf32>
    %cst_19 = arith.constant dense<0xFF800000> : vector<8xf32>
    %48 = vector.multi_reduction <maximumf>, %47, %cst_19 [1] : vector<8x8xf32> to vector<8xf32>
    %49 = vector.shape_cast %48 : vector<8xf32> to vector<8x1xf32>
    %50 = vector.broadcast %49 : vector<8x1xf32> to vector<8x8xf32>
    %51 = arith.subf %47, %50 : vector<8x8xf32>
    %52 = math.exp %51 : vector<8x8xf32>
    %cst_20 = arith.constant dense<0.000000e+00> : vector<8xf32>
    %53 = vector.multi_reduction <add>, %52, %cst_20 [1] : vector<8x8xf32> to vector<8xf32>
    %54 = vector.shape_cast %53 : vector<8xf32> to vector<8x1xf32>
    %55 = tpu.reciprocal %54 {approx = true} : vector<8x1xf32> -> vector<8x1xf32>
    %56 = vector.broadcast %55 : vector<8x1xf32> to vector<8x8xf32>
    %57 = arith.mulf %52, %56 : vector<8x8xf32>
    %58 = arith.truncf %57 : vector<8x8xf32> to vector<8x8xbf16>
    %cst_21 = arith.constant dense<0.000000e+00> : vector<8x32xf32>
    %59 = tpu.matmul %58, %44, %cst_21 {dimension_numbers = #tpu.dot_dimension_numbers<[1], [0], [0], [1], [0, 0, 1, 1], [], []>} : vector<8x8xbf16>, vector<8x32xbf16>, vector<8x32xf32> -> vector<8x32xf32>
    %60 = arith.truncf %59 : vector<8x32xf32> to vector<8x32xbf16>
    %61 = vector.extract_strided_slice %10 {offsets = [32, 0], sizes = [32, 128], strides = [1, 1]} : vector<128x128xbf16> to vector<32x128xbf16>
    %cst_22 = arith.constant dense<0.000000e+00> : vector<8x128xf32>
    %62 = tpu.matmul %60, %61, %cst_22 {dimension_numbers = #tpu.dot_dimension_numbers<[1], [0], [0], [1], [0, 0, 1, 1], [], []>} : vector<8x32xbf16>, vector<32x128xbf16>, vector<8x128xf32> -> vector<8x128xf32>
    %63 = arith.addf %38, %62 : vector<8x128xf32>
    %64 = vector.extract_strided_slice %9 {offsets = [0, 64], sizes = [8, 32], strides = [1, 1]} : vector<8x384xf32> to vector<8x32xf32>
    %65 = arith.truncf %64 : vector<8x32xf32> to vector<8x32xbf16>
    %66 = vector.extract_strided_slice %9 {offsets = [0, 192], sizes = [8, 32], strides = [1, 1]} : vector<8x384xf32> to vector<8x32xf32>
    %67 = arith.truncf %66 : vector<8x32xf32> to vector<8x32xbf16>
    %68 = vector.extract_strided_slice %9 {offsets = [0, 320], sizes = [8, 32], strides = [1, 1]} : vector<8x384xf32> to vector<8x32xf32>
    %69 = arith.truncf %68 : vector<8x32xf32> to vector<8x32xbf16>
    %cst_23 = arith.constant dense<0.000000e+00> : vector<8x8xf32>
    %70 = tpu.matmul %65, %67, %cst_23 {dimension_numbers = #tpu.dot_dimension_numbers<[1], [1], [0], [0], [0, 0, 1, 0], [], []>} : vector<8x32xbf16>, vector<8x32xbf16>, vector<8x8xf32> -> vector<8x8xf32>
    %71 = vector.broadcast %4 : vector<1x8xf32> to vector<8x8xf32>
    %72 = arith.addf %70, %71 : vector<8x8xf32>
    %cst_24 = arith.constant dense<0xFF800000> : vector<8xf32>
    %73 = vector.multi_reduction <maximumf>, %72, %cst_24 [1] : vector<8x8xf32> to vector<8xf32>
    %74 = vector.shape_cast %73 : vector<8xf32> to vector<8x1xf32>
    %75 = vector.broadcast %74 : vector<8x1xf32> to vector<8x8xf32>
    %76 = arith.subf %72, %75 : vector<8x8xf32>
    %77 = math.exp %76 : vector<8x8xf32>
    %cst_25 = arith.constant dense<0.000000e+00> : vector<8xf32>
    %78 = vector.multi_reduction <add>, %77, %cst_25 [1] : vector<8x8xf32> to vector<8xf32>
    %79 = vector.shape_cast %78 : vector<8xf32> to vector<8x1xf32>
    %80 = tpu.reciprocal %79 {approx = true} : vector<8x1xf32> -> vector<8x1xf32>
    %81 = vector.broadcast %80 : vector<8x1xf32> to vector<8x8xf32>
    %82 = arith.mulf %77, %81 : vector<8x8xf32>
    %83 = arith.truncf %82 : vector<8x8xf32> to vector<8x8xbf16>
    %cst_26 = arith.constant dense<0.000000e+00> : vector<8x32xf32>
    %84 = tpu.matmul %83, %69, %cst_26 {dimension_numbers = #tpu.dot_dimension_numbers<[1], [0], [0], [1], [0, 0, 1, 1], [], []>} : vector<8x8xbf16>, vector<8x32xbf16>, vector<8x32xf32> -> vector<8x32xf32>
    %85 = arith.truncf %84 : vector<8x32xf32> to vector<8x32xbf16>
    %86 = vector.extract_strided_slice %10 {offsets = [64, 0], sizes = [32, 128], strides = [1, 1]} : vector<128x128xbf16> to vector<32x128xbf16>
    %cst_27 = arith.constant dense<0.000000e+00> : vector<8x128xf32>
    %87 = tpu.matmul %85, %86, %cst_27 {dimension_numbers = #tpu.dot_dimension_numbers<[1], [0], [0], [1], [0, 0, 1, 1], [], []>} : vector<8x32xbf16>, vector<32x128xbf16>, vector<8x128xf32> -> vector<8x128xf32>
    %88 = arith.addf %63, %87 : vector<8x128xf32>
    %89 = vector.extract_strided_slice %9 {offsets = [0, 96], sizes = [8, 32], strides = [1, 1]} : vector<8x384xf32> to vector<8x32xf32>
    %90 = arith.truncf %89 : vector<8x32xf32> to vector<8x32xbf16>
    %91 = vector.extract_strided_slice %9 {offsets = [0, 224], sizes = [8, 32], strides = [1, 1]} : vector<8x384xf32> to vector<8x32xf32>
    %92 = arith.truncf %91 : vector<8x32xf32> to vector<8x32xbf16>
    %93 = vector.extract_strided_slice %9 {offsets = [0, 352], sizes = [8, 32], strides = [1, 1]} : vector<8x384xf32> to vector<8x32xf32>
    %94 = arith.truncf %93 : vector<8x32xf32> to vector<8x32xbf16>
    %cst_28 = arith.constant dense<0.000000e+00> : vector<8x8xf32>
    %95 = tpu.matmul %90, %92, %cst_28 {dimension_numbers = #tpu.dot_dimension_numbers<[1], [1], [0], [0], [0, 0, 1, 0], [], []>} : vector<8x32xbf16>, vector<8x32xbf16>, vector<8x8xf32> -> vector<8x8xf32>
    %96 = vector.broadcast %4 : vector<1x8xf32> to vector<8x8xf32>
    %97 = arith.addf %95, %96 : vector<8x8xf32>
    %cst_29 = arith.constant dense<0xFF800000> : vector<8xf32>
    %98 = vector.multi_reduction <maximumf>, %97, %cst_29 [1] : vector<8x8xf32> to vector<8xf32>
    %99 = vector.shape_cast %98 : vector<8xf32> to vector<8x1xf32>
    %100 = vector.broadcast %99 : vector<8x1xf32> to vector<8x8xf32>
    %101 = arith.subf %97, %100 : vector<8x8xf32>
    %102 = math.exp %101 : vector<8x8xf32>
    %cst_30 = arith.constant dense<0.000000e+00> : vector<8xf32>
    %103 = vector.multi_reduction <add>, %102, %cst_30 [1] : vector<8x8xf32> to vector<8xf32>
    %104 = vector.shape_cast %103 : vector<8xf32> to vector<8x1xf32>
    %105 = tpu.reciprocal %104 {approx = true} : vector<8x1xf32> -> vector<8x1xf32>
    %106 = vector.broadcast %105 : vector<8x1xf32> to vector<8x8xf32>
    %107 = arith.mulf %102, %106 : vector<8x8xf32>
    %108 = arith.truncf %107 : vector<8x8xf32> to vector<8x8xbf16>
    %cst_31 = arith.constant dense<0.000000e+00> : vector<8x32xf32>
    %109 = tpu.matmul %108, %94, %cst_31 {dimension_numbers = #tpu.dot_dimension_numbers<[1], [0], [0], [1], [0, 0, 1, 1], [], []>} : vector<8x8xbf16>, vector<8x32xbf16>, vector<8x32xf32> -> vector<8x32xf32>
    %110 = arith.truncf %109 : vector<8x32xf32> to vector<8x32xbf16>
    %111 = vector.extract_strided_slice %10 {offsets = [96, 0], sizes = [32, 128], strides = [1, 1]} : vector<128x128xbf16> to vector<32x128xbf16>
    %cst_32 = arith.constant dense<0.000000e+00> : vector<8x128xf32>
    %112 = tpu.matmul %110, %111, %cst_32 {dimension_numbers = #tpu.dot_dimension_numbers<[1], [0], [0], [1], [0, 0, 1, 1], [], []>} : vector<8x32xbf16>, vector<32x128xbf16>, vector<8x128xf32> -> vector<8x128xf32>
    %113 = arith.addf %88, %112 : vector<8x128xf32>
    %c0_33 = arith.constant 0 : index
    %c0_34 = arith.constant 0 : index
    %114 = vector.load %arg7[%c0_33, %c0_34] : memref<1x128xf32, #tpu.memory_space<vmem>>, vector<1x128xf32>
    %c0_35 = arith.constant 0 : index
    %c0_36 = arith.constant 0 : index
    %115 = vector.load %arg8[%c0_35, %c0_36] : memref<1x128xf32, #tpu.memory_space<vmem>>, vector<1x128xf32>
    %cst_37 = arith.constant dense<0.000000e+00> : vector<8xf32>
    %116 = vector.multi_reduction <add>, %113, %cst_37 [1] : vector<8x128xf32> to vector<8xf32>
    %117 = vector.shape_cast %116 : vector<8xf32> to vector<8x1xf32>
    %cst_38 = arith.constant 1.280000e+02 : f32
    %118 = vector.broadcast %cst_38 : f32 to vector<8x1xf32>
    %119 = arith.divf %117, %118 : vector<8x1xf32>
    %120 = vector.broadcast %119 : vector<8x1xf32> to vector<8x128xf32>
    %121 = arith.subf %113, %120 : vector<8x128xf32>
    %122 = vector.broadcast %119 : vector<8x1xf32> to vector<8x128xf32>
    %123 = arith.subf %113, %122 : vector<8x128xf32>
    %124 = arith.mulf %121, %123 : vector<8x128xf32>
    %cst_39 = arith.constant dense<0.000000e+00> : vector<8xf32>
    %125 = vector.multi_reduction <add>, %124, %cst_39 [1] : vector<8x128xf32> to vector<8xf32>
    %126 = vector.shape_cast %125 : vector<8xf32> to vector<8x1xf32>
    %cst_40 = arith.constant 1.280000e+02 : f32
    %127 = vector.broadcast %cst_40 : f32 to vector<8x1xf32>
    %128 = arith.divf %126, %127 : vector<8x1xf32>
    %129 = vector.broadcast %119 : vector<8x1xf32> to vector<8x128xf32>
    %130 = arith.subf %113, %129 : vector<8x128xf32>
    %cst_41 = arith.constant 9.99999996E-13 : f32
    %131 = vector.broadcast %cst_41 : f32 to vector<8x1xf32>
    %132 = arith.addf %128, %131 : vector<8x1xf32>
    %133 = math.rsqrt %132 : vector<8x1xf32>
    %134 = vector.broadcast %133 : vector<8x1xf32> to vector<8x128xf32>
    %135 = arith.mulf %130, %134 : vector<8x128xf32>
    %136 = vector.broadcast %114 : vector<1x128xf32> to vector<8x128xf32>
    %137 = arith.mulf %135, %136 : vector<8x128xf32>
    %138 = vector.broadcast %115 : vector<1x128xf32> to vector<8x128xf32>
    %139 = arith.addf %137, %138 : vector<8x128xf32>
    %140 = arith.truncf %139 : vector<8x128xf32> to vector<8x128xbf16>
    %c0_42 = arith.constant 0 : index
    %c0_43 = arith.constant 0 : index
    %141 = vector.load %arg9[%c0_42, %c0_43] : memref<128x256xbf16, #tpu.memory_space<vmem>>, vector<128x256xbf16>
    %cst_44 = arith.constant dense<0.000000e+00> : vector<8x256xf32>
    %142 = tpu.matmul %140, %141, %cst_44 {dimension_numbers = #tpu.dot_dimension_numbers<[1], [0], [0], [1], [0, 0, 1, 1], [], []>} : vector<8x128xbf16>, vector<128x256xbf16>, vector<8x256xf32> -> vector<8x256xf32>
    %c0_45 = arith.constant 0 : index
    %c0_46 = arith.constant 0 : index
    %143 = vector.load %arg10[%c0_45, %c0_46] : memref<1x256xf32, #tpu.memory_space<vmem>>, vector<1x256xf32>
    %144 = vector.broadcast %143 : vector<1x256xf32> to vector<8x256xf32>
    %145 = arith.addf %142, %144 : vector<8x256xf32>
    %cst_47 = arith.constant 5.000000e-01 : f32
    %146 = vector.broadcast %cst_47 : f32 to vector<8x256xf32>
    %147 = arith.mulf %146, %145 : vector<8x256xf32>
    %cst_48 = arith.constant 4.471500e-02 : f32
    %148 = vector.broadcast %cst_48 : f32 to vector<8x256xf32>
    %149 = arith.mulf %148, %145 : vector<8x256xf32>
    %150 = arith.mulf %149, %145 : vector<8x256xf32>
    %151 = arith.mulf %150, %145 : vector<8x256xf32>
    %152 = arith.addf %145, %151 : vector<8x256xf32>
    %cst_49 = arith.constant 0.797884583 : f32
    %153 = vector.broadcast %cst_49 : f32 to vector<8x256xf32>
    %154 = arith.mulf %153, %152 : vector<8x256xf32>
    %155 = math.tanh %154 : vector<8x256xf32>
    %cst_50 = arith.constant 1.000000e+00 : f32
    %156 = vector.broadcast %cst_50 : f32 to vector<8x256xf32>
    %157 = arith.addf %156, %155 : vector<8x256xf32>
    %158 = arith.mulf %147, %157 : vector<8x256xf32>
    %159 = arith.truncf %158 : vector<8x256xf32> to vector<8x256xbf16>
    %c0_51 = arith.constant 0 : index
    %c0_52 = arith.constant 0 : index
    %160 = vector.load %arg11[%c0_51, %c0_52] : memref<256x128xbf16, #tpu.memory_space<vmem>>, vector<256x128xbf16>
    %cst_53 = arith.constant dense<0.000000e+00> : vector<8x128xf32>
    %161 = tpu.matmul %159, %160, %cst_53 {dimension_numbers = #tpu.dot_dimension_numbers<[1], [0], [0], [1], [0, 0, 1, 1], [], []>} : vector<8x256xbf16>, vector<256x128xbf16>, vector<8x128xf32> -> vector<8x128xf32>
    %c0_54 = arith.constant 0 : index
    %c0_55 = arith.constant 0 : index
    %162 = vector.load %arg12[%c0_54, %c0_55] : memref<1x128xf32, #tpu.memory_space<vmem>>, vector<1x128xf32>
    %163 = vector.broadcast %162 : vector<1x128xf32> to vector<8x128xf32>
    %164 = arith.addf %161, %163 : vector<8x128xf32>
    %165 = arith.addf %164, %139 : vector<8x128xf32>
    %c0_56 = arith.constant 0 : index
    %c0_57 = arith.constant 0 : index
    %166 = vector.load %arg13[%c0_56, %c0_57] : memref<1x128xf32, #tpu.memory_space<vmem>>, vector<1x128xf32>
    %c0_58 = arith.constant 0 : index
    %c0_59 = arith.constant 0 : index
    %167 = vector.load %arg14[%c0_58, %c0_59] : memref<1x128xf32, #tpu.memory_space<vmem>>, vector<1x128xf32>
    %cst_60 = arith.constant dense<0.000000e+00> : vector<8xf32>
    %168 = vector.multi_reduction <add>, %165, %cst_60 [1] : vector<8x128xf32> to vector<8xf32>
    %169 = vector.shape_cast %168 : vector<8xf32> to vector<8x1xf32>
    %cst_61 = arith.constant 1.280000e+02 : f32
    %170 = vector.broadcast %cst_61 : f32 to vector<8x1xf32>
    %171 = arith.divf %169, %170 : vector<8x1xf32>
    %172 = vector.broadcast %171 : vector<8x1xf32> to vector<8x128xf32>
    %173 = arith.subf %165, %172 : vector<8x128xf32>
    %174 = vector.broadcast %171 : vector<8x1xf32> to vector<8x128xf32>
    %175 = arith.subf %165, %174 : vector<8x128xf32>
    %176 = arith.mulf %173, %175 : vector<8x128xf32>
    %cst_62 = arith.constant dense<0.000000e+00> : vector<8xf32>
    %177 = vector.multi_reduction <add>, %176, %cst_62 [1] : vector<8x128xf32> to vector<8xf32>
    %178 = vector.shape_cast %177 : vector<8xf32> to vector<8x1xf32>
    %cst_63 = arith.constant 1.280000e+02 : f32
    %179 = vector.broadcast %cst_63 : f32 to vector<8x1xf32>
    %180 = arith.divf %178, %179 : vector<8x1xf32>
    %181 = vector.broadcast %171 : vector<8x1xf32> to vector<8x128xf32>
    %182 = arith.subf %165, %181 : vector<8x128xf32>
    %cst_64 = arith.constant 9.99999996E-13 : f32
    %183 = vector.broadcast %cst_64 : f32 to vector<8x1xf32>
    %184 = arith.addf %180, %183 : vector<8x1xf32>
    %185 = math.rsqrt %184 : vector<8x1xf32>
    %186 = vector.broadcast %185 : vector<8x1xf32> to vector<8x128xf32>
    %187 = arith.mulf %182, %186 : vector<8x128xf32>
    %188 = vector.broadcast %166 : vector<1x128xf32> to vector<8x128xf32>
    %189 = arith.mulf %187, %188 : vector<8x128xf32>
    %190 = vector.broadcast %167 : vector<1x128xf32> to vector<8x128xf32>
    %191 = arith.addf %189, %190 : vector<8x128xf32>
    %192 = arith.truncf %191 : vector<8x128xf32> to vector<8x128xbf16>
    %c0_65 = arith.constant 0 : index
    %c0_66 = arith.constant 0 : index
    %c0_67 = arith.constant 0 : index
    %193 = vector.load %arg15[%c0_65, %c0_66, %c0_67] : memref<1x8x128xbf16, #tpu.memory_space<vmem>>, vector<1x8x128xbf16>
    %194 = vector.shape_cast %193 : vector<1x8x128xbf16> to vector<8x128xbf16>
    %195 = vector.shape_cast %192 : vector<8x128xbf16> to vector<1x8x128xbf16>
    tpu.vector_store %arg15[%c0_65, %c0_66, %c0_67], %195 {strides = array<i32>} : memref<1x8x128xbf16, #tpu.memory_space<vmem>>, vector<1x8x128xbf16>,
    return
  }
  func.func @transform_0(%arg0: i32) -> (i32, i32, i32) {
    %c0_i32 = arith.constant 0 : i32
    %c0_i32_0 = arith.constant 0 : i32
    %c0_i32_1 = arith.constant 0 : i32
    return %arg0, %c0_i32, %c0_i32_0 : i32, i32, i32
  }
  func.func @transform_1(%arg0: i32) -> (i32, i32, i32) {
    %c0_i32 = arith.constant 0 : i32
    %c0_i32_0 = arith.constant 0 : i32
    %c0_i32_1 = arith.constant 0 : i32
    return %arg0, %c0_i32, %c0_i32_0 : i32, i32, i32
  }
  func.func @transform_2(%arg0: i32) -> (i32, i32) {
    %c0_i32 = arith.constant 0 : i32
    %c0_i32_0 = arith.constant 0 : i32
    %c0_i32_1 = arith.constant 0 : i32
    return %c0_i32, %c0_i32_0 : i32, i32
  }
  func.func @transform_3(%arg0: i32) -> (i32, i32) {
    %c0_i32 = arith.constant 0 : i32
    %c0_i32_0 = arith.constant 0 : i32
    %c0_i32_1 = arith.constant 0 : i32
    return %c0_i32, %c0_i32_0 : i32, i32
  }
  func.func @transform_4(%arg0: i32) -> (i32, i32) {
    %c0_i32 = arith.constant 0 : i32
    %c0_i32_0 = arith.constant 0 : i32
    %c0_i32_1 = arith.constant 0 : i32
    return %c0_i32, %c0_i32_0 : i32, i32
  }
  func.func @transform_5(%arg0: i32) -> (i32, i32) {
    %c0_i32 = arith.constant 0 : i32
    %c0_i32_0 = arith.constant 0 : i32
    %c0_i32_1 = arith.constant 0 : i32
    return %c0_i32, %c0_i32_0 : i32, i32
  }
  func.func @transform_6(%arg0: i32) -> (i32, i32) {
    %c0_i32 = arith.constant 0 : i32
    %c0_i32_0 = arith.constant 0 : i32
    %c0_i32_1 = arith.constant 0 : i32
    return %c0_i32, %c0_i32_0 : i32, i32
  }
  func.func @transform_7(%arg0: i32) -> (i32, i32) {
    %c0_i32 = arith.constant 0 : i32
    %c0_i32_0 = arith.constant 0 : i32
    %c0_i32_1 = arith.constant 0 : i32
    return %c0_i32, %c0_i32_0 : i32, i32
  }
  func.func @transform_8(%arg0: i32) -> (i32, i32) {
    %c0_i32 = arith.constant 0 : i32
    %c0_i32_0 = arith.constant 0 : i32
    %c0_i32_1 = arith.constant 0 : i32
    return %c0_i32, %c0_i32_0 : i32, i32
  }
  func.func @transform_9(%arg0: i32) -> (i32, i32) {
    %c0_i32 = arith.constant 0 : i32
    %c0_i32_0 = arith.constant 0 : i32
    %c0_i32_1 = arith.constant 0 : i32
    return %c0_i32, %c0_i32_0 : i32, i32
  }
  func.func @transform_10(%arg0: i32) -> (i32, i32) {
    %c0_i32 = arith.constant 0 : i32
    %c0_i32_0 = arith.constant 0 : i32
    %c0_i32_1 = arith.constant 0 : i32
    return %c0_i32, %c0_i32_0 : i32, i32
  }
  func.func @transform_11(%arg0: i32) -> (i32, i32) {
    %c0_i32 = arith.constant 0 : i32
    %c0_i32_0 = arith.constant 0 : i32
    %c0_i32_1 = arith.constant 0 : i32
    return %c0_i32, %c0_i32_0 : i32, i32
  }
  func.func @transform_12(%arg0: i32) -> (i32, i32) {
    %c0_i32 = arith.constant 0 : i32
    %c0_i32_0 = arith.constant 0 : i32
    %c0_i32_1 = arith.constant 0 : i32
    return %c0_i32, %c0_i32_0 : i32, i32
  }
  func.func @transform_13(%arg0: i32) -> (i32, i32) {
    %c0_i32 = arith.constant 0 : i32
    %c0_i32_0 = arith.constant 0 : i32
    %c0_i32_1 = arith.constant 0 : i32
    return %c0_i32, %c0_i32_0 : i32, i32
  }
  func.func @transform_14(%arg0: i32) -> (i32, i32, i32) {
    %c0_i32 = arith.constant 0 : i32
    %c0_i32_0 = arith.constant 0 : i32
    %c0_i32_1 = arith.constant 0 : i32
    return %arg0, %c0_i32, %c0_i32_0 : i32, i32, i32
  }
}

</mosaic_0001>

<llo_original>
// kernel: bert_encoder_forward.3
$region0: #{bert_encoder_forward.3}
  #allocation0 [shape = 'u32[]', space=smem, size = 0x4, offset = 0x4, fixed_abs, tag = 'smem constant byte address 0x4 - core index']
  #allocation1 [shape = 'u32[72,128]{1,0:T(1,128)}', space=vmem, size = 0x9000, scoped, tag = 'internal scratch']
  %s0 = inlined_call_operand.vmem [shape: f32[16,128], index: 0, kind: input, shape index: {}]
  %s1 = inlined_call_operand.hbm [shape: f32[1,128], index: 1, kind: input, shape index: {}]
  %s2 = inlined_call_operand.hbm [shape: f32[1,128], index: 2, kind: input, shape index: {}]
  %s3 = inlined_call_operand.vmem [shape: bf16[16,128], index: 3, kind: output, shape index: {}]
  %s4 = sld [smem:[#allocation0]]
  $region30: #{bert_encoder_forward.3} parent=0
    _
  %s6 = ssub.s32 1, %s4
  %s7 = scalar_select 0, %s6, %s4
  $region1: #{bert_encoder_forward.3} parent=0
    #allocation2 [shape = 'u8[512]{0}', space=vmem, size = 0x400, scoped, tag = 'input window, operand 1, single buffered']
    #allocation3 [shape = 's32[1]{0}', space=sflag, size = 0x4, scoped, tag = 'scoped memory for bert_encoder_forward.3']
    #allocation4 [shape = 'u8[512]{0}', space=vmem, size = 0x400, scoped, tag = 'input window, operand 2, single buffered']
    #allocation5 [shape = 's32[1]{0}', space=sflag, size = 0x4, scoped, tag = 'scoped memory for bert_encoder_forward.3']
    %8 = vsyncpa [#allocation3], 0
    %9 = vsyncpa [#allocation5], 0
    // Predicated region
    $region2: #{bert_encoder_forward.3} parent=1 // pred_check
      _
    $region3: #{bert_encoder_forward.3} parent=1 // pred_check_branch
      %11 = sbr.rel (0) target = $region5
    $region4: #{bert_encoder_forward.3} parent=1 // pred_region
      _
    $region5: #{bert_encoder_forward.3} parent=1 // pred_fallthru
      _
    // Predicated region
    $region6: #{bert_encoder_forward.3} parent=1 // pred_check
      _
    $region7: #{bert_encoder_forward.3} parent=1 // pred_check_branch
      %13 = sbr.rel (0) target = $region9
    $region8: #{bert_encoder_forward.3} parent=1 // pred_region
      %15 = vsyncadd [#allocation3], 0
      %s17 = sshll.u32 %s1, 4
      %s18 = int_to_ptr.hbm [resolvable:$true] %s17
      %s19 = sshll.u32 [#allocation2], 4
      %s20 = int_to_ptr.vmem [resolvable:$true] %s19
      %22 = dma.hbm_to_vmem [thread:$0]  %s18, 16, %s20, [#allocation3]
    $region9: #{bert_encoder_forward.3} parent=1 // pred_fallthru
      _
    // Predicated region
    $region10: #{bert_encoder_forward.3} parent=1 // pred_check
      _
    $region11: #{bert_encoder_forward.3} parent=1 // pred_check_branch
      %24 = sbr.rel (0) target = $region13
    $region12: #{bert_encoder_forward.3} parent=1 // pred_region
      %26 = vsyncadd [#allocation5], 0
      %s28 = sshll.u32 %s2, 4
      %s29 = int_to_ptr.hbm [resolvable:$true] %s28
      %s30 = sshll.u32 [#allocation4], 4
      %s31 = int_to_ptr.vmem [resolvable:$true] %s30
      %33 = dma.hbm_to_vmem [thread:$0]  %s29, 16, %s31, [#allocation5]
    $region13: #{bert_encoder_forward.3} parent=1 // pred_fallthru
      _
    // Predicated region
    $region14: #{bert_encoder_forward.3} parent=1 // pred_check
      _
    $region15: #{bert_encoder_forward.3} parent=1 // pred_check_branch
      %35 = sbr.rel (0) target = $region17
    $region16: #{bert_encoder_forward.3} parent=1 // pred_region
      %37 = dma.done [#allocation3], 16
    $region17: #{bert_encoder_forward.3} parent=1 // pred_fallthru
      _
    // Predicated region
    $region18: #{bert_encoder_forward.3} parent=1 // pred_check
      _
    $region19: #{bert_encoder_forward.3} parent=1 // pred_check_branch
      %39 = sbr.rel (0) target = $region21
    $region20: #{bert_encoder_forward.3} parent=1 // pred_region
      %41 = dma.done [#allocation5], 16
    $region21: #{bert_encoder_forward.3} parent=1 // pred_fallthru
      _
    %v42 = vld [vmem:[%s0] sm:$0xff]
    %v43 = vld [vmem:[%s0 + $0x8] sm:$0xff]
    %v44 = vld [vmem:[#allocation2] sm:$0x1]
    %v45 = vld [vmem:[#allocation4] sm:$0x1]
    %46 = vadd.xlane.f32.xlu0 %v42
    %v47 = vpop.xlane.xlu0 %46
    %48 = vadd.xlane.f32.xlu0 %v43
    %v49 = vpop.xlane.xlu0 %48
    %v50 = vrcp.pop 128.0
    %v51 = vmul.f32 128.0, %v50
    %v52 = vsub.f32 1.0, %v51
    %v53 = vmul.f32 %v50, %v52
    %v54 = vadd.f32 %v50, %v53
    %vm55 = vweird.f32 %v50
    %v56 = vsel %vm55, %v50, %v54
    %v57 = vmul.f32 %v47, %v56
    %v58 = vmul.f32 %v49, %v56
    %v59 = vsub.f32 %v42, %v57
    %v60 = vsub.f32 %v43, %v58
    %v61 = vmul.f32 %v59, %v59
    %v62 = vmul.f32 %v60, %v60
    %63 = vadd.xlane.f32.xlu0 %v61
    %v64 = vpop.xlane.xlu0 %63
    %65 = vadd.xlane.f32.xlu0 %v62
    %v66 = vpop.xlane.xlu0 %65
    %v67 = vmul.f32 %v64, %v56
    %v68 = vmul.f32 %v66, %v56
    %v69 = vadd.f32 %v67, 1e-12
    %v70 = vadd.f32 %v68, 1e-12
    %v71 = vrsqrt.pop %v69
    %v72 = vmul.f32 %v71, %v69
    %v73 = vmul.f32 %v72, %v71
    %v74 = vmul.f32 0.5, %v73
    %v75 = vsub.f32 1.5, %v74
    %v76 = vmul.f32 %v71, %v75
    %vm77 = vweird.f32 %v69
    %vm78 = vweird.f32 %v71
    %vm79 = vmor %vm77, %vm78
    %v80 = vsel %vm79, %v71, %v76
    %v81 = vrsqrt.pop %v70
    %v82 = vmul.f32 %v81, %v70
    %v83 = vmul.f32 %v82, %v81
    %v84 = vmul.f32 0.5, %v83
    %v85 = vsub.f32 1.5, %v84
    %v86 = vmul.f32 %v81, %v85
    %vm87 = vweird.f32 %v70
    %vm88 = vweird.f32 %v81
    %vm89 = vmor %vm87, %vm88
    %v90 = vsel %vm89, %v81, %v86
    %v91 = vmul.f32 %v59, %v80
    %v92 = vmul.f32 %v60, %v90
    %v94 = vperm.slane %v44, 0
    %v96 = vmul.f32 %v91, %v94
    %v97 = vmul.f32 %v92, %v94
    %v99 = vperm.slane %v45, 0
    %v101 = vadd.f32 %v96, %v99
    %v102 = vadd.f32 %v97, %v99
    %v103 = vpack.c.bf16 %v101, %v101
    %v104 = vpack.c.bf16 %v102, %v102
    %105 = vst [vmem:[%s3] sm:$0xf] %v103
    %106 = vst [vmem:[%s3 + $0x4] sm:$0xf] %v104
    // Predicated region
    $region22: #{bert_encoder_forward.3} parent=1 // pred_check
      _
    $region23: #{bert_encoder_forward.3} parent=1 // pred_check_branch
      %108 = sbr.rel (0) target = $region25
    $region24: #{bert_encoder_forward.3} parent=1 // pred_region
      _
    $region25: #{bert_encoder_forward.3} parent=1 // pred_fallthru
      _
    // Predicated region
    $region26: #{bert_encoder_forward.3} parent=1 // pred_check
      _
    $region27: #{bert_encoder_forward.3} parent=1 // pred_check_branch
      %110 = sbr.rel (0) target = $region29
    $region28: #{bert_encoder_forward.3} parent=1 // pred_region
      _
    $region29: #{bert_encoder_forward.3} parent=1 // pred_fallthru
      _
    %111 = vsyncpa [#allocation3], 1
    %112 = vsyncpa [#allocation5], 1

// kernel: bert_encoder_forward.5
$region0: #{bert_encoder_forward.5}
  #allocation0 [shape = 'u32[]', space=smem, size = 0x4, offset = 0x4, fixed_abs, tag = 'smem constant byte address 0x4 - core index']
  #allocation1 [shape = 'u32[72,128]{1,0:T(1,128)}', space=vmem, size = 0x9000, scoped, tag = 'internal scratch']
  %s0 = inlined_call_operand.vmem [shape: bf16[2,8,128], index: 0, kind: input, shape index: {}]
  %s1 = inlined_call_operand.vmem [shape: f32[2,1,8], index: 1, kind: input, shape index: {}]
  %s2 = inlined_call_operand.vmem [shape: bf16[128,384], index: 2, kind: input, shape index: {}]
  %s3 = inlined_call_operand.vmem [shape: f32[1,384], index: 3, kind: input, shape index: {}]
  %s4 = inlined_call_operand.vmem [shape: bf16[128,128], index: 4, kind: input, shape index: {}]
  %s5 = inlined_call_operand.vmem [shape: f32[1,128], index: 5, kind: input, shape index: {}]
  %s6 = inlined_call_operand.vmem [shape: f32[1,128], index: 6, kind: input, shape index: {}]
  %s7 = inlined_call_operand.vmem [shape: f32[1,128], index: 7, kind: input, shape index: {}]
  %s8 = inlined_call_operand.vmem [shape: bf16[128,256], index: 8, kind: input, shape index: {}]
  %s9 = inlined_call_operand.vmem [shape: f32[1,256], index: 9, kind: input, shape index: {}]
  %s10 = inlined_call_operand.vmem [shape: bf16[256,128], index: 10, kind: input, shape index: {}]
  %s11 = inlined_call_operand.vmem [shape: f32[1,128], index: 11, kind: input, shape index: {}]
  %s12 = inlined_call_operand.vmem [shape: f32[1,128], index: 12, kind: input, shape index: {}]
  %s13 = inlined_call_operand.vmem [shape: f32[1,128], index: 13, kind: input, shape index: {}]
  %s14 = inlined_call_operand.vmem [shape: bf16[2,8,128], index: 14, kind: output, shape index: {}]
  %s15 = sld [smem:[#allocation0]]
  $region89: #{bert_encoder_forward.5} parent=0
    _
  %s17 = ssub.s32 1, %s15
  %s18 = scalar_select 0, %s17, %s15
  loop: start=0, step=1, limit=4
  $region2: #{bert_encoder_forward.5} parent=0 // loop_pre_header
    _
  $region3: #{bert_encoder_forward.5} parent=0 // loop_header
    %s20 = sphi 0, %s24
    %p21 = scmp.ge.s32.totalorder %s20, 4
    %s30 = sphi 0, %s32
    %s33 = sphi 0, %s30
    %s34 = sphi 0, %s33
    %s50 = sphi 0, %s34
    %s56 = sphi 0, %s58
    %s59 = sphi 0, %s56
    %s60 = sphi 0, %s59
    %s76 = sphi 0, %s60
    %s80 = sphi 0, %s80
    %s82 = sphi 0, %s80
    %s83 = sphi 0, %s82
    %s97 = sphi 0, %s83
    %s101 = sphi 0, %s101
    %s103 = sphi 0, %s101
    %s104 = sphi 0, %s103
    %s118 = sphi 0, %s104
    %s122 = sphi 0, %s122
    %s124 = sphi 0, %s122
    %s125 = sphi 0, %s124
    %s139 = sphi 0, %s125
    %s143 = sphi 0, %s143
    %s145 = sphi 0, %s143
    %s146 = sphi 0, %s145
    %s160 = sphi 0, %s146
    %s164 = sphi 0, %s164
    %s166 = sphi 0, %s164
    %s167 = sphi 0, %s166
    %s181 = sphi 0, %s167
    %s185 = sphi 0, %s185
    %s187 = sphi 0, %s185
    %s188 = sphi 0, %s187
    %s202 = sphi 0, %s188
    %s206 = sphi 0, %s206
    %s208 = sphi 0, %s206
    %s209 = sphi 0, %s208
    %s223 = sphi 0, %s209
    %s227 = sphi 0, %s227
    %s229 = sphi 0, %s227
    %s230 = sphi 0, %s229
    %s244 = sphi 0, %s230
    %s248 = sphi 0, %s248
    %s250 = sphi 0, %s248
    %s251 = sphi 0, %s250
    %s265 = sphi 0, %s251
    %s269 = sphi 0, %s269
    %s271 = sphi 0, %s269
    %s272 = sphi 0, %s271
    %s286 = sphi 0, %s272
    %s290 = sphi 0, %s290
    %s292 = sphi 0, %s290
    %s293 = sphi 0, %s292
    %s307 = sphi 0, %s293
    %s311 = sphi 0, %s311
    %s313 = sphi 0, %s311
    %s314 = sphi 0, %s313
    %s328 = sphi 0, %s314
    %s334 = sphi 0, %s336
    %s337 = sphi 0, %s334
    %s338 = sphi 0, %s337
    %s354 = sphi 0, %s338
  $region4: #{bert_encoder_forward.5} parent=0 // loop_header_branch
    %23 = sbr.rel (%p21) target = $region8
  $region5: #{bert_encoder_forward.5} parent=0 // loop_body
    %s25 = ssub.s32 %s20, 1
    %s26 = ssub.s32 %s20, 2
    %s27 = sadd.s32 %s20, 1
    %s28 = ssub.s32 %s20, %s27
    %p29 = scmp.eq.s32.totalorder %s28, 0
    %s31 = sadd.s32 %s30, 1
    %s32 = scalar_select %p29, %s30, %s31
    %p35 = pneg %p29
    %p36 = scmp.eq.s32.totalorder %s20, 1
    %p37 = por %p35, %p36
    %p38 = scmp.ne.s32.totalorder %s30, %s33
    %p39 = scmp.eq.s32.totalorder %s20, 0
    %p40 = por %p38, %p39
    %p41 = scmp.ne.s32.totalorder %s30, %s33
    %p42 = scmp.eq.s32.totalorder %s25, 1
    %p43 = por %p41, %p42
    %p44 = scmp.ne.s32.totalorder %s33, %s34
    %p45 = scmp.eq.s32.totalorder %s25, 0
    %p46 = por %p44, %p45
    %p47 = scmp.ne.s32.totalorder %s33, %s34
    %p48 = scmp.eq.s32.totalorder %s26, 1
    %p49 = por %p47, %p48
    %p51 = scmp.ne.s32.totalorder %s34, %s50
    %p52 = scmp.eq.s32.totalorder %s26, 0
    %p53 = por %p51, %p52
    %s54 = ssub.s32 %s20, %s27
    %p55 = scmp.eq.s32.totalorder %s54, 0
    %s57 = sadd.s32 %s56, 1
    %s58 = scalar_select %p55, %s56, %s57
    %p61 = pneg %p55
    %p62 = scmp.eq.s32.totalorder %s20, 1
    %p63 = por %p61, %p62
    %p64 = scmp.ne.s32.totalorder %s56, %s59
    %p65 = scmp.eq.s32.totalorder %s20, 0
    %p66 = por %p64, %p65
    %p67 = scmp.ne.s32.totalorder %s56, %s59
    %p68 = scmp.eq.s32.totalorder %s25, 1
    %p69 = por %p67, %p68
    %p70 = scmp.ne.s32.totalorder %s59, %s60
    %p71 = scmp.eq.s32.totalorder %s25, 0
    %p72 = por %p70, %p71
    %p73 = scmp.ne.s32.totalorder %s59, %s60
    %p74 = scmp.eq.s32.totalorder %s26, 1
    %p75 = por %p73, %p74
    %p77 = scmp.ne.s32.totalorder %s60, %s76
    %p78 = scmp.eq.s32.totalorder %s26, 0
    %p79 = por %p77, %p78
    %s81 = sadd.s32 %s80, 1
    %p84 = scmp.eq.s32.totalorder %s20, 1
    %p85 = scmp.ne.s32.totalorder %s80, %s82
    %p86 = scmp.eq.s32.totalorder %s20, 0
    %p87 = por %p85, %p86
    %p88 = scmp.ne.s32.totalorder %s80, %s82
    %p89 = scmp.eq.s32.totalorder %s25, 1
    %p90 = por %p88, %p89
    %p91 = scmp.ne.s32.totalorder %s82, %s83
    %p92 = scmp.eq.s32.totalorder %s25, 0
    %p93 = por %p91, %p92
    %p94 = scmp.ne.s32.totalorder %s82, %s83
    %p95 = scmp.eq.s32.totalorder %s26, 1
    %p96 = por %p94, %p95
    %p98 = scmp.ne.s32.totalorder %s83, %s97
    %p99 = scmp.eq.s32.totalorder %s26, 0
    %p100 = por %p98, %p99
    %s102 = sadd.s32 %s101, 1
    %p105 = scmp.eq.s32.totalorder %s20, 1
    %p106 = scmp.ne.s32.totalorder %s101, %s103
    %p107 = scmp.eq.s32.totalorder %s20, 0
    %p108 = por %p106, %p107
    %p109 = scmp.ne.s32.totalorder %s101, %s103
    %p110 = scmp.eq.s32.totalorder %s25, 1
    %p111 = por %p109, %p110
    %p112 = scmp.ne.s32.totalorder %s103, %s104
    %p113 = scmp.eq.s32.totalorder %s25, 0
    %p114 = por %p112, %p113
    %p115 = scmp.ne.s32.totalorder %s103, %s104
    %p116 = scmp.eq.s32.totalorder %s26, 1
    %p117 = por %p115, %p116
    %p119 = scmp.ne.s32.totalorder %s104, %s118
    %p120 = scmp.eq.s32.totalorder %s26, 0
    %p121 = por %p119, %p120
    %s123 = sadd.s32 %s122, 1
    %p126 = scmp.eq.s32.totalorder %s20, 1
    %p127 = scmp.ne.s32.totalorder %s122, %s124
    %p128 = scmp.eq.s32.totalorder %s20, 0
    %p129 = por %p127, %p128
    %p130 = scmp.ne.s32.totalorder %s122, %s124
    %p131 = scmp.eq.s32.totalorder %s25, 1
    %p132 = por %p130, %p131
    %p133 = scmp.ne.s32.totalorder %s124, %s125
    %p134 = scmp.eq.s32.totalorder %s25, 0
    %p135 = por %p133, %p134
    %p136 = scmp.ne.s32.totalorder %s124, %s125
    %p137 = scmp.eq.s32.totalorder %s26, 1
    %p138 = por %p136, %p137
    %p140 = scmp.ne.s32.totalorder %s125, %s139
    %p141 = scmp.eq.s32.totalorder %s26, 0
    %p142 = por %p140, %p141
    %s144 = sadd.s32 %s143, 1
    %p147 = scmp.eq.s32.totalorder %s20, 1
    %p148 = scmp.ne.s32.totalorder %s143, %s145
    %p149 = scmp.eq.s32.totalorder %s20, 0
    %p150 = por %p148, %p149
    %p151 = scmp.ne.s32.totalorder %s143, %s145
    %p152 = scmp.eq.s32.totalorder %s25, 1
    %p153 = por %p151, %p152
    %p154 = scmp.ne.s32.totalorder %s145, %s146
    %p155 = scmp.eq.s32.totalorder %s25, 0
    %p156 = por %p154, %p155
    %p157 = scmp.ne.s32.totalorder %s145, %s146
    %p158 = scmp.eq.s32.totalorder %s26, 1
    %p159 = por %p157, %p158
    %p161 = scmp.ne.s32.totalorder %s146, %s160
    %p162 = scmp.eq.s32.totalorder %s26, 0
    %p163 = por %p161, %p162
    %s165 = sadd.s32 %s164, 1
    %p168 = scmp.eq.s32.totalorder %s20, 1
    %p169 = scmp.ne.s32.totalorder %s164, %s166
    %p170 = scmp.eq.s32.totalorder %s20, 0
    %p171 = por %p169, %p170
    %p172 = scmp.ne.s32.totalorder %s164, %s166
    %p173 = scmp.eq.s32.totalorder %s25, 1
    %p174 = por %p172, %p173
    %p175 = scmp.ne.s32.totalorder %s166, %s167
    %p176 = scmp.eq.s32.totalorder %s25, 0
    %p177 = por %p175, %p176
    %p178 = scmp.ne.s32.totalorder %s166, %s167
    %p179 = scmp.eq.s32.totalorder %s26, 1
    %p180 = por %p178, %p179
    %p182 = scmp.ne.s32.totalorder %s167, %s181
    %p183 = scmp.eq.s32.totalorder %s26, 0
    %p184 = por %p182, %p183
    %s186 = sadd.s32 %s185, 1
    %p189 = scmp.eq.s32.totalorder %s20, 1
    %p190 = scmp.ne.s32.totalorder %s185, %s187
    %p191 = scmp.eq.s32.totalorder %s20, 0
    %p192 = por %p190, %p191
    %p193 = scmp.ne.s32.totalorder %s185, %s187
    %p194 = scmp.eq.s32.totalorder %s25, 1
    %p195 = por %p193, %p194
    %p196 = scmp.ne.s32.totalorder %s187, %s188
    %p197 = scmp.eq.s32.totalorder %s25, 0
    %p198 = por %p196, %p197
    %p199 = scmp.ne.s32.totalorder %s187, %s188
    %p200 = scmp.eq.s32.totalorder %s26, 1
    %p201 = por %p199, %p200
    %p203 = scmp.ne.s32.totalorder %s188, %s202
    %p204 = scmp.eq.s32.totalorder %s26, 0
    %p205 = por %p203, %p204
    %s207 = sadd.s32 %s206, 1
    %p210 = scmp.eq.s32.totalorder %s20, 1
    %p211 = scmp.ne.s32.totalorder %s206, %s208
    %p212 = scmp.eq.s32.totalorder %s20, 0
    %p213 = por %p211, %p212
    %p214 = scmp.ne.s32.totalorder %s206, %s208
    %p215 = scmp.eq.s32.totalorder %s25, 1
    %p216 = por %p214, %p215
    %p217 = scmp.ne.s32.totalorder %s208, %s209
    %p218 = scmp.eq.s32.totalorder %s25, 0
    %p219 = por %p217, %p218
    %p220 = scmp.ne.s32.totalorder %s208, %s209
    %p221 = scmp.eq.s32.totalorder %s26, 1
    %p222 = por %p220, %p221
    %p224 = scmp.ne.s32.totalorder %s209, %s223
    %p225 = scmp.eq.s32.totalorder %s26, 0
    %p226 = por %p224, %p225
    %s228 = sadd.s32 %s227, 1
    %p231 = scmp.eq.s32.totalorder %s20, 1
    %p232 = scmp.ne.s32.totalorder %s227, %s229
    %p233 = scmp.eq.s32.totalorder %s20, 0
    %p234 = por %p232, %p233
    %p235 = scmp.ne.s32.totalorder %s227, %s229
    %p236 = scmp.eq.s32.totalorder %s25, 1
    %p237 = por %p235, %p236
    %p238 = scmp.ne.s32.totalorder %s229, %s230
    %p239 = scmp.eq.s32.totalorder %s25, 0
    %p240 = por %p238, %p239
    %p241 = scmp.ne.s32.totalorder %s229, %s230
    %p242 = scmp.eq.s32.totalorder %s26, 1
    %p243 = por %p241, %p242
    %p245 = scmp.ne.s32.totalorder %s230, %s244
    %p246 = scmp.eq.s32.totalorder %s26, 0
    %p247 = por %p245, %p246
    %s249 = sadd.s32 %s248, 1
    %p252 = scmp.eq.s32.totalorder %s20, 1
    %p253 = scmp.ne.s32.totalorder %s248, %s250
    %p254 = scmp.eq.s32.totalorder %s20, 0
    %p255 = por %p253, %p254
    %p256 = scmp.ne.s32.totalorder %s248, %s250
    %p257 = scmp.eq.s32.totalorder %s25, 1
    %p258 = por %p256, %p257
    %p259 = scmp.ne.s32.totalorder %s250, %s251
    %p260 = scmp.eq.s32.totalorder %s25, 0
    %p261 = por %p259, %p260
    %p262 = scmp.ne.s32.totalorder %s250, %s251
    %p263 = scmp.eq.s32.totalorder %s26, 1
    %p264 = por %p262, %p263
    %p266 = scmp.ne.s32.totalorder %s251, %s265
    %p267 = scmp.eq.s32.totalorder %s26, 0
    %p268 = por %p266, %p267
    %s270 = sadd.s32 %s269, 1
    %p273 = scmp.eq.s32.totalorder %s20, 1
    %p274 = scmp.ne.s32.totalorder %s269, %s271
    %p275 = scmp.eq.s32.totalorder %s20, 0
    %p276 = por %p274, %p275
    %p277 = scmp.ne.s32.totalorder %s269, %s271
    %p278 = scmp.eq.s32.totalorder %s25, 1
    %p279 = por %p277, %p278
    %p280 = scmp.ne.s32.totalorder %s271, %s272
    %p281 = scmp.eq.s32.totalorder %s25, 0
    %p282 = por %p280, %p281
    %p283 = scmp.ne.s32.totalorder %s271, %s272
    %p284 = scmp.eq.s32.totalorder %s26, 1
    %p285 = por %p283, %p284
    %p287 = scmp.ne.s32.totalorder %s272, %s286
    %p288 = scmp.eq.s32.totalorder %s26, 0
    %p289 = por %p287, %p288
    %s291 = sadd.s32 %s290, 1
    %p294 = scmp.eq.s32.totalorder %s20, 1
    %p295 = scmp.ne.s32.totalorder %s290, %s292
    %p296 = scmp.eq.s32.totalorder %s20, 0
    %p297 = por %p295, %p296
    %p298 = scmp.ne.s32.totalorder %s290, %s292
    %p299 = scmp.eq.s32.totalorder %s25, 1
    %p300 = por %p298, %p299
    %p301 = scmp.ne.s32.totalorder %s292, %s293
    %p302 = scmp.eq.s32.totalorder %s25, 0
    %p303 = por %p301, %p302
    %p304 = scmp.ne.s32.totalorder %s292, %s293
    %p305 = scmp.eq.s32.totalorder %s26, 1
    %p306 = por %p304, %p305
    %p308 = scmp.ne.s32.totalorder %s293, %s307
    %p309 = scmp.eq.s32.totalorder %s26, 0
    %p310 = por %p308, %p309
    %s312 = sadd.s32 %s311, 1
    %p315 = scmp.eq.s32.totalorder %s20, 1
    %p316 = scmp.ne.s32.totalorder %s311, %s313
    %p317 = scmp.eq.s32.totalorder %s20, 0
    %p318 = por %p316, %p317
    %p319 = scmp.ne.s32.totalorder %s311, %s313
    %p320 = scmp.eq.s32.totalorder %s25, 1
    %p321 = por %p319, %p320
    %p322 = scmp.ne.s32.totalorder %s313, %s314
    %p323 = scmp.eq.s32.totalorder %s25, 0
    %p324 = por %p322, %p323
    %p325 = scmp.ne.s32.totalorder %s313, %s314
    %p326 = scmp.eq.s32.totalorder %s26, 1
    %p327 = por %p325, %p326
    %p329 = scmp.ne.s32.totalorder %s314, %s328
    %p330 = scmp.eq.s32.totalorder %s26, 0
    %p331 = por %p329, %p330
    %s332 = ssub.s32 %s20, %s27
    %p333 = scmp.eq.s32.totalorder %s332, 0
    %s335 = sadd.s32 %s334, 1
    %s336 = scalar_select %p333, %s334, %s335
    %p339 = pneg %p333
    %p340 = scmp.eq.s32.totalorder %s20, 1
    %p341 = por %p339, %p340
    %p342 = scmp.ne.s32.totalorder %s334, %s337
    %p343 = scmp.eq.s32.totalorder %s20, 0
    %p344 = por %p342, %p343
    %p345 = scmp.ne.s32.totalorder %s334, %s337
    %p346 = scmp.eq.s32.totalorder %s25, 1
    %p347 = por %p345, %p346
    %p348 = scmp.ne.s32.totalorder %s337, %s338
    %p349 = scmp.eq.s32.totalorder %s25, 0
    %p350 = por %p348, %p349
    %p351 = scmp.ne.s32.totalorder %s337, %s338
    %p352 = scmp.eq.s32.totalorder %s26, 1
    %p353 = por %p351, %p352
    %p355 = scmp.ne.s32.totalorder %s338, %s354
    %p356 = scmp.eq.s32.totalorder %s26, 0
    %p357 = por %p355, %p356
    %p358 = scmp.le.s32.totalorder 1, %s20
    %p359 = scmp.lt.s32.totalorder %s20, 3
    %p360 = pnand %p358, %p359
    %p361 = pneg %p360
    // Predicated region
    $region9: #{bert_encoder_forward.5} parent=5 // pred_check
      _
    $region10: #{bert_encoder_forward.5} parent=5 // pred_check_branch
      %363 = sbr.rel (%p360) target = $region12
    $region11: #{bert_encoder_forward.5} parent=5 // pred_region
      %s364 = ssub.s32 %s20, 1
      // Predicated region
      $region13: #{bert_encoder_forward.5} parent=11 // pred_check
        %p365 = pneg %p93
      $region14: #{bert_encoder_forward.5} parent=11 // pred_check_branch
        %367 = sbr.rel (%p365) target = $region16
      $region15: #{bert_encoder_forward.5} parent=11 // pred_region
        _
      $region16: #{bert_encoder_forward.5} parent=11 // pred_fallthru
        _
      // Predicated region
      $region17: #{bert_encoder_forward.5} parent=11 // pred_check
        %p368 = pneg %p114
      $region18: #{bert_encoder_forward.5} parent=11 // pred_check_branch
        %370 = sbr.rel (%p368) target = $region20
      $region19: #{bert_encoder_forward.5} parent=11 // pred_region
        _
      $region20: #{bert_encoder_forward.5} parent=11 // pred_fallthru
        _
      // Predicated region
      $region21: #{bert_encoder_forward.5} parent=11 // pred_check
        %p371 = pneg %p135
      $region22: #{bert_encoder_forward.5} parent=11 // pred_check_branch
        %373 = sbr.rel (%p371) target = $region24
      $region23: #{bert_encoder_forward.5} parent=11 // pred_region
        _
      $region24: #{bert_encoder_forward.5} parent=11 // pred_fallthru
        _
      // Predicated region
      $region25: #{bert_encoder_forward.5} parent=11 // pred_check
        %p374 = pneg %p156
      $region26: #{bert_encoder_forward.5} parent=11 // pred_check_branch
        %376 = sbr.rel (%p374) target = $region28
      $region27: #{bert_encoder_forward.5} parent=11 // pred_region
        _
      $region28: #{bert_encoder_forward.5} parent=11 // pred_fallthru
        _
      // Predicated region
      $region29: #{bert_encoder_forward.5} parent=11 // pred_check
        %p377 = pneg %p177
      $region30: #{bert_encoder_forward.5} parent=11 // pred_check_branch
        %379 = sbr.rel (%p377) target = $region32
      $region31: #{bert_encoder_forward.5} parent=11 // pred_region
        _
      $region32: #{bert_encoder_forward.5} parent=11 // pred_fallthru
        _
      // Predicated region
      $region33: #{bert_encoder_forward.5} parent=11 // pred_check
        %p380 = pneg %p198
      $region34: #{bert_encoder_forward.5} parent=11 // pred_check_branch
        %382 = sbr.rel (%p380) target = $region36
      $region35: #{bert_encoder_forward.5} parent=11 // pred_region
        _
      $region36: #{bert_encoder_forward.5} parent=11 // pred_fallthru
        _
      // Predicated region
      $region37: #{bert_encoder_forward.5} parent=11 // pred_check
        %p383 = pneg %p219
      $region38: #{bert_encoder_forward.5} parent=11 // pred_check_branch
        %385 = sbr.rel (%p383) target = $region40
      $region39: #{bert_encoder_forward.5} parent=11 // pred_region
        _
      $region40: #{bert_encoder_forward.5} parent=11 // pred_fallthru
        _
      // Predicated region
      $region41: #{bert_encoder_forward.5} parent=11 // pred_check
        %p386 = pneg %p240
      $region42: #{bert_encoder_forward.5} parent=11 // pred_check_branch
        %388 = sbr.rel (%p386) target = $region44
      $region43: #{bert_encoder_forward.5} parent=11 // pred_region
        _
      $region44: #{bert_encoder_forward.5} parent=11 // pred_fallthru
        _
      // Predicated region
      $region45: #{bert_encoder_forward.5} parent=11 // pred_check
        %p389 = pneg %p261
      $region46: #{bert_encoder_forward.5} parent=11 // pred_check_branch
        %391 = sbr.rel (%p389) target = $region48
      $region47: #{bert_encoder_forward.5} parent=11 // pred_region
        _
      $region48: #{bert_encoder_forward.5} parent=11 // pred_fallthru
        _
      // Predicated region
      $region49: #{bert_encoder_forward.5} parent=11 // pred_check
        %p392 = pneg %p282
      $region50: #{bert_encoder_forward.5} parent=11 // pred_check_branch
        %394 = sbr.rel (%p392) target = $region52
      $region51: #{bert_encoder_forward.5} parent=11 // pred_region
        _
      $region52: #{bert_encoder_forward.5} parent=11 // pred_fallthru
        _
      // Predicated region
      $region53: #{bert_encoder_forward.5} parent=11 // pred_check
        %p395 = pneg %p303
      $region54: #{bert_encoder_forward.5} parent=11 // pred_check_branch
        %397 = sbr.rel (%p395) target = $region56
      $region55: #{bert_encoder_forward.5} parent=11 // pred_region
        _
      $region56: #{bert_encoder_forward.5} parent=11 // pred_fallthru
        _
      // Predicated region
      $region57: #{bert_encoder_forward.5} parent=11 // pred_check
        %p398 = pneg %p324
      $region58: #{bert_encoder_forward.5} parent=11 // pred_check_branch
        %400 = sbr.rel (%p398) target = $region60
      $region59: #{bert_encoder_forward.5} parent=11 // pred_region
        _
      $region60: #{bert_encoder_forward.5} parent=11 // pred_fallthru
        _
    $region12: #{bert_encoder_forward.5} parent=5 // pred_fallthru
      _
    %p401 = scmp.lt.s32.totalorder %s20, 2
    // Predicated region
    $region61: #{bert_encoder_forward.5} parent=5 // pred_check
      %p402 = pneg %p401
    $region62: #{bert_encoder_forward.5} parent=5 // pred_check_branch
      %404 = sbr.rel (%p402) target = $region64
    $region63: #{bert_encoder_forward.5} parent=5 // pred_region
      // Predicated region
      $region65: #{bert_encoder_forward.5} parent=63 // pred_check
        %p405 = pneg %p40
      $region66: #{bert_encoder_forward.5} parent=63 // pred_check_branch
        %407 = sbr.rel (%p405) target = $region68
      $region67: #{bert_encoder_forward.5} parent=63 // pred_region
        %p408 = scmp.lt.s32.totalorder %s20, 1
        %s409 = scalar_select %p408, %s20, 1
        %s410 = smul.addr %s409, 4
        %s411 = scalar_lea.vmem %s0, %s410
      $region68: #{bert_encoder_forward.5} parent=63 // pred_fallthru
        _
      // Predicated region
      $region69: #{bert_encoder_forward.5} parent=63 // pred_check
        %p412 = pneg %p66
      $region70: #{bert_encoder_forward.5} parent=63 // pred_check_branch
        %414 = sbr.rel (%p412) target = $region72
      $region71: #{bert_encoder_forward.5} parent=63 // pred_region
        %p415 = scmp.lt.s32.totalorder %s20, 1
        %s416 = scalar_select %p415, %s20, 1
        %s417 = scalar_lea.vmem %s1, %s416
      $region72: #{bert_encoder_forward.5} parent=63 // pred_fallthru
        _
    $region64: #{bert_encoder_forward.5} parent=5 // pred_fallthru
      _
    %p418 = scmp.le.s32.totalorder 1, %s20
    %p419 = scmp.lt.s32.totalorder %s20, 3
    %p420 = pnand %p418, %p419
    %p421 = pneg %p420
    // Predicated region
    $region73: #{bert_encoder_forward.5} parent=5 // pred_check
      _
    $region74: #{bert_encoder_forward.5} parent=5 // pred_check_branch
      %423 = sbr.rel (%p420) target = $region76
    $region75: #{bert_encoder_forward.5} parent=5 // pred_region
      %s424 = ssub.s32 %s20, 1
      %p425 = scmp.lt.s32.totalorder %s25, 1
      %s426 = scalar_select %p425, %s25, 1
      %s427 = smul.addr %s426, 4
      %s428 = scalar_lea.vmem %s0, %s427
      %p429 = pneg %p46
      %p430 = pneg %p43
      %p431 = scmp.lt.s32.totalorder %s25, 1
      %s432 = scalar_select %p431, %s25, 1
      %s433 = scalar_lea.vmem %s1, %s432
      %p434 = pneg %p72
      %p435 = pneg %p69
      %p436 = pneg %p93
      %p437 = pneg %p90
      %p438 = pneg %p114
      %p439 = pneg %p111
      %p440 = pneg %p135
      %p441 = pneg %p132
      %p442 = pneg %p156
      %p443 = pneg %p153
      %p444 = pneg %p177
      %p445 = pneg %p174
      %p446 = pneg %p198
      %p447 = pneg %p195
      %p448 = pneg %p219
      %p449 = pneg %p216
      %p450 = pneg %p240
      %p451 = pneg %p237
      %p452 = pneg %p261
      %p453 = pneg %p258
      %p454 = pneg %p282
      %p455 = pneg %p279
      %p456 = pneg %p303
      %p457 = pneg %p300
      %p458 = pneg %p324
      %p459 = pneg %p321
      %p460 = pneg %p350
      %p461 = pneg %p347
      %p462 = scmp.lt.s32.totalorder %s25, 1
      %s463 = scalar_select %p462, %s25, 1
      %s464 = smul.addr %s463, 4
      %s465 = scalar_lea.vmem %s14, %s464
      %p466 = scmp.lt.s32.totalorder %s25, 1
      %s467 = scalar_select %p466, %s25, 1
      %s468 = smul.addr %s467, 4
      %s469 = scalar_lea.vmem %s0, %s468
      %p470 = scmp.lt.s32.totalorder %s25, 1
      %s471 = scalar_select %p470, %s25, 1
      %s472 = scalar_lea.vmem %s1, %s471
      %p473 = scmp.lt.s32.totalorder %s25, 1
      %s474 = scalar_select %p473, %s25, 1
      %s475 = smul.addr %s474, 4
      %s476 = scalar_lea.vmem %s14, %s475
      %v478 = vld [vmem:[%s469] sm:$0xf]
      %v479 = vunpack.c.l.bf16 %v478
      %v480 = vld [vmem:[%s472] sm:$0x1]
      %v481 = vld [vmem:[%s2] sm:$0xff]
      %v482 = vld [vmem:[%s2 + $0x8] sm:$0xf]
      %v483 = vld [vmem:[%s2 + $0xc] sm:$0xff]
      %v484 = vld [vmem:[%s2 + $0x14] sm:$0xf]
      %v485 = vld [vmem:[%s2 + $0x18] sm:$0xff]
      %v486 = vld [vmem:[%s2 + $0x20] sm:$0xf]
      %v487 = vld [vmem:[%s2 + $0x24] sm:$0xff]
      %v488 = vld [vmem:[%s2 + $0x2c] sm:$0xf]
      %v489 = vld [vmem:[%s2 + $0x30] sm:$0xff]
      %v490 = vld [vmem:[%s2 + $0x38] sm:$0xf]
      %v491 = vld [vmem:[%s2 + $0x3c] sm:$0xff]
      %v492 = vld [vmem:[%s2 + $0x44] sm:$0xf]
      %v493 = vld [vmem:[%s2 + $0x48] sm:$0xff]
      %v494 = vld [vmem:[%s2 + $0x50] sm:$0xf]
      %v495 = vld [vmem:[%s2 + $0x54] sm:$0xff]
      %v496 = vld [vmem:[%s2 + $0x5c] sm:$0xf]
      %v497 = vld [vmem:[%s2 + $0x60] sm:$0xff]
      %v498 = vld [vmem:[%s2 + $0x68] sm:$0xf]
      %v499 = vld [vmem:[%s2 + $0x6c] sm:$0xff]
      %v500 = vld [vmem:[%s2 + $0x74] sm:$0xf]
      %v501 = vld [vmem:[%s2 + $0x78] sm:$0xff]
      %v502 = vld [vmem:[%s2 + $0x80] sm:$0xf]
      %v503 = vld [vmem:[%s2 + $0x84] sm:$0xff]
      %v504 = vld [vmem:[%s2 + $0x8c] sm:$0xf]
      %v505 = vld [vmem:[%s2 + $0x90] sm:$0xff]
      %v506 = vld [vmem:[%s2 + $0x98] sm:$0xf]
      %v507 = vld [vmem:[%s2 + $0x9c] sm:$0xff]
      %v508 = vld [vmem:[%s2 + $0xa4] sm:$0xf]
      %v509 = vld [vmem:[%s2 + $0xa8] sm:$0xff]
      %v510 = vld [vmem:[%s2 + $0xb0] sm:$0xf]
      %v511 = vld [vmem:[%s2 + $0xb4] sm:$0xff]
      %v512 = vld [vmem:[%s2 + $0xbc] sm:$0xf]
      %v513 = vld [vmem:[%s3] sm:$0x7]
      %v515 = vperm.slane %v513, 0
      %v516 = vperm.slane %v513, 1
      %v517 = vperm.slane %v513, 2
      %v553 = vunpack.c.l.b16 %v481
      %v554 = vunpack.c.h.b16 %v481
      %v555 = vunpack.c.l.b16 %v482
      %v556 = vunpack.c.l.b16 %v483
      %v557 = vunpack.c.h.b16 %v483
      %v558 = vunpack.c.l.b16 %v484
      %v559 = vunpack.c.l.b16 %v485
      %v560 = vunpack.c.h.b16 %v485
      %v561 = vunpack.c.l.b16 %v486
      %v562 = vunpack.c.l.b16 %v487
      %v563 = vunpack.c.h.b16 %v487
      %v564 = vunpack.c.l.b16 %v488
      %v565 = vunpack.c.l.b16 %v489
      %v566 = vunpack.c.h.b16 %v489
      %v567 = vunpack.c.l.b16 %v490
      %v568 = vunpack.c.l.b16 %v491
      %v569 = vunpack.c.h.b16 %v491
      %v570 = vunpack.c.l.b16 %v492
      %v571 = vunpack.c.l.b16 %v493
      %v572 = vunpack.c.h.b16 %v493
      %v573 = vunpack.c.l.b16 %v494
      %v574 = vunpack.c.l.b16 %v495
      %v575 = vunpack.c.h.b16 %v495
      %v576 = vunpack.c.l.b16 %v496
      %v577 = vunpack.c.l.b16 %v497
      %v578 = vunpack.c.h.b16 %v497
      %v579 = vunpack.c.l.b16 %v498
      %v580 = vunpack.c.l.b16 %v499
      %v581 = vunpack.c.h.b16 %v499
      %v582 = vunpack.c.l.b16 %v500
      %v583 = vunpack.c.l.b16 %v501
      %v584 = vunpack.c.h.b16 %v501
      %v585 = vunpack.c.l.b16 %v502
      %v586 = vunpack.c.l.b16 %v503
      %v587 = vunpack.c.h.b16 %v503
      %v588 = vunpack.c.l.b16 %v504
      %v589 = vunpack.c.l.b16 %v505
      %v590 = vunpack.c.h.b16 %v505
      %v591 = vunpack.c.l.b16 %v506
      %v592 = vunpack.c.l.b16 %v507
      %v593 = vunpack.c.h.b16 %v507
      %v594 = vunpack.c.l.b16 %v508
      %v595 = vunpack.c.l.b16 %v509
      %v596 = vunpack.c.h.b16 %v509
      %v597 = vunpack.c.l.b16 %v510
      %v598 = vunpack.c.l.b16 %v511
      %v599 = vunpack.c.h.b16 %v511
      %v600 = vunpack.c.l.b16 %v512
      %v601 = vpack.c.b16 %v556, %v553
      %v602 = vpack.c.b16 %v557, %v554
      %v603 = vpack.c.b16 %v558, %v555
      %v604 = vpack.c.b16 %v562, %v559
      %v605 = vpack.c.b16 %v563, %v560
      %v606 = vpack.c.b16 %v564, %v561
      %v607 = vpack.c.b16 %v568, %v565
      %v608 = vpack.c.b16 %v569, %v566
      %v609 = vpack.c.b16 %v570, %v567
      %v610 = vpack.c.b16 %v574, %v571
      %v611 = vpack.c.b16 %v575, %v572
      %v612 = vpack.c.b16 %v576, %v573
      %v613 = vpack.c.b16 %v580, %v577
      %v614 = vpack.c.b16 %v581, %v578
      %v615 = vpack.c.b16 %v582, %v579
      %v616 = vpack.c.b16 %v586, %v583
      %v617 = vpack.c.b16 %v587, %v584
      %v618 = vpack.c.b16 %v588, %v585
      %v619 = vpack.c.b16 %v592, %v589
      %v620 = vpack.c.b16 %v593, %v590
      %v621 = vpack.c.b16 %v594, %v591
      %v622 = vpack.c.b16 %v598, %v595
      %v623 = vpack.c.b16 %v599, %v596
      %v624 = vpack.c.b16 %v600, %v597
      %649 = vmatpush.bf16.msra.mxu0 %v622
      %650 = vmatpush.bf16.msra.mxu0 %v619
      %651 = vmatpush.bf16.msra.mxu0 %v616
      %652 = vmatpush.bf16.msra.mxu0 %v613
      %653 = vmatpush.bf16.msra.mxu0 %v610
      %654 = vmatpush.bf16.msra.mxu0 %v607
      %655 = vmatpush.bf16.msra.mxu0 %v604
      %656 = vmatpush.bf16.msra.mxu0 %v601
      %657 = vmatmul.bf16.gmra.mxu0 %v478
      %v658 = vpop.f32.mrf.mxu0
      %v659 = vadd.f32 %v515, %v658
      %v660 = vpop.f32.mrf.mxu0
      %661 = vdwg.mxu0
      %662 = vmatpush.bf16.msra.mxu0 %v623
      %663 = vmatpush.bf16.msra.mxu0 %v620
      %664 = vmatpush.bf16.msra.mxu0 %v617
      %665 = vmatpush.bf16.msra.mxu0 %v614
      %666 = vmatpush.bf16.msra.mxu0 %v611
      %667 = vmatpush.bf16.msra.mxu0 %v608
      %668 = vmatpush.bf16.msra.mxu0 %v605
      %669 = vmatpush.bf16.msra.mxu0 %v602
      %670 = vmatmul.bf16.gmra.mxu0 %v478
      %v671 = vpop.f32.mrf.mxu0
      %v672 = vadd.f32 %v516, %v671
      %v673 = vpop.f32.mrf.mxu0
      %674 = vdwg.mxu0
      %675 = vmatpush.bf16.msra.mxu0 %v624
      %676 = vmatpush.bf16.msra.mxu0 %v621
      %677 = vmatpush.bf16.msra.mxu0 %v618
      %678 = vmatpush.bf16.msra.mxu0 %v615
      %679 = vmatpush.bf16.msra.mxu0 %v612
      %680 = vmatpush.bf16.msra.mxu0 %v609
      %681 = vmatpush.bf16.msra.mxu0 %v606
      %682 = vmatpush.bf16.msra.mxu0 %v603
      %683 = vmatmul.bf16.gmra.mxu0 %v478
      %v684 = vpop.f32.mrf.mxu0
      %v685 = vadd.f32 %v517, %v684
      %v686 = vpop.f32.mrf.mxu0
      %687 = vdwg.mxu0
      %v688 = vld [vmem:[%s4] sm:$0xf]
      %v689 = vld [vmem:[%s4 + $0x4] sm:$0xf]
      %v690 = vld [vmem:[%s4 + $0x8] sm:$0xf]
      %v691 = vld [vmem:[%s4 + $0xc] sm:$0xf]
      %v692 = vld [vmem:[%s4 + $0x10] sm:$0xf]
      %v693 = vld [vmem:[%s4 + $0x14] sm:$0xf]
      %v694 = vld [vmem:[%s4 + $0x18] sm:$0xf]
      %v695 = vld [vmem:[%s4 + $0x1c] sm:$0xf]
      %v696 = vld [vmem:[%s4 + $0x20] sm:$0xf]
      %v697 = vld [vmem:[%s4 + $0x24] sm:$0xf]
      %v698 = vld [vmem:[%s4 + $0x28] sm:$0xf]
      %v699 = vld [vmem:[%s4 + $0x2c] sm:$0xf]
      %v700 = vld [vmem:[%s4 + $0x30] sm:$0xf]
      %v701 = vld [vmem:[%s4 + $0x34] sm:$0xf]
      %v702 = vld [vmem:[%s4 + $0x38] sm:$0xf]
      %v703 = vld [vmem:[%s4 + $0x3c] sm:$0xf]
      %v704 = vld [vmem:[%s5] sm:$0x1]
      %v706 = vperm.slane %v704, 0
      %v708 = vadd.f32 %v479, %v706
      %v709 = vpack.c.bf16 %v659, %v659
      %v710 = vpack.c.bf16 %v672, %v672
      %v711 = vpack.c.bf16 %v685, %v685
      %v713 = vperm.slane %v480, 0
      %vm715 = vcmask 261120
      %v717 = vsel %vm715, %v709, 0
      %v720 = vsel %vm715, %v710, 0
      %722 = vmatpush.bf16.xpose.msra.mxu0 0
      %723 = vmatpush.bf16.xpose.msra.mxu0 0
      %724 = vmatpush.bf16.xpose.msra.mxu0 0
      %725 = vmatpush.bf16.xpose.msra.mxu0 0
      %726 = vmatpush.bf16.xpose.msra.mxu0 0
      %727 = vmatpush.bf16.xpose.msra.mxu0 0
      %728 = vmatpush.bf16.xpose.msra.mxu0 0
      %729 = vmatpush.bf16.xpose.msra.mxu0 %v720
      %730 = vmatmul.bf16.gmra.mxu0 %v717
      %v731 = vpop.f32.mrf.mxu0
      %v732 = vadd.f32 %v713, %v731
      %v733 = vpop.f32.mrf.mxu0
      %734 = vdwg.mxu0
      %vm735 = vcmask 64512
      %v736 = vsel %vm735, %v732, -inf
      %737 = vmax.xlane.f32.xlu0 %v736
      %v738 = vpop.xlane.xlu0 %737
      %v739 = vsub.f32 %v732, %v738
      %v740 = vmul.f32 %v739, 1.442695
      %v741 = vpow.pop %v740
      %v742 = vsel %vm735, %v741, 0.0
      %743 = vadd.xlane.f32.xlu0 %v742
      %v744 = vpop.xlane.xlu0 %743
      %v745 = vrcp.pop %v744
      %v746 = vmul.f32 %v741, %v745
      %v747 = vpack.c.bf16 %v746, %v746
      %v749 = vsel %vm735, %v747, 0
      %vm751 = vcmask 1043456
      %v753 = vsel %vm751, %v711, 0
      %755 = vmatpush.bf16.msra.mxu0 0
      %756 = vmatpush.bf16.msra.mxu0 0
      %757 = vmatpush.bf16.msra.mxu0 0
      %758 = vmatpush.bf16.msra.mxu0 0
      %759 = vmatpush.bf16.msra.mxu0 0
      %760 = vmatpush.bf16.msra.mxu0 0
      %761 = vmatpush.bf16.msra.mxu0 0
      %762 = vmatpush.bf16.msra.mxu0 %v753
      %763 = vmatmul.bf16.gmra.mxu0 %v749
      %v764 = vpop.f32.mrf.mxu0
      %v765 = vadd.f32 0.0, %v764
      %v766 = vpop.f32.mrf.mxu0
      %767 = vdwg.mxu0
      %v768 = vpack.c.bf16 %v765, %v765
      %v773 = vunpack.c.l.b16 %v688
      %v774 = vunpack.c.l.b16 %v689
      %v775 = vunpack.c.l.b16 %v690
      %v776 = vunpack.c.l.b16 %v691
      %v777 = vpack.c.b16 %v774, %v773
      %v778 = vpack.c.b16 %v776, %v775
      %v782 = vsel %vm715, %v768, 0
      %784 = vmatpush.bf16.msra.mxu0 0
      %785 = vmatpush.bf16.msra.mxu0 0
      %786 = vmatpush.bf16.msra.mxu0 0
      %787 = vmatpush.bf16.msra.mxu0 0
      %788 = vmatpush.bf16.msra.mxu0 0
      %789 = vmatpush.bf16.msra.mxu0 0
      %790 = vmatpush.bf16.msra.mxu0 %v778
      %791 = vmatpush.bf16.msra.mxu0 %v777
      %792 = vmatmul.bf16.gmra.mxu0 %v782
      %v793 = vpop.f32.mrf.mxu0
      %v794 = vadd.f32 0.0, %v793
      %v795 = vpop.f32.mrf.mxu0
      %796 = vdwg.mxu0
      %v797 = vadd.f32 %v708, %v794
      %799 = vrot.lane.b32.xlu0 %v709, 96
      %v800 = vpop.permute.xlu0 %799
      %802 = vrot.lane.b32.xlu0 %v710, 96
      %v803 = vpop.permute.xlu0 %802
      %v805 = vsel %vm715, %v800, 0
      %v808 = vsel %vm715, %v803, 0
      %810 = vmatpush.bf16.xpose.msra.mxu0 0
      %811 = vmatpush.bf16.xpose.msra.mxu0 0
      %812 = vmatpush.bf16.xpose.msra.mxu0 0
      %813 = vmatpush.bf16.xpose.msra.mxu0 0
      %814 = vmatpush.bf16.xpose.msra.mxu0 0
      %815 = vmatpush.bf16.xpose.msra.mxu0 0
      %816 = vmatpush.bf16.xpose.msra.mxu0 0
      %817 = vmatpush.bf16.xpose.msra.mxu0 %v808
      %818 = vmatmul.bf16.gmra.mxu0 %v805
      %v819 = vpop.f32.mrf.mxu0
      %v820 = vadd.f32 %v713, %v819
      %v821 = vpop.f32.mrf.mxu0
      %822 = vdwg.mxu0
      %v823 = vsel %vm735, %v820, -inf
      %824 = vmax.xlane.f32.xlu0 %v823
      %v825 = vpop.xlane.xlu0 %824
      %v826 = vsub.f32 %v820, %v825
      %v827 = vmul.f32 %v826, 1.442695
      %v828 = vpow.pop %v827
      %v829 = vsel %vm735, %v828, 0.0
      %830 = vadd.xlane.f32.xlu0 %v829
      %v831 = vpop.xlane.xlu0 %830
      %v832 = vrcp.pop %v831
      %v833 = vmul.f32 %v828, %v832
      %v834 = vpack.c.bf16 %v833, %v833
      %836 = vrot.lane.b32.xlu0 %v711, 96
      %v837 = vpop.permute.xlu0 %836
      %v839 = vsel %vm735, %v834, 0
      %v842 = vsel %vm751, %v837, 0
      %844 = vmatpush.bf16.msra.mxu0 0
      %845 = vmatpush.bf16.msra.mxu0 0
      %846 = vmatpush.bf16.msra.mxu0 0
      %847 = vmatpush.bf16.msra.mxu0 0
      %848 = vmatpush.bf16.msra.mxu0 0
      %849 = vmatpush.bf16.msra.mxu0 0
      %850 = vmatpush.bf16.msra.mxu0 0
      %851 = vmatpush.bf16.msra.mxu0 %v842
      %852 = vmatmul.bf16.gmra.mxu0 %v839
      %v853 = vpop.f32.mrf.mxu0
      %v854 = vadd.f32 0.0, %v853
      %v855 = vpop.f32.mrf.mxu0
      %856 = vdwg.mxu0
      %v857 = vpack.c.bf16 %v854, %v854
      %v862 = vunpack.c.l.b16 %v692
      %v863 = vunpack.c.l.b16 %v693
      %v864 = vunpack.c.l.b16 %v694
      %v865 = vunpack.c.l.b16 %v695
      %v866 = vpack.c.b16 %v863, %v862
      %v867 = vpack.c.b16 %v865, %v864
      %v871 = vsel %vm715, %v857, 0
      %873 = vmatpush.bf16.msra.mxu0 0
      %874 = vmatpush.bf16.msra.mxu0 0
      %875 = vmatpush.bf16.msra.mxu0 0
      %876 = vmatpush.bf16.msra.mxu0 0
      %877 = vmatpush.bf16.msra.mxu0 0
      %878 = vmatpush.bf16.msra.mxu0 0
      %879 = vmatpush.bf16.msra.mxu0 %v867
      %880 = vmatpush.bf16.msra.mxu0 %v866
      %881 = vmatmul.bf16.gmra.mxu0 %v871
      %v882 = vpop.f32.mrf.mxu0
      %v883 = vadd.f32 0.0, %v882
      %v884 = vpop.f32.mrf.mxu0
      %885 = vdwg.mxu0
      %v886 = vadd.f32 %v797, %v883
      %887 = vrot.lane.b32.xlu0 %v709, 64
      %v888 = vpop.permute.xlu0 %887
      %889 = vrot.lane.b32.xlu0 %v710, 64
      %v890 = vpop.permute.xlu0 %889
      %v892 = vsel %vm715, %v888, 0
      %v895 = vsel %vm715, %v890, 0
      %897 = vmatpush.bf16.xpose.msra.mxu0 0
      %898 = vmatpush.bf16.xpose.msra.mxu0 0
      %899 = vmatpush.bf16.xpose.msra.mxu0 0
      %900 = vmatpush.bf16.xpose.msra.mxu0 0
      %901 = vmatpush.bf16.xpose.msra.mxu0 0
      %902 = vmatpush.bf16.xpose.msra.mxu0 0
      %903 = vmatpush.bf16.xpose.msra.mxu0 0
      %904 = vmatpush.bf16.xpose.msra.mxu0 %v895
      %905 = vmatmul.bf16.gmra.mxu0 %v892
      %v906 = vpop.f32.mrf.mxu0
      %v907 = vadd.f32 %v713, %v906
      %v908 = vpop.f32.mrf.mxu0
      %909 = vdwg.mxu0
      %v910 = vsel %vm735, %v907, -inf
      %911 = vmax.xlane.f32.xlu0 %v910
      %v912 = vpop.xlane.xlu0 %911
      %v913 = vsub.f32 %v907, %v912
      %v914 = vmul.f32 %v913, 1.442695
      %v915 = vpow.pop %v914
      %v916 = vsel %vm735, %v915, 0.0
      %917 = vadd.xlane.f32.xlu0 %v916
      %v918 = vpop.xlane.xlu0 %917
      %v919 = vrcp.pop %v918
      %v920 = vmul.f32 %v915, %v919
      %v921 = vpack.c.bf16 %v920, %v920
      %922 = vrot.lane.b32.xlu0 %v711, 64
      %v923 = vpop.permute.xlu0 %922
      %v925 = vsel %vm735, %v921, 0
      %v928 = vsel %vm751, %v923, 0
      %930 = vmatpush.bf16.msra.mxu0 0
      %931 = vmatpush.bf16.msra.mxu0 0
      %932 = vmatpush.bf16.msra.mxu0 0
      %933 = vmatpush.bf16.msra.mxu0 0
      %934 = vmatpush.bf16.msra.mxu0 0
      %935 = vmatpush.bf16.msra.mxu0 0
      %936 = vmatpush.bf16.msra.mxu0 0
      %937 = vmatpush.bf16.msra.mxu0 %v928
      %938 = vmatmul.bf16.gmra.mxu0 %v925
      %v939 = vpop.f32.mrf.mxu0
      %v940 = vadd.f32 0.0, %v939
      %v941 = vpop.f32.mrf.mxu0
      %942 = vdwg.mxu0
      %v943 = vpack.c.bf16 %v940, %v940
      %v948 = vunpack.c.l.b16 %v696
      %v949 = vunpack.c.l.b16 %v697
      %v950 = vunpack.c.l.b16 %v698
      %v951 = vunpack.c.l.b16 %v699
      %v952 = vpack.c.b16 %v949, %v948
      %v953 = vpack.c.b16 %v951, %v950
      %v957 = vsel %vm715, %v943, 0
      %959 = vmatpush.bf16.msra.mxu0 0
      %960 = vmatpush.bf16.msra.mxu0 0
      %961 = vmatpush.bf16.msra.mxu0 0
      %962 = vmatpush.bf16.msra.mxu0 0
      %963 = vmatpush.bf16.msra.mxu0 0
      %964 = vmatpush.bf16.msra.mxu0 0
      %965 = vmatpush.bf16.msra.mxu0 %v953
      %966 = vmatpush.bf16.msra.mxu0 %v952
      %967 = vmatmul.bf16.gmra.mxu0 %v957
      %v968 = vpop.f32.mrf.mxu0
      %v969 = vadd.f32 0.0, %v968
      %v970 = vpop.f32.mrf.mxu0
      %971 = vdwg.mxu0
      %v972 = vadd.f32 %v886, %v969
      %973 = vrot.lane.b32.xlu0 %v709, 32
      %v974 = vpop.permute.xlu0 %973
      %975 = vrot.lane.b32.xlu0 %v710, 32
      %v976 = vpop.permute.xlu0 %975
      %v978 = vsel %vm715, %v974, 0
      %v981 = vsel %vm715, %v976, 0
      %983 = vmatpush.bf16.xpose.msra.mxu0 0
      %984 = vmatpush.bf16.xpose.msra.mxu0 0
      %985 = vmatpush.bf16.xpose.msra.mxu0 0
      %986 = vmatpush.bf16.xpose.msra.mxu0 0
      %987 = vmatpush.bf16.xpose.msra.mxu0 0
      %988 = vmatpush.bf16.xpose.msra.mxu0 0
      %989 = vmatpush.bf16.xpose.msra.mxu0 0
      %990 = vmatpush.bf16.xpose.msra.mxu0 %v981
      %991 = vmatmul.bf16.gmra.mxu0 %v978
      %v992 = vpop.f32.mrf.mxu0
      %v993 = vadd.f32 %v713, %v992
      %v994 = vpop.f32.mrf.mxu0
      %995 = vdwg.mxu0
      %v996 = vsel %vm735, %v993, -inf
      %997 = vmax.xlane.f32.xlu0 %v996
      %v998 = vpop.xlane.xlu0 %997
      %v999 = vsub.f32 %v993, %v998
      %v1000 = vmul.f32 %v999, 1.442695
      %v1001 = vpow.pop %v1000
      %v1002 = vsel %vm735, %v1001, 0.0
      %1003 = vadd.xlane.f32.xlu0 %v1002
      %v1004 = vpop.xlane.xlu0 %1003
      %v1005 = vrcp.pop %v1004
      %v1006 = vmul.f32 %v1001, %v1005
      %v1007 = vpack.c.bf16 %v1006, %v1006
      %1008 = vrot.lane.b32.xlu0 %v711, 32
      %v1009 = vpop.permute.xlu0 %1008
      %v1011 = vsel %vm735, %v1007, 0
      %v1014 = vsel %vm751, %v1009, 0
      %1016 = vmatpush.bf16.msra.mxu0 0
      %1017 = vmatpush.bf16.msra.mxu0 0
      %1018 = vmatpush.bf16.msra.mxu0 0
      %1019 = vmatpush.bf16.msra.mxu0 0
      %1020 = vmatpush.bf16.msra.mxu0 0
      %1021 = vmatpush.bf16.msra.mxu0 0
      %1022 = vmatpush.bf16.msra.mxu0 0
      %1023 = vmatpush.bf16.msra.mxu0 %v1014
      %1024 = vmatmul.bf16.gmra.mxu0 %v1011
      %v1025 = vpop.f32.mrf.mxu0
      %v1026 = vadd.f32 0.0, %v1025
      %v1027 = vpop.f32.mrf.mxu0
      %1028 = vdwg.mxu0
      %v1029 = vpack.c.bf16 %v1026, %v1026
      %v1034 = vunpack.c.l.b16 %v700
      %v1035 = vunpack.c.l.b16 %v701
      %v1036 = vunpack.c.l.b16 %v702
      %v1037 = vunpack.c.l.b16 %v703
      %v1038 = vpack.c.b16 %v1035, %v1034
      %v1039 = vpack.c.b16 %v1037, %v1036
      %v1043 = vsel %vm715, %v1029, 0
      %1045 = vmatpush.bf16.msra.mxu0 0
      %1046 = vmatpush.bf16.msra.mxu0 0
      %1047 = vmatpush.bf16.msra.mxu0 0
      %1048 = vmatpush.bf16.msra.mxu0 0
      %1049 = vmatpush.bf16.msra.mxu0 0
      %1050 = vmatpush.bf16.msra.mxu0 0
      %1051 = vmatpush.bf16.msra.mxu0 %v1039
      %1052 = vmatpush.bf16.msra.mxu0 %v1038
      %1053 = vmatmul.bf16.gmra.mxu0 %v1043
      %v1054 = vpop.f32.mrf.mxu0
      %v1055 = vadd.f32 0.0, %v1054
      %v1056 = vpop.f32.mrf.mxu0
      %1057 = vdwg.mxu0
      %v1058 = vadd.f32 %v972, %v1055
      %v1059 = vld [vmem:[%s6] sm:$0x1]
      %v1060 = vld [vmem:[%s7] sm:$0x1]
      %1061 = vadd.xlane.f32.xlu0 %v1058
      %v1062 = vpop.xlane.xlu0 %1061
      %v1063 = vrcp.pop 128.0
      %v1064 = vmul.f32 128.0, %v1063
      %v1065 = vsub.f32 1.0, %v1064
      %v1066 = vmul.f32 %v1063, %v1065
      %v1067 = vadd.f32 %v1063, %v1066
      %vm1068 = vweird.f32 %v1063
      %v1069 = vsel %vm1068, %v1063, %v1067
      %v1070 = vmul.f32 %v1062, %v1069
      %v1071 = vsub.f32 %v1058, %v1070
      %v1072 = vmul.f32 %v1071, %v1071
      %1073 = vadd.xlane.f32.xlu0 %v1072
      %v1074 = vpop.xlane.xlu0 %1073
      %v1075 = vmul.f32 %v1074, %v1069
      %v1076 = vadd.f32 %v1075, 1e-12
      %v1077 = vrsqrt.pop %v1076
      %v1078 = vmul.f32 %v1077, %v1076
      %v1079 = vmul.f32 %v1078, %v1077
      %v1080 = vmul.f32 0.5, %v1079
      %v1081 = vsub.f32 1.5, %v1080
      %v1082 = vmul.f32 %v1077, %v1081
      %vm1083 = vweird.f32 %v1076
      %vm1084 = vweird.f32 %v1077
      %vm1085 = vmor %vm1083, %vm1084
      %v1086 = vsel %vm1085, %v1077, %v1082
      %v1087 = vmul.f32 %v1071, %v1086
      %v1089 = vperm.slane %v1059, 0
      %v1091 = vmul.f32 %v1087, %v1089
      %v1093 = vperm.slane %v1060, 0
      %v1095 = vadd.f32 %v1091, %v1093
      %v1096 = vpack.c.bf16 %v1095, %v1095
      %v1097 = vld [vmem:[%s8] sm:$0xff]
      %v1098 = vld [vmem:[%s8 + $0x8] sm:$0xff]
      %v1099 = vld [vmem:[%s8 + $0x10] sm:$0xff]
      %v1100 = vld [vmem:[%s8 + $0x18] sm:$0xff]
      %v1101 = vld [vmem:[%s8 + $0x20] sm:$0xff]
      %v1102 = vld [vmem:[%s8 + $0x28] sm:$0xff]
      %v1103 = vld [vmem:[%s8 + $0x30] sm:$0xff]
      %v1104 = vld [vmem:[%s8 + $0x38] sm:$0xff]
      %v1105 = vld [vmem:[%s8 + $0x40] sm:$0xff]
      %v1106 = vld [vmem:[%s8 + $0x48] sm:$0xff]
      %v1107 = vld [vmem:[%s8 + $0x50] sm:$0xff]
      %v1108 = vld [vmem:[%s8 + $0x58] sm:$0xff]
      %v1109 = vld [vmem:[%s8 + $0x60] sm:$0xff]
      %v1110 = vld [vmem:[%s8 + $0x68] sm:$0xff]
      %v1111 = vld [vmem:[%s8 + $0x70] sm:$0xff]
      %v1112 = vld [vmem:[%s8 + $0x78] sm:$0xff]
      %v1113 = vld [vmem:[%s9] sm:$0x3]
      %v1115 = vperm.slane %v1113, 0
      %v1116 = vperm.slane %v1113, 1
      %v1135 = vunpack.c.l.b16 %v1097
      %v1136 = vunpack.c.h.b16 %v1097
      %v1137 = vunpack.c.l.b16 %v1098
      %v1138 = vunpack.c.h.b16 %v1098
      %v1139 = vunpack.c.l.b16 %v1099
      %v1140 = vunpack.c.h.b16 %v1099
      %v1141 = vunpack.c.l.b16 %v1100
      %v1142 = vunpack.c.h.b16 %v1100
      %v1143 = vunpack.c.l.b16 %v1101
      %v1144 = vunpack.c.h.b16 %v1101
      %v1145 = vunpack.c.l.b16 %v1102
      %v1146 = vunpack.c.h.b16 %v1102
      %v1147 = vunpack.c.l.b16 %v1103
      %v1148 = vunpack.c.h.b16 %v1103
      %v1149 = vunpack.c.l.b16 %v1104
      %v1150 = vunpack.c.h.b16 %v1104
      %v1151 = vunpack.c.l.b16 %v1105
      %v1152 = vunpack.c.h.b16 %v1105
      %v1153 = vunpack.c.l.b16 %v1106
      %v1154 = vunpack.c.h.b16 %v1106
      %v1155 = vunpack.c.l.b16 %v1107
      %v1156 = vunpack.c.h.b16 %v1107
      %v1157 = vunpack.c.l.b16 %v1108
      %v1158 = vunpack.c.h.b16 %v1108
      %v1159 = vunpack.c.l.b16 %v1109
      %v1160 = vunpack.c.h.b16 %v1109
      %v1161 = vunpack.c.l.b16 %v1110
      %v1162 = vunpack.c.h.b16 %v1110
      %v1163 = vunpack.c.l.b16 %v1111
      %v1164 = vunpack.c.h.b16 %v1111
      %v1165 = vunpack.c.l.b16 %v1112
      %v1166 = vunpack.c.h.b16 %v1112
      %v1167 = vpack.c.b16 %v1137, %v1135
      %v1168 = vpack.c.b16 %v1138, %v1136
      %v1169 = vpack.c.b16 %v1141, %v1139
      %v1170 = vpack.c.b16 %v1142, %v1140
      %v1171 = vpack.c.b16 %v1145, %v1143
      %v1172 = vpack.c.b16 %v1146, %v1144
      %v1173 = vpack.c.b16 %v1149, %v1147
      %v1174 = vpack.c.b16 %v1150, %v1148
      %v1175 = vpack.c.b16 %v1153, %v1151
      %v1176 = vpack.c.b16 %v1154, %v1152
      %v1177 = vpack.c.b16 %v1157, %v1155
      %v1178 = vpack.c.b16 %v1158, %v1156
      %v1179 = vpack.c.b16 %v1161, %v1159
      %v1180 = vpack.c.b16 %v1162, %v1160
      %v1181 = vpack.c.b16 %v1165, %v1163
      %v1182 = vpack.c.b16 %v1166, %v1164
      %1199 = vmatpush.bf16.msra.mxu0 %v1181
      %1200 = vmatpush.bf16.msra.mxu0 %v1179
      %1201 = vmatpush.bf16.msra.mxu0 %v1177
      %1202 = vmatpush.bf16.msra.mxu0 %v1175
      %1203 = vmatpush.bf16.msra.mxu0 %v1173
      %1204 = vmatpush.bf16.msra.mxu0 %v1171
      %1205 = vmatpush.bf16.msra.mxu0 %v1169
      %1206 = vmatpush.bf16.msra.mxu0 %v1167
      %1207 = vmatmul.bf16.gmra.mxu0 %v1096
      %v1208 = vpop.f32.mrf.mxu0
      %v1209 = vadd.f32 %v1115, %v1208
      %v1210 = vpop.f32.mrf.mxu0
      %1211 = vdwg.mxu0
      %1212 = vmatpush.bf16.msra.mxu0 %v1182
      %1213 = vmatpush.bf16.msra.mxu0 %v1180
      %1214 = vmatpush.bf16.msra.mxu0 %v1178
      %1215 = vmatpush.bf16.msra.mxu0 %v1176
      %1216 = vmatpush.bf16.msra.mxu0 %v1174
      %1217 = vmatpush.bf16.msra.mxu0 %v1172
      %1218 = vmatpush.bf16.msra.mxu0 %v1170
      %1219 = vmatpush.bf16.msra.mxu0 %v1168
      %1220 = vmatmul.bf16.gmra.mxu0 %v1096
      %v1221 = vpop.f32.mrf.mxu0
      %v1222 = vadd.f32 %v1116, %v1221
      %v1223 = vpop.f32.mrf.mxu0
      %1224 = vdwg.mxu0
      %v1225 = vmul.f32 %v1209, 0.5
      %v1226 = vmul.f32 %v1222, 0.5
      %v1227 = vmul.f32 %v1209, 0.044715
      %v1228 = vmul.f32 %v1222, 0.044715
      %v1229 = vmul.f32 %v1227, %v1209
      %v1230 = vmul.f32 %v1228, %v1222
      %v1231 = vmul.f32 %v1229, %v1209
      %v1232 = vmul.f32 %v1230, %v1222
      %v1233 = vadd.f32 %v1209, %v1231
      %v1234 = vadd.f32 %v1222, %v1232
      %v1235 = vmul.f32 %v1233, 0.7978846
      %v1236 = vmul.f32 %v1234, 0.7978846
      %v1237 = vtanh.pop %v1235
      %v1238 = vtanh.pop %v1236
      %v1239 = vadd.f32 %v1237, 1.0
      %v1240 = vadd.f32 %v1238, 1.0
      %v1241 = vmul.f32 %v1225, %v1239
      %v1242 = vmul.f32 %v1226, %v1240
      %v1243 = vpack.c.bf16 %v1241, %v1241
      %v1244 = vpack.c.bf16 %v1242, %v1242
      %v1245 = vld [vmem:[%s10] sm:$0xf]
      %v1246 = vld [vmem:[%s10 + $0x4] sm:$0xf]
      %v1247 = vld [vmem:[%s10 + $0x8] sm:$0xf]
      %v1248 = vld [vmem:[%s10 + $0xc] sm:$0xf]
      %v1249 = vld [vmem:[%s10 + $0x10] sm:$0xf]
      %v1250 = vld [vmem:[%s10 + $0x14] sm:$0xf]
      %v1251 = vld [vmem:[%s10 + $0x18] sm:$0xf]
      %v1252 = vld [vmem:[%s10 + $0x1c] sm:$0xf]
      %v1253 = vld [vmem:[%s10 + $0x20] sm:$0xf]
      %v1254 = vld [vmem:[%s10 + $0x24] sm:$0xf]
      %v1255 = vld [vmem:[%s10 + $0x28] sm:$0xf]
      %v1256 = vld [vmem:[%s10 + $0x2c] sm:$0xf]
      %v1257 = vld [vmem:[%s10 + $0x30] sm:$0xf]
      %v1258 = vld [vmem:[%s10 + $0x34] sm:$0xf]
      %v1259 = vld [vmem:[%s10 + $0x38] sm:$0xf]
      %v1260 = vld [vmem:[%s10 + $0x3c] sm:$0xf]
      %v1261 = vld [vmem:[%s10 + $0x40] sm:$0xf]
      %v1262 = vld [vmem:[%s10 + $0x44] sm:$0xf]
      %v1263 = vld [vmem:[%s10 + $0x48] sm:$0xf]
      %v1264 = vld [vmem:[%s10 + $0x4c] sm:$0xf]
      %v1265 = vld [vmem:[%s10 + $0x50] sm:$0xf]
      %v1266 = vld [vmem:[%s10 + $0x54] sm:$0xf]
      %v1267 = vld [vmem:[%s10 + $0x58] sm:$0xf]
      %v1268 = vld [vmem:[%s10 + $0x5c] sm:$0xf]
      %v1269 = vld [vmem:[%s10 + $0x60] sm:$0xf]
      %v1270 = vld [vmem:[%s10 + $0x64] sm:$0xf]
      %v1271 = vld [vmem:[%s10 + $0x68] sm:$0xf]
      %v1272 = vld [vmem:[%s10 + $0x6c] sm:$0xf]
      %v1273 = vld [vmem:[%s10 + $0x70] sm:$0xf]
      %v1274 = vld [vmem:[%s10 + $0x74] sm:$0xf]
      %v1275 = vld [vmem:[%s10 + $0x78] sm:$0xf]
      %v1276 = vld [vmem:[%s10 + $0x7c] sm:$0xf]
      %v1277 = vld [vmem:[%s11] sm:$0x1]
      %v1279 = vperm.slane %v1277, 0
      %v1313 = vunpack.c.l.b16 %v1245
      %v1314 = vunpack.c.l.b16 %v1246
      %v1315 = vunpack.c.l.b16 %v1247
      %v1316 = vunpack.c.l.b16 %v1248
      %v1317 = vunpack.c.l.b16 %v1249
      %v1318 = vunpack.c.l.b16 %v1250
      %v1319 = vunpack.c.l.b16 %v1251
      %v1320 = vunpack.c.l.b16 %v1252
      %v1321 = vunpack.c.l.b16 %v1253
      %v1322 = vunpack.c.l.b16 %v1254
      %v1323 = vunpack.c.l.b16 %v1255
      %v1324 = vunpack.c.l.b16 %v1256
      %v1325 = vunpack.c.l.b16 %v1257
      %v1326 = vunpack.c.l.b16 %v1258
      %v1327 = vunpack.c.l.b16 %v1259
      %v1328 = vunpack.c.l.b16 %v1260
      %v1329 = vunpack.c.l.b16 %v1261
      %v1330 = vunpack.c.l.b16 %v1262
      %v1331 = vunpack.c.l.b16 %v1263
      %v1332 = vunpack.c.l.b16 %v1264
      %v1333 = vunpack.c.l.b16 %v1265
      %v1334 = vunpack.c.l.b16 %v1266
      %v1335 = vunpack.c.l.b16 %v1267
      %v1336 = vunpack.c.l.b16 %v1268
      %v1337 = vunpack.c.l.b16 %v1269
      %v1338 = vunpack.c.l.b16 %v1270
      %v1339 = vunpack.c.l.b16 %v1271
      %v1340 = vunpack.c.l.b16 %v1272
      %v1341 = vunpack.c.l.b16 %v1273
      %v1342 = vunpack.c.l.b16 %v1274
      %v1343 = vunpack.c.l.b16 %v1275
      %v1344 = vunpack.c.l.b16 %v1276
      %v1345 = vpack.c.b16 %v1314, %v1313
      %v1346 = vpack.c.b16 %v1316, %v1315
      %v1347 = vpack.c.b16 %v1318, %v1317
      %v1348 = vpack.c.b16 %v1320, %v1319
      %v1349 = vpack.c.b16 %v1322, %v1321
      %v1350 = vpack.c.b16 %v1324, %v1323
      %v1351 = vpack.c.b16 %v1326, %v1325
      %v1352 = vpack.c.b16 %v1328, %v1327
      %v1353 = vpack.c.b16 %v1330, %v1329
      %v1354 = vpack.c.b16 %v1332, %v1331
      %v1355 = vpack.c.b16 %v1334, %v1333
      %v1356 = vpack.c.b16 %v1336, %v1335
      %v1357 = vpack.c.b16 %v1338, %v1337
      %v1358 = vpack.c.b16 %v1340, %v1339
      %v1359 = vpack.c.b16 %v1342, %v1341
      %v1360 = vpack.c.b16 %v1344, %v1343
      %1377 = vmatpush.bf16.msra.mxu0 %v1352
      %1378 = vmatpush.bf16.msra.mxu0 %v1351
      %1379 = vmatpush.bf16.msra.mxu0 %v1350
      %1380 = vmatpush.bf16.msra.mxu0 %v1349
      %1381 = vmatpush.bf16.msra.mxu0 %v1348
      %1382 = vmatpush.bf16.msra.mxu0 %v1347
      %1383 = vmatpush.bf16.msra.mxu0 %v1346
      %1384 = vmatpush.bf16.msra.mxu0 %v1345
      %1385 = vmatmul.bf16.gmra.mxu0 %v1243
      %v1386 = vpop.f32.mrf.mxu0
      %v1387 = vadd.f32 %v1279, %v1386
      %v1388 = vpop.f32.mrf.mxu0
      %1389 = vdwg.mxu0
      %1390 = vmatpush.bf16.msra.mxu0 %v1360
      %1391 = vmatpush.bf16.msra.mxu0 %v1359
      %1392 = vmatpush.bf16.msra.mxu0 %v1358
      %1393 = vmatpush.bf16.msra.mxu0 %v1357
      %1394 = vmatpush.bf16.msra.mxu0 %v1356
      %1395 = vmatpush.bf16.msra.mxu0 %v1355
      %1396 = vmatpush.bf16.msra.mxu0 %v1354
      %1397 = vmatpush.bf16.msra.mxu0 %v1353
      %1398 = vmatmul.bf16.gmra.mxu0 %v1244
      %v1399 = vpop.f32.mrf.mxu0
      %v1400 = vadd.f32 %v1387, %v1399
      %v1401 = vpop.f32.mrf.mxu0
      %1402 = vdwg.mxu0
      %v1403 = vadd.f32 %v1400, %v1095
      %v1404 = vld [vmem:[%s12] sm:$0x1]
      %v1405 = vld [vmem:[%s13] sm:$0x1]
      %1406 = vadd.xlane.f32.xlu0 %v1403
      %v1407 = vpop.xlane.xlu0 %1406
      %v1408 = vmul.f32 %v1407, %v1069
      %v1409 = vsub.f32 %v1403, %v1408
      %v1410 = vmul.f32 %v1409, %v1409
      %1411 = vadd.xlane.f32.xlu0 %v1410
      %v1412 = vpop.xlane.xlu0 %1411
      %v1413 = vmul.f32 %v1412, %v1069
      %v1414 = vadd.f32 %v1413, 1e-12
      %v1415 = vrsqrt.pop %v1414
      %v1416 = vmul.f32 %v1415, %v1414
      %v1417 = vmul.f32 %v1416, %v1415
      %v1418 = vmul.f32 0.5, %v1417
      %v1419 = vsub.f32 1.5, %v1418
      %v1420 = vmul.f32 %v1415, %v1419
      %vm1421 = vweird.f32 %v1414
      %vm1422 = vweird.f32 %v1415
      %vm1423 = vmor %vm1421, %vm1422
      %v1424 = vsel %vm1423, %v1415, %v1420
      %v1425 = vmul.f32 %v1409, %v1424
      %v1427 = vperm.slane %v1404, 0
      %v1429 = vmul.f32 %v1425, %v1427
      %v1431 = vperm.slane %v1405, 0
      %v1433 = vadd.f32 %v1429, %v1431
      %v1434 = vpack.c.bf16 %v1433, %v1433
      %1435 = vst [vmem:[%s476] sm:$0xf] %v1434
      %p1436 = scmp.lt.s32.totalorder %s25, 1
      %s1437 = scalar_select %p1436, %s25, 1
      %s1438 = smul.addr %s1437, 4
      %s1439 = scalar_lea.vmem %s14, %s1438
      // Predicated region
      $region77: #{bert_encoder_forward.5} parent=75 // pred_check
        %p1440 = pneg %p347
      $region78: #{bert_encoder_forward.5} parent=75 // pred_check_branch
        %1442 = sbr.rel (%p1440) target = $region80
      $region79: #{bert_encoder_forward.5} parent=75 // pred_region
        _
      $region80: #{bert_encoder_forward.5} parent=75 // pred_fallthru
        _
    $region76: #{bert_encoder_forward.5} parent=5 // pred_fallthru
      _
    %p1443 = scmp.le.s32.totalorder 2, %s20
    // Predicated region
    $region81: #{bert_encoder_forward.5} parent=5 // pred_check
      %p1444 = pneg %p1443
    $region82: #{bert_encoder_forward.5} parent=5 // pred_check_branch
      %1446 = sbr.rel (%p1444) target = $region84
    $region83: #{bert_encoder_forward.5} parent=5 // pred_region
      %s1447 = ssub.s32 %s20, 2
      // Predicated region
      $region85: #{bert_encoder_forward.5} parent=83 // pred_check
        %p1448 = pneg %p353
      $region86: #{bert_encoder_forward.5} parent=83 // pred_check_branch
        %1450 = sbr.rel (%p1448) target = $region88
      $region87: #{bert_encoder_forward.5} parent=83 // pred_region
        %p1451 = scmp.lt.s32.totalorder %s26, 1
        %s1452 = scalar_select %p1451, %s26, 1
        %s1453 = smul.addr %s1452, 4
        %s1454 = scalar_lea.vmem %s14, %s1453
      $region88: #{bert_encoder_forward.5} parent=83 // pred_fallthru
        _
    $region84: #{bert_encoder_forward.5} parent=5 // pred_fallthru
      _
  $region6: #{bert_encoder_forward.5} parent=0 // loop_footer
    %s24 = sadd.s32 1, %s20
  $region7: #{bert_encoder_forward.5} parent=0 // loop_footer_branch
    %19 = sbr.rel target = $region3
  $region8: #{bert_encoder_forward.5} parent=0 // loop_exit
    _

// kernel: bert_encoder_forward.4
$region0: #{bert_encoder_forward.4}
  #allocation0 [shape = 'u32[]', space=smem, size = 0x4, offset = 0x4, fixed_abs, tag = 'smem constant byte address 0x4 - core index']
  #allocation1 [shape = 'u32[72,128]{1,0:T(1,128)}', space=vmem, size = 0x9000, scoped, tag = 'internal scratch']
  %s0 = inlined_call_operand.vmem [shape: bf16[2,8,128], index: 0, kind: input, shape index: {}]
  %s1 = inlined_call_operand.vmem [shape: f32[2,1,8], index: 1, kind: input, shape index: {}]
  %s2 = inlined_call_operand.vmem [shape: bf16[128,384], index: 2, kind: input, shape index: {}]
  %s3 = inlined_call_operand.vmem [shape: f32[1,384], index: 3, kind: input, shape index: {}]
  %s4 = inlined_call_operand.hbm [shape: bf16[128,128], index: 4, kind: input, shape index: {}]
  %s5 = inlined_call_operand.hbm [shape: f32[1,128], index: 5, kind: input, shape index: {}]
  %s6 = inlined_call_operand.hbm [shape: f32[1,128], index: 6, kind: input, shape index: {}]
  %s7 = inlined_call_operand.hbm [shape: f32[1,128], index: 7, kind: input, shape index: {}]
  %s8 = inlined_call_operand.vmem [shape: bf16[128,256], index: 8, kind: input, shape index: {}]
  %s9 = inlined_call_operand.hbm [shape: f32[1,256], index: 9, kind: input, shape index: {}]
  %s10 = inlined_call_operand.hbm [shape: bf16[256,128], index: 10, kind: input, shape index: {}]
  %s11 = inlined_call_operand.hbm [shape: f32[1,128], index: 11, kind: input, shape index: {}]
  %s12 = inlined_call_operand.hbm [shape: f32[1,128], index: 12, kind: input, shape index: {}]
  %s13 = inlined_call_operand.hbm [shape: f32[1,128], index: 13, kind: input, shape index: {}]
  %s14 = inlined_call_operand.vmem [shape: bf16[2,8,128], index: 14, kind: output, shape index: {}]
  %s15 = sld [smem:[#allocation0]]
  $region125: #{bert_encoder_forward.4} parent=0
    _
  %s17 = ssub.s32 1, %s15
  %s18 = scalar_select 0, %s17, %s15
  $region1: #{bert_encoder_forward.4} parent=0
    #allocation2 [shape = 'u8[32768]{0}', space=vmem, size = 0x8000, scoped, tag = 'input window, operand 4, single buffered']
    #allocation3 [shape = 's32[2]{0}', space=sflag, size = 0x8, scoped, tag = 'scoped memory for bert_encoder_forward.4']
    #allocation4 [shape = 'u8[512]{0}', space=vmem, size = 0x400, scoped, tag = 'input window, operand 5, single buffered']
    #allocation5 [shape = 's32[1]{0}', space=sflag, size = 0x4, scoped, tag = 'scoped memory for bert_encoder_forward.4']
    #allocation6 [shape = 'u8[512]{0}', space=vmem, size = 0x400, scoped, tag = 'input window, operand 6, single buffered']
    #allocation7 [shape = 'u8[512]{0}', space=vmem, size = 0x400, scoped, tag = 'input window, operand 7, single buffered']
    #allocation8 [shape = 's32[1]{0}', space=sflag, size = 0x4, scoped, tag = 'scoped memory for bert_encoder_forward.4']
    #allocation9 [shape = 'u8[1024]{0}', space=vmem, size = 0x400, scoped, tag = 'input window, operand 9, single buffered']
    #allocation10 [shape = 'u8[65536]{0}', space=vmem, size = 0x10000, scoped, tag = 'input window, operand 10, single buffered']
    #allocation11 [shape = 's32[1]{0}', space=sflag, size = 0x4, scoped, tag = 'scoped memory for bert_encoder_forward.4']
    #allocation12 [shape = 'u8[512]{0}', space=vmem, size = 0x400, scoped, tag = 'input window, operand 11, single buffered']
    #allocation13 [shape = 'u8[512]{0}', space=vmem, size = 0x400, scoped, tag = 'input window, operand 12, single buffered']
    #allocation14 [shape = 's32[1]{0}', space=sflag, size = 0x4, scoped, tag = 'scoped memory for bert_encoder_forward.4']
    #allocation15 [shape = 'u8[512]{0}', space=vmem, size = 0x400, scoped, tag = 'input window, operand 13, single buffered']
    %19 = vsyncpa [#allocation3], 0
    %20 = vsyncpa [#allocation5], 0
    %21 = vsyncpa [#allocation8], 0
    %22 = vsyncpa [#allocation11], 0
    %23 = vsyncpa [#allocation14], 0
    loop: start=0, step=1, limit=4
    $region2: #{bert_encoder_forward.4} parent=1 // loop_pre_header
      _
    $region3: #{bert_encoder_forward.4} parent=1 // loop_header
      %s25 = sphi 0, %s29
      %p26 = scmp.ge.s32.totalorder %s25, 4
      %s35 = sphi 0, %s37
      %s38 = sphi 0, %s35
      %s39 = sphi 0, %s38
      %s55 = sphi 0, %s39
      %s61 = sphi 0, %s63
      %s64 = sphi 0, %s61
      %s65 = sphi 0, %s64
      %s81 = sphi 0, %s65
      %s85 = sphi 0, %s85
      %s87 = sphi 0, %s85
      %s88 = sphi 0, %s87
      %s102 = sphi 0, %s88
      %s106 = sphi 0, %s106
      %s108 = sphi 0, %s106
      %s109 = sphi 0, %s108
      %s123 = sphi 0, %s109
      %s127 = sphi 0, %s127
      %s129 = sphi 0, %s127
      %s130 = sphi 0, %s129
      %s144 = sphi 0, %s130
      %s148 = sphi 0, %s148
      %s150 = sphi 0, %s148
      %s151 = sphi 0, %s150
      %s165 = sphi 0, %s151
      %s169 = sphi 0, %s169
      %s171 = sphi 0, %s169
      %s172 = sphi 0, %s171
      %s186 = sphi 0, %s172
      %s190 = sphi 0, %s190
      %s192 = sphi 0, %s190
      %s193 = sphi 0, %s192
      %s207 = sphi 0, %s193
      %s211 = sphi 0, %s211
      %s213 = sphi 0, %s211
      %s214 = sphi 0, %s213
      %s228 = sphi 0, %s214
      %s232 = sphi 0, %s232
      %s234 = sphi 0, %s232
      %s235 = sphi 0, %s234
      %s249 = sphi 0, %s235
      %s253 = sphi 0, %s253
      %s255 = sphi 0, %s253
      %s256 = sphi 0, %s255
      %s270 = sphi 0, %s256
      %s274 = sphi 0, %s274
      %s276 = sphi 0, %s274
      %s277 = sphi 0, %s276
      %s291 = sphi 0, %s277
      %s295 = sphi 0, %s295
      %s297 = sphi 0, %s295
      %s298 = sphi 0, %s297
      %s312 = sphi 0, %s298
      %s316 = sphi 0, %s316
      %s318 = sphi 0, %s316
      %s319 = sphi 0, %s318
      %s333 = sphi 0, %s319
      %s339 = sphi 0, %s341
      %s342 = sphi 0, %s339
      %s343 = sphi 0, %s342
      %s359 = sphi 0, %s343
    $region4: #{bert_encoder_forward.4} parent=1 // loop_header_branch
      %28 = sbr.rel (%p26) target = $region8
    $region5: #{bert_encoder_forward.4} parent=1 // loop_body
      %s30 = ssub.s32 %s25, 1
      %s31 = ssub.s32 %s25, 2
      %s32 = sadd.s32 %s25, 1
      %s33 = ssub.s32 %s25, %s32
      %p34 = scmp.eq.s32.totalorder %s33, 0
      %s36 = sadd.s32 %s35, 1
      %s37 = scalar_select %p34, %s35, %s36
      %p40 = pneg %p34
      %p41 = scmp.eq.s32.totalorder %s25, 1
      %p42 = por %p40, %p41
      %p43 = scmp.ne.s32.totalorder %s35, %s38
      %p44 = scmp.eq.s32.totalorder %s25, 0
      %p45 = por %p43, %p44
      %p46 = scmp.ne.s32.totalorder %s35, %s38
      %p47 = scmp.eq.s32.totalorder %s30, 1
      %p48 = por %p46, %p47
      %p49 = scmp.ne.s32.totalorder %s38, %s39
      %p50 = scmp.eq.s32.totalorder %s30, 0
      %p51 = por %p49, %p50
      %p52 = scmp.ne.s32.totalorder %s38, %s39
      %p53 = scmp.eq.s32.totalorder %s31, 1
      %p54 = por %p52, %p53
      %p56 = scmp.ne.s32.totalorder %s39, %s55
      %p57 = scmp.eq.s32.totalorder %s31, 0
      %p58 = por %p56, %p57
      %s59 = ssub.s32 %s25, %s32
      %p60 = scmp.eq.s32.totalorder %s59, 0
      %s62 = sadd.s32 %s61, 1
      %s63 = scalar_select %p60, %s61, %s62
      %p66 = pneg %p60
      %p67 = scmp.eq.s32.totalorder %s25, 1
      %p68 = por %p66, %p67
      %p69 = scmp.ne.s32.totalorder %s61, %s64
      %p70 = scmp.eq.s32.totalorder %s25, 0
      %p71 = por %p69, %p70
      %p72 = scmp.ne.s32.totalorder %s61, %s64
      %p73 = scmp.eq.s32.totalorder %s30, 1
      %p74 = por %p72, %p73
      %p75 = scmp.ne.s32.totalorder %s64, %s65
      %p76 = scmp.eq.s32.totalorder %s30, 0
      %p77 = por %p75, %p76
      %p78 = scmp.ne.s32.totalorder %s64, %s65
      %p79 = scmp.eq.s32.totalorder %s31, 1
      %p80 = por %p78, %p79
      %p82 = scmp.ne.s32.totalorder %s65, %s81
      %p83 = scmp.eq.s32.totalorder %s31, 0
      %p84 = por %p82, %p83
      %s86 = sadd.s32 %s85, 1
      %p89 = scmp.eq.s32.totalorder %s25, 1
      %p90 = scmp.ne.s32.totalorder %s85, %s87
      %p91 = scmp.eq.s32.totalorder %s25, 0
      %p92 = por %p90, %p91
      %p93 = scmp.ne.s32.totalorder %s85, %s87
      %p94 = scmp.eq.s32.totalorder %s30, 1
      %p95 = por %p93, %p94
      %p96 = scmp.ne.s32.totalorder %s87, %s88
      %p97 = scmp.eq.s32.totalorder %s30, 0
      %p98 = por %p96, %p97
      %p99 = scmp.ne.s32.totalorder %s87, %s88
      %p100 = scmp.eq.s32.totalorder %s31, 1
      %p101 = por %p99, %p100
      %p103 = scmp.ne.s32.totalorder %s88, %s102
      %p104 = scmp.eq.s32.totalorder %s31, 0
      %p105 = por %p103, %p104
      %s107 = sadd.s32 %s106, 1
      %p110 = scmp.eq.s32.totalorder %s25, 1
      %p111 = scmp.ne.s32.totalorder %s106, %s108
      %p112 = scmp.eq.s32.totalorder %s25, 0
      %p113 = por %p111, %p112
      %p114 = scmp.ne.s32.totalorder %s106, %s108
      %p115 = scmp.eq.s32.totalorder %s30, 1
      %p116 = por %p114, %p115
      %p117 = scmp.ne.s32.totalorder %s108, %s109
      %p118 = scmp.eq.s32.totalorder %s30, 0
      %p119 = por %p117, %p118
      %p120 = scmp.ne.s32.totalorder %s108, %s109
      %p121 = scmp.eq.s32.totalorder %s31, 1
      %p122 = por %p120, %p121
      %p124 = scmp.ne.s32.totalorder %s109, %s123
      %p125 = scmp.eq.s32.totalorder %s31, 0
      %p126 = por %p124, %p125
      %s128 = sadd.s32 %s127, 1
      %p131 = scmp.eq.s32.totalorder %s25, 1
      %p132 = scmp.ne.s32.totalorder %s127, %s129
      %p133 = scmp.eq.s32.totalorder %s25, 0
      %p134 = por %p132, %p133
      %p135 = scmp.ne.s32.totalorder %s127, %s129
      %p136 = scmp.eq.s32.totalorder %s30, 1
      %p137 = por %p135, %p136
      %p138 = scmp.ne.s32.totalorder %s129, %s130
      %p139 = scmp.eq.s32.totalorder %s30, 0
      %p140 = por %p138, %p139
      %p141 = scmp.ne.s32.totalorder %s129, %s130
      %p142 = scmp.eq.s32.totalorder %s31, 1
      %p143 = por %p141, %p142
      %p145 = scmp.ne.s32.totalorder %s130, %s144
      %p146 = scmp.eq.s32.totalorder %s31, 0
      %p147 = por %p145, %p146
      %s149 = sadd.s32 %s148, 1
      %p152 = scmp.eq.s32.totalorder %s25, 1
      %p153 = scmp.ne.s32.totalorder %s148, %s150
      %p154 = scmp.eq.s32.totalorder %s25, 0
      %p155 = por %p153, %p154
      %p156 = scmp.ne.s32.totalorder %s148, %s150
      %p157 = scmp.eq.s32.totalorder %s30, 1
      %p158 = por %p156, %p157
      %p159 = scmp.ne.s32.totalorder %s150, %s151
      %p160 = scmp.eq.s32.totalorder %s30, 0
      %p161 = por %p159, %p160
      %p162 = scmp.ne.s32.totalorder %s150, %s151
      %p163 = scmp.eq.s32.totalorder %s31, 1
      %p164 = por %p162, %p163
      %p166 = scmp.ne.s32.totalorder %s151, %s165
      %p167 = scmp.eq.s32.totalorder %s31, 0
      %p168 = por %p166, %p167
      %s170 = sadd.s32 %s169, 1
      %p173 = scmp.eq.s32.totalorder %s25, 1
      %p174 = scmp.ne.s32.totalorder %s169, %s171
      %p175 = scmp.eq.s32.totalorder %s25, 0
      %p176 = por %p174, %p175
      %p177 = scmp.ne.s32.totalorder %s169, %s171
      %p178 = scmp.eq.s32.totalorder %s30, 1
      %p179 = por %p177, %p178
      %p180 = scmp.ne.s32.totalorder %s171, %s172
      %p181 = scmp.eq.s32.totalorder %s30, 0
      %p182 = por %p180, %p181
      %p183 = scmp.ne.s32.totalorder %s171, %s172
      %p184 = scmp.eq.s32.totalorder %s31, 1
      %p185 = por %p183, %p184
      %p187 = scmp.ne.s32.totalorder %s172, %s186
      %p188 = scmp.eq.s32.totalorder %s31, 0
      %p189 = por %p187, %p188
      %s191 = sadd.s32 %s190, 1
      %p194 = scmp.eq.s32.totalorder %s25, 1
      %p195 = scmp.ne.s32.totalorder %s190, %s192
      %p196 = scmp.eq.s32.totalorder %s25, 0
      %p197 = por %p195, %p196
      %p198 = scmp.ne.s32.totalorder %s190, %s192
      %p199 = scmp.eq.s32.totalorder %s30, 1
      %p200 = por %p198, %p199
      %p201 = scmp.ne.s32.totalorder %s192, %s193
      %p202 = scmp.eq.s32.totalorder %s30, 0
      %p203 = por %p201, %p202
      %p204 = scmp.ne.s32.totalorder %s192, %s193
      %p205 = scmp.eq.s32.totalorder %s31, 1
      %p206 = por %p204, %p205
      %p208 = scmp.ne.s32.totalorder %s193, %s207
      %p209 = scmp.eq.s32.totalorder %s31, 0
      %p210 = por %p208, %p209
      %s212 = sadd.s32 %s211, 1
      %p215 = scmp.eq.s32.totalorder %s25, 1
      %p216 = scmp.ne.s32.totalorder %s211, %s213
      %p217 = scmp.eq.s32.totalorder %s25, 0
      %p218 = por %p216, %p217
      %p219 = scmp.ne.s32.totalorder %s211, %s213
      %p220 = scmp.eq.s32.totalorder %s30, 1
      %p221 = por %p219, %p220
      %p222 = scmp.ne.s32.totalorder %s213, %s214
      %p223 = scmp.eq.s32.totalorder %s30, 0
      %p224 = por %p222, %p223
      %p225 = scmp.ne.s32.totalorder %s213, %s214
      %p226 = scmp.eq.s32.totalorder %s31, 1
      %p227 = por %p225, %p226
      %p229 = scmp.ne.s32.totalorder %s214, %s228
      %p230 = scmp.eq.s32.totalorder %s31, 0
      %p231 = por %p229, %p230
      %s233 = sadd.s32 %s232, 1
      %p236 = scmp.eq.s32.totalorder %s25, 1
      %p237 = scmp.ne.s32.totalorder %s232, %s234
      %p238 = scmp.eq.s32.totalorder %s25, 0
      %p239 = por %p237, %p238
      %p240 = scmp.ne.s32.totalorder %s232, %s234
      %p241 = scmp.eq.s32.totalorder %s30, 1
      %p242 = por %p240, %p241
      %p243 = scmp.ne.s32.totalorder %s234, %s235
      %p244 = scmp.eq.s32.totalorder %s30, 0
      %p245 = por %p243, %p244
      %p246 = scmp.ne.s32.totalorder %s234, %s235
      %p247 = scmp.eq.s32.totalorder %s31, 1
      %p248 = por %p246, %p247
      %p250 = scmp.ne.s32.totalorder %s235, %s249
      %p251 = scmp.eq.s32.totalorder %s31, 0
      %p252 = por %p250, %p251
      %s254 = sadd.s32 %s253, 1
      %p257 = scmp.eq.s32.totalorder %s25, 1
      %p258 = scmp.ne.s32.totalorder %s253, %s255
      %p259 = scmp.eq.s32.totalorder %s25, 0
      %p260 = por %p258, %p259
      %p261 = scmp.ne.s32.totalorder %s253, %s255
      %p262 = scmp.eq.s32.totalorder %s30, 1
      %p263 = por %p261, %p262
      %p264 = scmp.ne.s32.totalorder %s255, %s256
      %p265 = scmp.eq.s32.totalorder %s30, 0
      %p266 = por %p264, %p265
      %p267 = scmp.ne.s32.totalorder %s255, %s256
      %p268 = scmp.eq.s32.totalorder %s31, 1
      %p269 = por %p267, %p268
      %p271 = scmp.ne.s32.totalorder %s256, %s270
      %p272 = scmp.eq.s32.totalorder %s31, 0
      %p273 = por %p271, %p272
      %s275 = sadd.s32 %s274, 1
      %p278 = scmp.eq.s32.totalorder %s25, 1
      %p279 = scmp.ne.s32.totalorder %s274, %s276
      %p280 = scmp.eq.s32.totalorder %s25, 0
      %p281 = por %p279, %p280
      %p282 = scmp.ne.s32.totalorder %s274, %s276
      %p283 = scmp.eq.s32.totalorder %s30, 1
      %p284 = por %p282, %p283
      %p285 = scmp.ne.s32.totalorder %s276, %s277
      %p286 = scmp.eq.s32.totalorder %s30, 0
      %p287 = por %p285, %p286
      %p288 = scmp.ne.s32.totalorder %s276, %s277
      %p289 = scmp.eq.s32.totalorder %s31, 1
      %p290 = por %p288, %p289
      %p292 = scmp.ne.s32.totalorder %s277, %s291
      %p293 = scmp.eq.s32.totalorder %s31, 0
      %p294 = por %p292, %p293
      %s296 = sadd.s32 %s295, 1
      %p299 = scmp.eq.s32.totalorder %s25, 1
      %p300 = scmp.ne.s32.totalorder %s295, %s297
      %p301 = scmp.eq.s32.totalorder %s25, 0
      %p302 = por %p300, %p301
      %p303 = scmp.ne.s32.totalorder %s295, %s297
      %p304 = scmp.eq.s32.totalorder %s30, 1
      %p305 = por %p303, %p304
      %p306 = scmp.ne.s32.totalorder %s297, %s298
      %p307 = scmp.eq.s32.totalorder %s30, 0
      %p308 = por %p306, %p307
      %p309 = scmp.ne.s32.totalorder %s297, %s298
      %p310 = scmp.eq.s32.totalorder %s31, 1
      %p311 = por %p309, %p310
      %p313 = scmp.ne.s32.totalorder %s298, %s312
      %p314 = scmp.eq.s32.totalorder %s31, 0
      %p315 = por %p313, %p314
      %s317 = sadd.s32 %s316, 1
      %p320 = scmp.eq.s32.totalorder %s25, 1
      %p321 = scmp.ne.s32.totalorder %s316, %s318
      %p322 = scmp.eq.s32.totalorder %s25, 0
      %p323 = por %p321, %p322
      %p324 = scmp.ne.s32.totalorder %s316, %s318
      %p325 = scmp.eq.s32.totalorder %s30, 1
      %p326 = por %p324, %p325
      %p327 = scmp.ne.s32.totalorder %s318, %s319
      %p328 = scmp.eq.s32.totalorder %s30, 0
      %p329 = por %p327, %p328
      %p330 = scmp.ne.s32.totalorder %s318, %s319
      %p331 = scmp.eq.s32.totalorder %s31, 1
      %p332 = por %p330, %p331
      %p334 = scmp.ne.s32.totalorder %s319, %s333
      %p335 = scmp.eq.s32.totalorder %s31, 0
      %p336 = por %p334, %p335
      %s337 = ssub.s32 %s25, %s32
      %p338 = scmp.eq.s32.totalorder %s337, 0
      %s340 = sadd.s32 %s339, 1
      %s341 = scalar_select %p338, %s339, %s340
      %p344 = pneg %p338
      %p345 = scmp.eq.s32.totalorder %s25, 1
      %p346 = por %p344, %p345
      %p347 = scmp.ne.s32.totalorder %s339, %s342
      %p348 = scmp.eq.s32.totalorder %s25, 0
      %p349 = por %p347, %p348
      %p350 = scmp.ne.s32.totalorder %s339, %s342
      %p351 = scmp.eq.s32.totalorder %s30, 1
      %p352 = por %p350, %p351
      %p353 = scmp.ne.s32.totalorder %s342, %s343
      %p354 = scmp.eq.s32.totalorder %s30, 0
      %p355 = por %p353, %p354
      %p356 = scmp.ne.s32.totalorder %s342, %s343
      %p357 = scmp.eq.s32.totalorder %s31, 1
      %p358 = por %p356, %p357
      %p360 = scmp.ne.s32.totalorder %s343, %s359
      %p361 = scmp.eq.s32.totalorder %s31, 0
      %p362 = por %p360, %p361
      %p363 = scmp.le.s32.totalorder 1, %s25
      %p364 = scmp.lt.s32.totalorder %s25, 3
      %p365 = pnand %p363, %p364
      %p366 = pneg %p365
      // Predicated region
      $region9: #{bert_encoder_forward.4} parent=5 // pred_check
        _
      $region10: #{bert_encoder_forward.4} parent=5 // pred_check_branch
        %368 = sbr.rel (%p365) target = $region12
      $region11: #{bert_encoder_forward.4} parent=5 // pred_region
        %s369 = ssub.s32 %s25, 1
        // Predicated region
        $region13: #{bert_encoder_forward.4} parent=11 // pred_check
          %p370 = pneg %p98
        $region14: #{bert_encoder_forward.4} parent=11 // pred_check_branch
          %372 = sbr.rel (%p370) target = $region16
        $region15: #{bert_encoder_forward.4} parent=11 // pred_region
          _
        $region16: #{bert_encoder_forward.4} parent=11 // pred_fallthru
          _
        // Predicated region
        $region17: #{bert_encoder_forward.4} parent=11 // pred_check
          %p373 = pneg %p119
        $region18: #{bert_encoder_forward.4} parent=11 // pred_check_branch
          %375 = sbr.rel (%p373) target = $region20
        $region19: #{bert_encoder_forward.4} parent=11 // pred_region
          _
        $region20: #{bert_encoder_forward.4} parent=11 // pred_fallthru
          _
        // Predicated region
        $region21: #{bert_encoder_forward.4} parent=11 // pred_check
          %p376 = pneg %p140
        $region22: #{bert_encoder_forward.4} parent=11 // pred_check_branch
          %378 = sbr.rel (%p376) target = $region24
        $region23: #{bert_encoder_forward.4} parent=11 // pred_region
          %380 = vsyncadd [#allocation3], 0
          %s381 = sshll.u32 %s4, 4
          %s382 = int_to_ptr.hbm [resolvable:$true] %s381
          %s383 = sshll.u32 [#allocation2], 4
          %s384 = int_to_ptr.vmem [resolvable:$true] %s383
          %389 = dma.hbm_to_vmem [thread:$0]  %s382, 1024, %s384, [#allocation3], 64, 64, 4
        $region24: #{bert_encoder_forward.4} parent=11 // pred_fallthru
          _
        // Predicated region
        $region25: #{bert_encoder_forward.4} parent=11 // pred_check
          %p390 = pneg %p161
        $region26: #{bert_encoder_forward.4} parent=11 // pred_check_branch
          %392 = sbr.rel (%p390) target = $region28
        $region27: #{bert_encoder_forward.4} parent=11 // pred_region
          %394 = vsyncadd [#allocation5], 0
          %s396 = sshll.u32 %s5, 4
          %s397 = int_to_ptr.hbm [resolvable:$true] %s396
          %s398 = sshll.u32 [#allocation4], 4
          %s399 = int_to_ptr.vmem [resolvable:$true] %s398
          %401 = dma.hbm_to_vmem [thread:$0]  %s397, 16, %s399, [#allocation5]
        $region28: #{bert_encoder_forward.4} parent=11 // pred_fallthru
          _
        // Predicated region
        $region29: #{bert_encoder_forward.4} parent=11 // pred_check
          %p402 = pneg %p182
        $region30: #{bert_encoder_forward.4} parent=11 // pred_check_branch
          %404 = sbr.rel (%p402) target = $region32
        $region31: #{bert_encoder_forward.4} parent=11 // pred_region
          %406 = vsyncadd [#allocation5], 0
          %s408 = sshll.u32 %s6, 4
          %s409 = int_to_ptr.hbm [resolvable:$true] %s408
          %s410 = sshll.u32 [#allocation6], 4
          %s411 = int_to_ptr.vmem [resolvable:$true] %s410
          %413 = dma.hbm_to_vmem [thread:$0]  %s409, 16, %s411, [#allocation5]
        $region32: #{bert_encoder_forward.4} parent=11 // pred_fallthru
          _
        // Predicated region
        $region33: #{bert_encoder_forward.4} parent=11 // pred_check
          %p414 = pneg %p203
        $region34: #{bert_encoder_forward.4} parent=11 // pred_check_branch
          %416 = sbr.rel (%p414) target = $region36
        $region35: #{bert_encoder_forward.4} parent=11 // pred_region
          %418 = vsyncadd [#allocation8], 0
          %s420 = sshll.u32 %s7, 4
          %s421 = int_to_ptr.hbm [resolvable:$true] %s420
          %s422 = sshll.u32 [#allocation7], 4
          %s423 = int_to_ptr.vmem [resolvable:$true] %s422
          %425 = dma.hbm_to_vmem [thread:$0]  %s421, 16, %s423, [#allocation8]
        $region36: #{bert_encoder_forward.4} parent=11 // pred_fallthru
          _
        // Predicated region
        $region37: #{bert_encoder_forward.4} parent=11 // pred_check
          %p426 = pneg %p224
        $region38: #{bert_encoder_forward.4} parent=11 // pred_check_branch
          %428 = sbr.rel (%p426) target = $region40
        $region39: #{bert_encoder_forward.4} parent=11 // pred_region
          _
        $region40: #{bert_encoder_forward.4} parent=11 // pred_fallthru
          _
        // Predicated region
        $region41: #{bert_encoder_forward.4} parent=11 // pred_check
          %p429 = pneg %p245
        $region42: #{bert_encoder_forward.4} parent=11 // pred_check_branch
          %431 = sbr.rel (%p429) target = $region44
        $region43: #{bert_encoder_forward.4} parent=11 // pred_region
          %433 = vsyncadd [#allocation8], 0
          %s435 = sshll.u32 %s9, 4
          %s436 = int_to_ptr.hbm [resolvable:$true] %s435
          %s437 = sshll.u32 [#allocation9], 4
          %s438 = int_to_ptr.vmem [resolvable:$true] %s437
          %440 = dma.hbm_to_vmem [thread:$0]  %s436, 32, %s438, [#allocation8]
        $region44: #{bert_encoder_forward.4} parent=11 // pred_fallthru
          _
        // Predicated region
        $region45: #{bert_encoder_forward.4} parent=11 // pred_check
          %p441 = pneg %p266
        $region46: #{bert_encoder_forward.4} parent=11 // pred_check_branch
          %443 = sbr.rel (%p441) target = $region48
        $region47: #{bert_encoder_forward.4} parent=11 // pred_region
          %445 = vsyncadd [#allocation11], 0
          %s446 = sshll.u32 %s10, 4
          %s447 = int_to_ptr.hbm [resolvable:$true] %s446
          %s448 = sshll.u32 [#allocation10], 4
          %s449 = int_to_ptr.vmem [resolvable:$true] %s448
          %454 = dma.hbm_to_vmem [thread:$0]  %s447, 2048, %s449, [#allocation11], 64, 64, 4
        $region48: #{bert_encoder_forward.4} parent=11 // pred_fallthru
          _
        // Predicated region
        $region49: #{bert_encoder_forward.4} parent=11 // pred_check
          %p455 = pneg %p287
        $region50: #{bert_encoder_forward.4} parent=11 // pred_check_branch
          %457 = sbr.rel (%p455) target = $region52
        $region51: #{bert_encoder_forward.4} parent=11 // pred_region
          %459 = vsyncadd [#allocation11], 0
          %s461 = sshll.u32 %s11, 4
          %s462 = int_to_ptr.hbm [resolvable:$true] %s461
          %s463 = sshll.u32 [#allocation12], 4
          %s464 = int_to_ptr.vmem [resolvable:$true] %s463
          %466 = dma.hbm_to_vmem [thread:$0]  %s462, 16, %s464, [#allocation11]
        $region52: #{bert_encoder_forward.4} parent=11 // pred_fallthru
          _
        // Predicated region
        $region53: #{bert_encoder_forward.4} parent=11 // pred_check
          %p467 = pneg %p308
        $region54: #{bert_encoder_forward.4} parent=11 // pred_check_branch
          %469 = sbr.rel (%p467) target = $region56
        $region55: #{bert_encoder_forward.4} parent=11 // pred_region
          %471 = vsyncadd [#allocation14], 0
          %s473 = sshll.u32 %s12, 4
          %s474 = int_to_ptr.hbm [resolvable:$true] %s473
          %s475 = sshll.u32 [#allocation13], 4
          %s476 = int_to_ptr.vmem [resolvable:$true] %s475
          %478 = dma.hbm_to_vmem [thread:$0]  %s474, 16, %s476, [#allocation14]
        $region56: #{bert_encoder_forward.4} parent=11 // pred_fallthru
          _
        // Predicated region
        $region57: #{bert_encoder_forward.4} parent=11 // pred_check
          %p479 = pneg %p329
        $region58: #{bert_encoder_forward.4} parent=11 // pred_check_branch
          %481 = sbr.rel (%p479) target = $region60
        $region59: #{bert_encoder_forward.4} parent=11 // pred_region
          %483 = vsyncadd [#allocation14], 0
          %s485 = sshll.u32 %s13, 4
          %s486 = int_to_ptr.hbm [resolvable:$true] %s485
          %s487 = sshll.u32 [#allocation15], 4
          %s488 = int_to_ptr.vmem [resolvable:$true] %s487
          %490 = dma.hbm_to_vmem [thread:$0]  %s486, 16, %s488, [#allocation14]
        $region60: #{bert_encoder_forward.4} parent=11 // pred_fallthru
          _
      $region12: #{bert_encoder_forward.4} parent=5 // pred_fallthru
        _
      %p491 = scmp.lt.s32.totalorder %s25, 2
      // Predicated region
      $region61: #{bert_encoder_forward.4} parent=5 // pred_check
        %p492 = pneg %p491
      $region62: #{bert_encoder_forward.4} parent=5 // pred_check_branch
        %494 = sbr.rel (%p492) target = $region64
      $region63: #{bert_encoder_forward.4} parent=5 // pred_region
        // Predicated region
        $region65: #{bert_encoder_forward.4} parent=63 // pred_check
          %p495 = pneg %p45
        $region66: #{bert_encoder_forward.4} parent=63 // pred_check_branch
          %497 = sbr.rel (%p495) target = $region68
        $region67: #{bert_encoder_forward.4} parent=63 // pred_region
          %p498 = scmp.lt.s32.totalorder %s25, 1
          %s499 = scalar_select %p498, %s25, 1
          %s500 = smul.addr %s499, 4
          %s501 = scalar_lea.vmem %s0, %s500
        $region68: #{bert_encoder_forward.4} parent=63 // pred_fallthru
          _
        // Predicated region
        $region69: #{bert_encoder_forward.4} parent=63 // pred_check
          %p502 = pneg %p71
        $region70: #{bert_encoder_forward.4} parent=63 // pred_check_branch
          %504 = sbr.rel (%p502) target = $region72
        $region71: #{bert_encoder_forward.4} parent=63 // pred_region
          %p505 = scmp.lt.s32.totalorder %s25, 1
          %s506 = scalar_select %p505, %s25, 1
          %s507 = scalar_lea.vmem %s1, %s506
        $region72: #{bert_encoder_forward.4} parent=63 // pred_fallthru
          _
      $region64: #{bert_encoder_forward.4} parent=5 // pred_fallthru
        _
      %p508 = scmp.le.s32.totalorder 1, %s25
      %p509 = scmp.lt.s32.totalorder %s25, 3
      %p510 = pnand %p508, %p509
      %p511 = pneg %p510
      // Predicated region
      $region73: #{bert_encoder_forward.4} parent=5 // pred_check
        _
      $region74: #{bert_encoder_forward.4} parent=5 // pred_check_branch
        %513 = sbr.rel (%p510) target = $region76
      $region75: #{bert_encoder_forward.4} parent=5 // pred_region
        %s514 = ssub.s32 %s25, 1
        // Predicated region
        $region77: #{bert_encoder_forward.4} parent=75 // pred_check
          %p515 = pneg %p140
        $region78: #{bert_encoder_forward.4} parent=75 // pred_check_branch
          %517 = sbr.rel (%p515) target = $region80
        $region79: #{bert_encoder_forward.4} parent=75 // pred_region
          %519 = dma.done [#allocation3], 1024
        $region80: #{bert_encoder_forward.4} parent=75 // pred_fallthru
          _
        // Predicated region
        $region81: #{bert_encoder_forward.4} parent=75 // pred_check
          %p520 = pneg %p161
        $region82: #{bert_encoder_forward.4} parent=75 // pred_check_branch
          %522 = sbr.rel (%p520) target = $region84
        $region83: #{bert_encoder_forward.4} parent=75 // pred_region
          %524 = dma.done [#allocation5], 16
        $region84: #{bert_encoder_forward.4} parent=75 // pred_fallthru
          _
        // Predicated region
        $region85: #{bert_encoder_forward.4} parent=75 // pred_check
          %p525 = pneg %p182
        $region86: #{bert_encoder_forward.4} parent=75 // pred_check_branch
          %527 = sbr.rel (%p525) target = $region88
        $region87: #{bert_encoder_forward.4} parent=75 // pred_region
          %529 = dma.done [#allocation5], 16
        $region88: #{bert_encoder_forward.4} parent=75 // pred_fallthru
          _
        // Predicated region
        $region89: #{bert_encoder_forward.4} parent=75 // pred_check
          %p530 = pneg %p203
        $region90: #{bert_encoder_forward.4} parent=75 // pred_check_branch
          %532 = sbr.rel (%p530) target = $region92
        $region91: #{bert_encoder_forward.4} parent=75 // pred_region
          %534 = dma.done [#allocation8], 16
        $region92: #{bert_encoder_forward.4} parent=75 // pred_fallthru
          _
        // Predicated region
        $region93: #{bert_encoder_forward.4} parent=75 // pred_check
          %p535 = pneg %p245
        $region94: #{bert_encoder_forward.4} parent=75 // pred_check_branch
          %537 = sbr.rel (%p535) target = $region96
        $region95: #{bert_encoder_forward.4} parent=75 // pred_region
          %539 = dma.done [#allocation8], 32
        $region96: #{bert_encoder_forward.4} parent=75 // pred_fallthru
          _
        // Predicated region
        $region97: #{bert_encoder_forward.4} parent=75 // pred_check
          %p540 = pneg %p266
        $region98: #{bert_encoder_forward.4} parent=75 // pred_check_branch
          %542 = sbr.rel (%p540) target = $region100
        $region99: #{bert_encoder_forward.4} parent=75 // pred_region
          %544 = dma.done [#allocation11], 2048
        $region100: #{bert_encoder_forward.4} parent=75 // pred_fallthru
          _
        // Predicated region
        $region101: #{bert_encoder_forward.4} parent=75 // pred_check
          %p545 = pneg %p287
        $region102: #{bert_encoder_forward.4} parent=75 // pred_check_branch
          %547 = sbr.rel (%p545) target = $region104
        $region103: #{bert_encoder_forward.4} parent=75 // pred_region
          %549 = dma.done [#allocation11], 16
        $region104: #{bert_encoder_forward.4} parent=75 // pred_fallthru
          _
        // Predicated region
        $region105: #{bert_encoder_forward.4} parent=75 // pred_check
          %p550 = pneg %p308
        $region106: #{bert_encoder_forward.4} parent=75 // pred_check_branch
          %552 = sbr.rel (%p550) target = $region108
        $region107: #{bert_encoder_forward.4} parent=75 // pred_region
          %554 = dma.done [#allocation14], 16
        $region108: #{bert_encoder_forward.4} parent=75 // pred_fallthru
          _
        // Predicated region
        $region109: #{bert_encoder_forward.4} parent=75 // pred_check
          %p555 = pneg %p329
        $region110: #{bert_encoder_forward.4} parent=75 // pred_check_branch
          %557 = sbr.rel (%p555) target = $region112
        $region111: #{bert_encoder_forward.4} parent=75 // pred_region
          %559 = dma.done [#allocation14], 16
        $region112: #{bert_encoder_forward.4} parent=75 // pred_fallthru
          _
        %p560 = scmp.lt.s32.totalorder %s30, 1
        %s561 = scalar_select %p560, %s30, 1
        %s562 = smul.addr %s561, 4
        %s563 = scalar_lea.vmem %s0, %s562
        %p564 = pneg %p51
        %p565 = pneg %p48
        %p566 = scmp.lt.s32.totalorder %s30, 1
        %s567 = scalar_select %p566, %s30, 1
        %s568 = scalar_lea.vmem %s1, %s567
        %p569 = pneg %p77
        %p570 = pneg %p74
        %p571 = pneg %p98
        %p572 = pneg %p95
        %p573 = pneg %p119
        %p574 = pneg %p116
        %p575 = pneg %p140
        %p576 = pneg %p137
        %p577 = pneg %p161
        %p578 = pneg %p158
        %p579 = pneg %p182
        %p580 = pneg %p179
        %p581 = pneg %p203
        %p582 = pneg %p200
        %p583 = pneg %p224
        %p584 = pneg %p221
        %p585 = pneg %p245
        %p586 = pneg %p242
        %p587 = pneg %p266
        %p588 = pneg %p263
        %p589 = pneg %p287
        %p590 = pneg %p284
        %p591 = pneg %p308
        %p592 = pneg %p305
        %p593 = pneg %p329
        %p594 = pneg %p326
        %p595 = pneg %p355
        %p596 = pneg %p352
        %p597 = scmp.lt.s32.totalorder %s30, 1
        %s598 = scalar_select %p597, %s30, 1
        %s599 = smul.addr %s598, 4
        %s600 = scalar_lea.vmem %s14, %s599
        %p601 = scmp.lt.s32.totalorder %s30, 1
        %s602 = scalar_select %p601, %s30, 1
        %s603 = smul.addr %s602, 4
        %s604 = scalar_lea.vmem %s0, %s603
        %p605 = scmp.lt.s32.totalorder %s30, 1
        %s606 = scalar_select %p605, %s30, 1
        %s607 = scalar_lea.vmem %s1, %s606
        %p608 = scmp.lt.s32.totalorder %s30, 1
        %s609 = scalar_select %p608, %s30, 1
        %s610 = smul.addr %s609, 4
        %s611 = scalar_lea.vmem %s14, %s610
        %v613 = vld [vmem:[%s604] sm:$0xf]
        %v614 = vunpack.c.l.bf16 %v613
        %v615 = vld [vmem:[%s607] sm:$0x1]
        %v616 = vld [vmem:[%s2] sm:$0xff]
        %v617 = vld [vmem:[%s2 + $0x8] sm:$0xf]
        %v618 = vld [vmem:[%s2 + $0xc] sm:$0xff]
        %v619 = vld [vmem:[%s2 + $0x14] sm:$0xf]
        %v620 = vld [vmem:[%s2 + $0x18] sm:$0xff]
        %v621 = vld [vmem:[%s2 + $0x20] sm:$0xf]
        %v622 = vld [vmem:[%s2 + $0x24] sm:$0xff]
        %v623 = vld [vmem:[%s2 + $0x2c] sm:$0xf]
        %v624 = vld [vmem:[%s2 + $0x30] sm:$0xff]
        %v625 = vld [vmem:[%s2 + $0x38] sm:$0xf]
        %v626 = vld [vmem:[%s2 + $0x3c] sm:$0xff]
        %v627 = vld [vmem:[%s2 + $0x44] sm:$0xf]
        %v628 = vld [vmem:[%s2 + $0x48] sm:$0xff]
        %v629 = vld [vmem:[%s2 + $0x50] sm:$0xf]
        %v630 = vld [vmem:[%s2 + $0x54] sm:$0xff]
        %v631 = vld [vmem:[%s2 + $0x5c] sm:$0xf]
        %v632 = vld [vmem:[%s2 + $0x60] sm:$0xff]
        %v633 = vld [vmem:[%s2 + $0x68] sm:$0xf]
        %v634 = vld [vmem:[%s2 + $0x6c] sm:$0xff]
        %v635 = vld [vmem:[%s2 + $0x74] sm:$0xf]
        %v636 = vld [vmem:[%s2 + $0x78] sm:$0xff]
        %v637 = vld [vmem:[%s2 + $0x80] sm:$0xf]
        %v638 = vld [vmem:[%s2 + $0x84] sm:$0xff]
        %v639 = vld [vmem:[%s2 + $0x8c] sm:$0xf]
        %v640 = vld [vmem:[%s2 + $0x90] sm:$0xff]
        %v641 = vld [vmem:[%s2 + $0x98] sm:$0xf]
        %v642 = vld [vmem:[%s2 + $0x9c] sm:$0xff]
        %v643 = vld [vmem:[%s2 + $0xa4] sm:$0xf]
        %v644 = vld [vmem:[%s2 + $0xa8] sm:$0xff]
        %v645 = vld [vmem:[%s2 + $0xb0] sm:$0xf]
        %v646 = vld [vmem:[%s2 + $0xb4] sm:$0xff]
        %v647 = vld [vmem:[%s2 + $0xbc] sm:$0xf]
        %v648 = vld [vmem:[%s3] sm:$0x7]
        %v650 = vperm.slane %v648, 0
        %v651 = vperm.slane %v648, 1
        %v652 = vperm.slane %v648, 2
        %v688 = vunpack.c.l.b16 %v616
        %v689 = vunpack.c.h.b16 %v616
        %v690 = vunpack.c.l.b16 %v617
        %v691 = vunpack.c.l.b16 %v618
        %v692 = vunpack.c.h.b16 %v618
        %v693 = vunpack.c.l.b16 %v619
        %v694 = vunpack.c.l.b16 %v620
        %v695 = vunpack.c.h.b16 %v620
        %v696 = vunpack.c.l.b16 %v621
        %v697 = vunpack.c.l.b16 %v622
        %v698 = vunpack.c.h.b16 %v622
        %v699 = vunpack.c.l.b16 %v623
        %v700 = vunpack.c.l.b16 %v624
        %v701 = vunpack.c.h.b16 %v624
        %v702 = vunpack.c.l.b16 %v625
        %v703 = vunpack.c.l.b16 %v626
        %v704 = vunpack.c.h.b16 %v626
        %v705 = vunpack.c.l.b16 %v627
        %v706 = vunpack.c.l.b16 %v628
        %v707 = vunpack.c.h.b16 %v628
        %v708 = vunpack.c.l.b16 %v629
        %v709 = vunpack.c.l.b16 %v630
        %v710 = vunpack.c.h.b16 %v630
        %v711 = vunpack.c.l.b16 %v631
        %v712 = vunpack.c.l.b16 %v632
        %v713 = vunpack.c.h.b16 %v632
        %v714 = vunpack.c.l.b16 %v633
        %v715 = vunpack.c.l.b16 %v634
        %v716 = vunpack.c.h.b16 %v634
        %v717 = vunpack.c.l.b16 %v635
        %v718 = vunpack.c.l.b16 %v636
        %v719 = vunpack.c.h.b16 %v636
        %v720 = vunpack.c.l.b16 %v637
        %v721 = vunpack.c.l.b16 %v638
        %v722 = vunpack.c.h.b16 %v638
        %v723 = vunpack.c.l.b16 %v639
        %v724 = vunpack.c.l.b16 %v640
        %v725 = vunpack.c.h.b16 %v640
        %v726 = vunpack.c.l.b16 %v641
        %v727 = vunpack.c.l.b16 %v642
        %v728 = vunpack.c.h.b16 %v642
        %v729 = vunpack.c.l.b16 %v643
        %v730 = vunpack.c.l.b16 %v644
        %v731 = vunpack.c.h.b16 %v644
        %v732 = vunpack.c.l.b16 %v645
        %v733 = vunpack.c.l.b16 %v646
        %v734 = vunpack.c.h.b16 %v646
        %v735 = vunpack.c.l.b16 %v647
        %v736 = vpack.c.b16 %v691, %v688
        %v737 = vpack.c.b16 %v692, %v689
        %v738 = vpack.c.b16 %v693, %v690
        %v739 = vpack.c.b16 %v697, %v694
        %v740 = vpack.c.b16 %v698, %v695
        %v741 = vpack.c.b16 %v699, %v696
        %v742 = vpack.c.b16 %v703, %v700
        %v743 = vpack.c.b16 %v704, %v701
        %v744 = vpack.c.b16 %v705, %v702
        %v745 = vpack.c.b16 %v709, %v706
        %v746 = vpack.c.b16 %v710, %v707
        %v747 = vpack.c.b16 %v711, %v708
        %v748 = vpack.c.b16 %v715, %v712
        %v749 = vpack.c.b16 %v716, %v713
        %v750 = vpack.c.b16 %v717, %v714
        %v751 = vpack.c.b16 %v721, %v718
        %v752 = vpack.c.b16 %v722, %v719
        %v753 = vpack.c.b16 %v723, %v720
        %v754 = vpack.c.b16 %v727, %v724
        %v755 = vpack.c.b16 %v728, %v725
        %v756 = vpack.c.b16 %v729, %v726
        %v757 = vpack.c.b16 %v733, %v730
        %v758 = vpack.c.b16 %v734, %v731
        %v759 = vpack.c.b16 %v735, %v732
        %784 = vmatpush.bf16.msra.mxu0 %v757
        %785 = vmatpush.bf16.msra.mxu0 %v754
        %786 = vmatpush.bf16.msra.mxu0 %v751
        %787 = vmatpush.bf16.msra.mxu0 %v748
        %788 = vmatpush.bf16.msra.mxu0 %v745
        %789 = vmatpush.bf16.msra.mxu0 %v742
        %790 = vmatpush.bf16.msra.mxu0 %v739
        %791 = vmatpush.bf16.msra.mxu0 %v736
        %792 = vmatmul.bf16.gmra.mxu0 %v613
        %v793 = vpop.f32.mrf.mxu0
        %v794 = vadd.f32 %v650, %v793
        %v795 = vpop.f32.mrf.mxu0
        %796 = vdwg.mxu0
        %797 = vmatpush.bf16.msra.mxu0 %v758
        %798 = vmatpush.bf16.msra.mxu0 %v755
        %799 = vmatpush.bf16.msra.mxu0 %v752
        %800 = vmatpush.bf16.msra.mxu0 %v749
        %801 = vmatpush.bf16.msra.mxu0 %v746
        %802 = vmatpush.bf16.msra.mxu0 %v743
        %803 = vmatpush.bf16.msra.mxu0 %v740
        %804 = vmatpush.bf16.msra.mxu0 %v737
        %805 = vmatmul.bf16.gmra.mxu0 %v613
        %v806 = vpop.f32.mrf.mxu0
        %v807 = vadd.f32 %v651, %v806
        %v808 = vpop.f32.mrf.mxu0
        %809 = vdwg.mxu0
        %810 = vmatpush.bf16.msra.mxu0 %v759
        %811 = vmatpush.bf16.msra.mxu0 %v756
        %812 = vmatpush.bf16.msra.mxu0 %v753
        %813 = vmatpush.bf16.msra.mxu0 %v750
        %814 = vmatpush.bf16.msra.mxu0 %v747
        %815 = vmatpush.bf16.msra.mxu0 %v744
        %816 = vmatpush.bf16.msra.mxu0 %v741
        %817 = vmatpush.bf16.msra.mxu0 %v738
        %818 = vmatmul.bf16.gmra.mxu0 %v613
        %v819 = vpop.f32.mrf.mxu0
        %v820 = vadd.f32 %v652, %v819
        %v821 = vpop.f32.mrf.mxu0
        %822 = vdwg.mxu0
        %v823 = vld [vmem:[#allocation2] sm:$0xf]
        %v824 = vld [vmem:[#allocation2 + $0x4] sm:$0xf]
        %v825 = vld [vmem:[#allocation2 + $0x8] sm:$0xf]
        %v826 = vld [vmem:[#allocation2 + $0xc] sm:$0xf]
        %v827 = vld [vmem:[#allocation2 + $0x10] sm:$0xf]
        %v828 = vld [vmem:[#allocation2 + $0x14] sm:$0xf]
        %v829 = vld [vmem:[#allocation2 + $0x18] sm:$0xf]
        %v830 = vld [vmem:[#allocation2 + $0x1c] sm:$0xf]
        %v831 = vld [vmem:[#allocation2 + $0x20] sm:$0xf]
        %v832 = vld [vmem:[#allocation2 + $0x24] sm:$0xf]
        %v833 = vld [vmem:[#allocation2 + $0x28] sm:$0xf]
        %v834 = vld [vmem:[#allocation2 + $0x2c] sm:$0xf]
        %v835 = vld [vmem:[#allocation2 + $0x30] sm:$0xf]
        %v836 = vld [vmem:[#allocation2 + $0x34] sm:$0xf]
        %v837 = vld [vmem:[#allocation2 + $0x38] sm:$0xf]
        %v838 = vld [vmem:[#allocation2 + $0x3c] sm:$0xf]
        %v839 = vld [vmem:[#allocation4] sm:$0x1]
        %v841 = vperm.slane %v839, 0
        %v843 = vadd.f32 %v614, %v841
        %v844 = vpack.c.bf16 %v794, %v794
        %v845 = vpack.c.bf16 %v807, %v807
        %v846 = vpack.c.bf16 %v820, %v820
        %v848 = vperm.slane %v615, 0
        %vm850 = vcmask 261120
        %v852 = vsel %vm850, %v844, 0
        %v855 = vsel %vm850, %v845, 0
        %857 = vmatpush.bf16.xpose.msra.mxu0 0
        %858 = vmatpush.bf16.xpose.msra.mxu0 0
        %859 = vmatpush.bf16.xpose.msra.mxu0 0
        %860 = vmatpush.bf16.xpose.msra.mxu0 0
        %861 = vmatpush.bf16.xpose.msra.mxu0 0
        %862 = vmatpush.bf16.xpose.msra.mxu0 0
        %863 = vmatpush.bf16.xpose.msra.mxu0 0
        %864 = vmatpush.bf16.xpose.msra.mxu0 %v855
        %865 = vmatmul.bf16.gmra.mxu0 %v852
        %v866 = vpop.f32.mrf.mxu0
        %v867 = vadd.f32 %v848, %v866
        %v868 = vpop.f32.mrf.mxu0
        %869 = vdwg.mxu0
        %vm870 = vcmask 64512
        %v871 = vsel %vm870, %v867, -inf
        %872 = vmax.xlane.f32.xlu0 %v871
        %v873 = vpop.xlane.xlu0 %872
        %v874 = vsub.f32 %v867, %v873
        %v875 = vmul.f32 %v874, 1.442695
        %v876 = vpow.pop %v875
        %v877 = vsel %vm870, %v876, 0.0
        %878 = vadd.xlane.f32.xlu0 %v877
        %v879 = vpop.xlane.xlu0 %878
        %v880 = vrcp.pop %v879
        %v881 = vmul.f32 %v876, %v880
        %v882 = vpack.c.bf16 %v881, %v881
        %v884 = vsel %vm870, %v882, 0
        %vm886 = vcmask 1043456
        %v888 = vsel %vm886, %v846, 0
        %890 = vmatpush.bf16.msra.mxu0 0
        %891 = vmatpush.bf16.msra.mxu0 0
        %892 = vmatpush.bf16.msra.mxu0 0
        %893 = vmatpush.bf16.msra.mxu0 0
        %894 = vmatpush.bf16.msra.mxu0 0
        %895 = vmatpush.bf16.msra.mxu0 0
        %896 = vmatpush.bf16.msra.mxu0 0
        %897 = vmatpush.bf16.msra.mxu0 %v888
        %898 = vmatmul.bf16.gmra.mxu0 %v884
        %v899 = vpop.f32.mrf.mxu0
        %v900 = vadd.f32 0.0, %v899
        %v901 = vpop.f32.mrf.mxu0
        %902 = vdwg.mxu0
        %v903 = vpack.c.bf16 %v900, %v900
        %v908 = vunpack.c.l.b16 %v823
        %v909 = vunpack.c.l.b16 %v824
        %v910 = vunpack.c.l.b16 %v825
        %v911 = vunpack.c.l.b16 %v826
        %v912 = vpack.c.b16 %v909, %v908
        %v913 = vpack.c.b16 %v911, %v910
        %v917 = vsel %vm850, %v903, 0
        %919 = vmatpush.bf16.msra.mxu0 0
        %920 = vmatpush.bf16.msra.mxu0 0
        %921 = vmatpush.bf16.msra.mxu0 0
        %922 = vmatpush.bf16.msra.mxu0 0
        %923 = vmatpush.bf16.msra.mxu0 0
        %924 = vmatpush.bf16.msra.mxu0 0
        %925 = vmatpush.bf16.msra.mxu0 %v913
        %926 = vmatpush.bf16.msra.mxu0 %v912
        %927 = vmatmul.bf16.gmra.mxu0 %v917
        %v928 = vpop.f32.mrf.mxu0
        %v929 = vadd.f32 0.0, %v928
        %v930 = vpop.f32.mrf.mxu0
        %931 = vdwg.mxu0
        %v932 = vadd.f32 %v843, %v929
        %934 = vrot.lane.b32.xlu0 %v844, 96
        %v935 = vpop.permute.xlu0 %934
        %937 = vrot.lane.b32.xlu0 %v845, 96
        %v938 = vpop.permute.xlu0 %937
        %v940 = vsel %vm850, %v935, 0
        %v943 = vsel %vm850, %v938, 0
        %945 = vmatpush.bf16.xpose.msra.mxu0 0
        %946 = vmatpush.bf16.xpose.msra.mxu0 0
        %947 = vmatpush.bf16.xpose.msra.mxu0 0
        %948 = vmatpush.bf16.xpose.msra.mxu0 0
        %949 = vmatpush.bf16.xpose.msra.mxu0 0
        %950 = vmatpush.bf16.xpose.msra.mxu0 0
        %951 = vmatpush.bf16.xpose.msra.mxu0 0
        %952 = vmatpush.bf16.xpose.msra.mxu0 %v943
        %953 = vmatmul.bf16.gmra.mxu0 %v940
        %v954 = vpop.f32.mrf.mxu0
        %v955 = vadd.f32 %v848, %v954
        %v956 = vpop.f32.mrf.mxu0
        %957 = vdwg.mxu0
        %v958 = vsel %vm870, %v955, -inf
        %959 = vmax.xlane.f32.xlu0 %v958
        %v960 = vpop.xlane.xlu0 %959
        %v961 = vsub.f32 %v955, %v960
        %v962 = vmul.f32 %v961, 1.442695
        %v963 = vpow.pop %v962
        %v964 = vsel %vm870, %v963, 0.0
        %965 = vadd.xlane.f32.xlu0 %v964
        %v966 = vpop.xlane.xlu0 %965
        %v967 = vrcp.pop %v966
        %v968 = vmul.f32 %v963, %v967
        %v969 = vpack.c.bf16 %v968, %v968
        %971 = vrot.lane.b32.xlu0 %v846, 96
        %v972 = vpop.permute.xlu0 %971
        %v974 = vsel %vm870, %v969, 0
        %v977 = vsel %vm886, %v972, 0
        %979 = vmatpush.bf16.msra.mxu0 0
        %980 = vmatpush.bf16.msra.mxu0 0
        %981 = vmatpush.bf16.msra.mxu0 0
        %982 = vmatpush.bf16.msra.mxu0 0
        %983 = vmatpush.bf16.msra.mxu0 0
        %984 = vmatpush.bf16.msra.mxu0 0
        %985 = vmatpush.bf16.msra.mxu0 0
        %986 = vmatpush.bf16.msra.mxu0 %v977
        %987 = vmatmul.bf16.gmra.mxu0 %v974
        %v988 = vpop.f32.mrf.mxu0
        %v989 = vadd.f32 0.0, %v988
        %v990 = vpop.f32.mrf.mxu0
        %991 = vdwg.mxu0
        %v992 = vpack.c.bf16 %v989, %v989
        %v997 = vunpack.c.l.b16 %v827
        %v998 = vunpack.c.l.b16 %v828
        %v999 = vunpack.c.l.b16 %v829
        %v1000 = vunpack.c.l.b16 %v830
        %v1001 = vpack.c.b16 %v998, %v997
        %v1002 = vpack.c.b16 %v1000, %v999
        %v1006 = vsel %vm850, %v992, 0
        %1008 = vmatpush.bf16.msra.mxu0 0
        %1009 = vmatpush.bf16.msra.mxu0 0
        %1010 = vmatpush.bf16.msra.mxu0 0
        %1011 = vmatpush.bf16.msra.mxu0 0
        %1012 = vmatpush.bf16.msra.mxu0 0
        %1013 = vmatpush.bf16.msra.mxu0 0
        %1014 = vmatpush.bf16.msra.mxu0 %v1002
        %1015 = vmatpush.bf16.msra.mxu0 %v1001
        %1016 = vmatmul.bf16.gmra.mxu0 %v1006
        %v1017 = vpop.f32.mrf.mxu0
        %v1018 = vadd.f32 0.0, %v1017
        %v1019 = vpop.f32.mrf.mxu0
        %1020 = vdwg.mxu0
        %v1021 = vadd.f32 %v932, %v1018
        %1022 = vrot.lane.b32.xlu0 %v844, 64
        %v1023 = vpop.permute.xlu0 %1022
        %1024 = vrot.lane.b32.xlu0 %v845, 64
        %v1025 = vpop.permute.xlu0 %1024
        %v1027 = vsel %vm850, %v1023, 0
        %v1030 = vsel %vm850, %v1025, 0
        %1032 = vmatpush.bf16.xpose.msra.mxu0 0
        %1033 = vmatpush.bf16.xpose.msra.mxu0 0
        %1034 = vmatpush.bf16.xpose.msra.mxu0 0
        %1035 = vmatpush.bf16.xpose.msra.mxu0 0
        %1036 = vmatpush.bf16.xpose.msra.mxu0 0
        %1037 = vmatpush.bf16.xpose.msra.mxu0 0
        %1038 = vmatpush.bf16.xpose.msra.mxu0 0
        %1039 = vmatpush.bf16.xpose.msra.mxu0 %v1030
        %1040 = vmatmul.bf16.gmra.mxu0 %v1027
        %v1041 = vpop.f32.mrf.mxu0
        %v1042 = vadd.f32 %v848, %v1041
        %v1043 = vpop.f32.mrf.mxu0
        %1044 = vdwg.mxu0
        %v1045 = vsel %vm870, %v1042, -inf
        %1046 = vmax.xlane.f32.xlu0 %v1045
        %v1047 = vpop.xlane.xlu0 %1046
        %v1048 = vsub.f32 %v1042, %v1047
        %v1049 = vmul.f32 %v1048, 1.442695
        %v1050 = vpow.pop %v1049
        %v1051 = vsel %vm870, %v1050, 0.0
        %1052 = vadd.xlane.f32.xlu0 %v1051
        %v1053 = vpop.xlane.xlu0 %1052
        %v1054 = vrcp.pop %v1053
        %v1055 = vmul.f32 %v1050, %v1054
        %v1056 = vpack.c.bf16 %v1055, %v1055
        %1057 = vrot.lane.b32.xlu0 %v846, 64
        %v1058 = vpop.permute.xlu0 %1057
        %v1060 = vsel %vm870, %v1056, 0
        %v1063 = vsel %vm886, %v1058, 0
        %1065 = vmatpush.bf16.msra.mxu0 0
        %1066 = vmatpush.bf16.msra.mxu0 0
        %1067 = vmatpush.bf16.msra.mxu0 0
        %1068 = vmatpush.bf16.msra.mxu0 0
        %1069 = vmatpush.bf16.msra.mxu0 0
        %1070 = vmatpush.bf16.msra.mxu0 0
        %1071 = vmatpush.bf16.msra.mxu0 0
        %1072 = vmatpush.bf16.msra.mxu0 %v1063
        %1073 = vmatmul.bf16.gmra.mxu0 %v1060
        %v1074 = vpop.f32.mrf.mxu0
        %v1075 = vadd.f32 0.0, %v1074
        %v1076 = vpop.f32.mrf.mxu0
        %1077 = vdwg.mxu0
        %v1078 = vpack.c.bf16 %v1075, %v1075
        %v1083 = vunpack.c.l.b16 %v831
        %v1084 = vunpack.c.l.b16 %v832
        %v1085 = vunpack.c.l.b16 %v833
        %v1086 = vunpack.c.l.b16 %v834
        %v1087 = vpack.c.b16 %v1084, %v1083
        %v1088 = vpack.c.b16 %v1086, %v1085
        %v1092 = vsel %vm850, %v1078, 0
        %1094 = vmatpush.bf16.msra.mxu0 0
        %1095 = vmatpush.bf16.msra.mxu0 0
        %1096 = vmatpush.bf16.msra.mxu0 0
        %1097 = vmatpush.bf16.msra.mxu0 0
        %1098 = vmatpush.bf16.msra.mxu0 0
        %1099 = vmatpush.bf16.msra.mxu0 0
        %1100 = vmatpush.bf16.msra.mxu0 %v1088
        %1101 = vmatpush.bf16.msra.mxu0 %v1087
        %1102 = vmatmul.bf16.gmra.mxu0 %v1092
        %v1103 = vpop.f32.mrf.mxu0
        %v1104 = vadd.f32 0.0, %v1103
        %v1105 = vpop.f32.mrf.mxu0
        %1106 = vdwg.mxu0
        %v1107 = vadd.f32 %v1021, %v1104
        %1108 = vrot.lane.b32.xlu0 %v844, 32
        %v1109 = vpop.permute.xlu0 %1108
        %1110 = vrot.lane.b32.xlu0 %v845, 32
        %v1111 = vpop.permute.xlu0 %1110
        %v1113 = vsel %vm850, %v1109, 0
        %v1116 = vsel %vm850, %v1111, 0
        %1118 = vmatpush.bf16.xpose.msra.mxu0 0
        %1119 = vmatpush.bf16.xpose.msra.mxu0 0
        %1120 = vmatpush.bf16.xpose.msra.mxu0 0
        %1121 = vmatpush.bf16.xpose.msra.mxu0 0
        %1122 = vmatpush.bf16.xpose.msra.mxu0 0
        %1123 = vmatpush.bf16.xpose.msra.mxu0 0
        %1124 = vmatpush.bf16.xpose.msra.mxu0 0
        %1125 = vmatpush.bf16.xpose.msra.mxu0 %v1116
        %1126 = vmatmul.bf16.gmra.mxu0 %v1113
        %v1127 = vpop.f32.mrf.mxu0
        %v1128 = vadd.f32 %v848, %v1127
        %v1129 = vpop.f32.mrf.mxu0
        %1130 = vdwg.mxu0
        %v1131 = vsel %vm870, %v1128, -inf
        %1132 = vmax.xlane.f32.xlu0 %v1131
        %v1133 = vpop.xlane.xlu0 %1132
        %v1134 = vsub.f32 %v1128, %v1133
        %v1135 = vmul.f32 %v1134, 1.442695
        %v1136 = vpow.pop %v1135
        %v1137 = vsel %vm870, %v1136, 0.0
        %1138 = vadd.xlane.f32.xlu0 %v1137
        %v1139 = vpop.xlane.xlu0 %1138
        %v1140 = vrcp.pop %v1139
        %v1141 = vmul.f32 %v1136, %v1140
        %v1142 = vpack.c.bf16 %v1141, %v1141
        %1143 = vrot.lane.b32.xlu0 %v846, 32
        %v1144 = vpop.permute.xlu0 %1143
        %v1146 = vsel %vm870, %v1142, 0
        %v1149 = vsel %vm886, %v1144, 0
        %1151 = vmatpush.bf16.msra.mxu0 0
        %1152 = vmatpush.bf16.msra.mxu0 0
        %1153 = vmatpush.bf16.msra.mxu0 0
        %1154 = vmatpush.bf16.msra.mxu0 0
        %1155 = vmatpush.bf16.msra.mxu0 0
        %1156 = vmatpush.bf16.msra.mxu0 0
        %1157 = vmatpush.bf16.msra.mxu0 0
        %1158 = vmatpush.bf16.msra.mxu0 %v1149
        %1159 = vmatmul.bf16.gmra.mxu0 %v1146
        %v1160 = vpop.f32.mrf.mxu0
        %v1161 = vadd.f32 0.0, %v1160
        %v1162 = vpop.f32.mrf.mxu0
        %1163 = vdwg.mxu0
        %v1164 = vpack.c.bf16 %v1161, %v1161
        %v1169 = vunpack.c.l.b16 %v835
        %v1170 = vunpack.c.l.b16 %v836
        %v1171 = vunpack.c.l.b16 %v837
        %v1172 = vunpack.c.l.b16 %v838
        %v1173 = vpack.c.b16 %v1170, %v1169
        %v1174 = vpack.c.b16 %v1172, %v1171
        %v1178 = vsel %vm850, %v1164, 0
        %1180 = vmatpush.bf16.msra.mxu0 0
        %1181 = vmatpush.bf16.msra.mxu0 0
        %1182 = vmatpush.bf16.msra.mxu0 0
        %1183 = vmatpush.bf16.msra.mxu0 0
        %1184 = vmatpush.bf16.msra.mxu0 0
        %1185 = vmatpush.bf16.msra.mxu0 0
        %1186 = vmatpush.bf16.msra.mxu0 %v1174
        %1187 = vmatpush.bf16.msra.mxu0 %v1173
        %1188 = vmatmul.bf16.gmra.mxu0 %v1178
        %v1189 = vpop.f32.mrf.mxu0
        %v1190 = vadd.f32 0.0, %v1189
        %v1191 = vpop.f32.mrf.mxu0
        %1192 = vdwg.mxu0
        %v1193 = vadd.f32 %v1107, %v1190
        %v1194 = vld [vmem:[#allocation6] sm:$0x1]
        %v1195 = vld [vmem:[#allocation7] sm:$0x1]
        %1196 = vadd.xlane.f32.xlu0 %v1193
        %v1197 = vpop.xlane.xlu0 %1196
        %v1198 = vrcp.pop 128.0
        %v1199 = vmul.f32 128.0, %v1198
        %v1200 = vsub.f32 1.0, %v1199
        %v1201 = vmul.f32 %v1198, %v1200
        %v1202 = vadd.f32 %v1198, %v1201
        %vm1203 = vweird.f32 %v1198
        %v1204 = vsel %vm1203, %v1198, %v1202
        %v1205 = vmul.f32 %v1197, %v1204
        %v1206 = vsub.f32 %v1193, %v1205
        %v1207 = vmul.f32 %v1206, %v1206
        %1208 = vadd.xlane.f32.xlu0 %v1207
        %v1209 = vpop.xlane.xlu0 %1208
        %v1210 = vmul.f32 %v1209, %v1204
        %v1211 = vadd.f32 %v1210, 1e-12
        %v1212 = vrsqrt.pop %v1211
        %v1213 = vmul.f32 %v1212, %v1211
        %v1214 = vmul.f32 %v1213, %v1212
        %v1215 = vmul.f32 0.5, %v1214
        %v1216 = vsub.f32 1.5, %v1215
        %v1217 = vmul.f32 %v1212, %v1216
        %vm1218 = vweird.f32 %v1211
        %vm1219 = vweird.f32 %v1212
        %vm1220 = vmor %vm1218, %vm1219
        %v1221 = vsel %vm1220, %v1212, %v1217
        %v1222 = vmul.f32 %v1206, %v1221
        %v1224 = vperm.slane %v1194, 0
        %v1226 = vmul.f32 %v1222, %v1224
        %v1228 = vperm.slane %v1195, 0
        %v1230 = vadd.f32 %v1226, %v1228
        %v1231 = vpack.c.bf16 %v1230, %v1230
        %v1232 = vld [vmem:[%s8] sm:$0xff]
        %v1233 = vld [vmem:[%s8 + $0x8] sm:$0xff]
        %v1234 = vld [vmem:[%s8 + $0x10] sm:$0xff]
        %v1235 = vld [vmem:[%s8 + $0x18] sm:$0xff]
        %v1236 = vld [vmem:[%s8 + $0x20] sm:$0xff]
        %v1237 = vld [vmem:[%s8 + $0x28] sm:$0xff]
        %v1238 = vld [vmem:[%s8 + $0x30] sm:$0xff]
        %v1239 = vld [vmem:[%s8 + $0x38] sm:$0xff]
        %v1240 = vld [vmem:[%s8 + $0x40] sm:$0xff]
        %v1241 = vld [vmem:[%s8 + $0x48] sm:$0xff]
        %v1242 = vld [vmem:[%s8 + $0x50] sm:$0xff]
        %v1243 = vld [vmem:[%s8 + $0x58] sm:$0xff]
        %v1244 = vld [vmem:[%s8 + $0x60] sm:$0xff]
        %v1245 = vld [vmem:[%s8 + $0x68] sm:$0xff]
        %v1246 = vld [vmem:[%s8 + $0x70] sm:$0xff]
        %v1247 = vld [vmem:[%s8 + $0x78] sm:$0xff]
        %v1248 = vld [vmem:[#allocation9] sm:$0x3]
        %v1250 = vperm.slane %v1248, 0
        %v1251 = vperm.slane %v1248, 1
        %v1270 = vunpack.c.l.b16 %v1232
        %v1271 = vunpack.c.h.b16 %v1232
        %v1272 = vunpack.c.l.b16 %v1233
        %v1273 = vunpack.c.h.b16 %v1233
        %v1274 = vunpack.c.l.b16 %v1234
        %v1275 = vunpack.c.h.b16 %v1234
        %v1276 = vunpack.c.l.b16 %v1235
        %v1277 = vunpack.c.h.b16 %v1235
        %v1278 = vunpack.c.l.b16 %v1236
        %v1279 = vunpack.c.h.b16 %v1236
        %v1280 = vunpack.c.l.b16 %v1237
        %v1281 = vunpack.c.h.b16 %v1237
        %v1282 = vunpack.c.l.b16 %v1238
        %v1283 = vunpack.c.h.b16 %v1238
        %v1284 = vunpack.c.l.b16 %v1239
        %v1285 = vunpack.c.h.b16 %v1239
        %v1286 = vunpack.c.l.b16 %v1240
        %v1287 = vunpack.c.h.b16 %v1240
        %v1288 = vunpack.c.l.b16 %v1241
        %v1289 = vunpack.c.h.b16 %v1241
        %v1290 = vunpack.c.l.b16 %v1242
        %v1291 = vunpack.c.h.b16 %v1242
        %v1292 = vunpack.c.l.b16 %v1243
        %v1293 = vunpack.c.h.b16 %v1243
        %v1294 = vunpack.c.l.b16 %v1244
        %v1295 = vunpack.c.h.b16 %v1244
        %v1296 = vunpack.c.l.b16 %v1245
        %v1297 = vunpack.c.h.b16 %v1245
        %v1298 = vunpack.c.l.b16 %v1246
        %v1299 = vunpack.c.h.b16 %v1246
        %v1300 = vunpack.c.l.b16 %v1247
        %v1301 = vunpack.c.h.b16 %v1247
        %v1302 = vpack.c.b16 %v1272, %v1270
        %v1303 = vpack.c.b16 %v1273, %v1271
        %v1304 = vpack.c.b16 %v1276, %v1274
        %v1305 = vpack.c.b16 %v1277, %v1275
        %v1306 = vpack.c.b16 %v1280, %v1278
        %v1307 = vpack.c.b16 %v1281, %v1279
        %v1308 = vpack.c.b16 %v1284, %v1282
        %v1309 = vpack.c.b16 %v1285, %v1283
        %v1310 = vpack.c.b16 %v1288, %v1286
        %v1311 = vpack.c.b16 %v1289, %v1287
        %v1312 = vpack.c.b16 %v1292, %v1290
        %v1313 = vpack.c.b16 %v1293, %v1291
        %v1314 = vpack.c.b16 %v1296, %v1294
        %v1315 = vpack.c.b16 %v1297, %v1295
        %v1316 = vpack.c.b16 %v1300, %v1298
        %v1317 = vpack.c.b16 %v1301, %v1299
        %1334 = vmatpush.bf16.msra.mxu0 %v1316
        %1335 = vmatpush.bf16.msra.mxu0 %v1314
        %1336 = vmatpush.bf16.msra.mxu0 %v1312
        %1337 = vmatpush.bf16.msra.mxu0 %v1310
        %1338 = vmatpush.bf16.msra.mxu0 %v1308
        %1339 = vmatpush.bf16.msra.mxu0 %v1306
        %1340 = vmatpush.bf16.msra.mxu0 %v1304
        %1341 = vmatpush.bf16.msra.mxu0 %v1302
        %1342 = vmatmul.bf16.gmra.mxu0 %v1231
        %v1343 = vpop.f32.mrf.mxu0
        %v1344 = vadd.f32 %v1250, %v1343
        %v1345 = vpop.f32.mrf.mxu0
        %1346 = vdwg.mxu0
        %1347 = vmatpush.bf16.msra.mxu0 %v1317
        %1348 = vmatpush.bf16.msra.mxu0 %v1315
        %1349 = vmatpush.bf16.msra.mxu0 %v1313
        %1350 = vmatpush.bf16.msra.mxu0 %v1311
        %1351 = vmatpush.bf16.msra.mxu0 %v1309
        %1352 = vmatpush.bf16.msra.mxu0 %v1307
        %1353 = vmatpush.bf16.msra.mxu0 %v1305
        %1354 = vmatpush.bf16.msra.mxu0 %v1303
        %1355 = vmatmul.bf16.gmra.mxu0 %v1231
        %v1356 = vpop.f32.mrf.mxu0
        %v1357 = vadd.f32 %v1251, %v1356
        %v1358 = vpop.f32.mrf.mxu0
        %1359 = vdwg.mxu0
        %v1360 = vmul.f32 %v1344, 0.5
        %v1361 = vmul.f32 %v1357, 0.5
        %v1362 = vmul.f32 %v1344, 0.044715
        %v1363 = vmul.f32 %v1357, 0.044715
        %v1364 = vmul.f32 %v1362, %v1344
        %v1365 = vmul.f32 %v1363, %v1357
        %v1366 = vmul.f32 %v1364, %v1344
        %v1367 = vmul.f32 %v1365, %v1357
        %v1368 = vadd.f32 %v1344, %v1366
        %v1369 = vadd.f32 %v1357, %v1367
        %v1370 = vmul.f32 %v1368, 0.7978846
        %v1371 = vmul.f32 %v1369, 0.7978846
        %v1372 = vtanh.pop %v1370
        %v1373 = vtanh.pop %v1371
        %v1374 = vadd.f32 %v1372, 1.0
        %v1375 = vadd.f32 %v1373, 1.0
        %v1376 = vmul.f32 %v1360, %v1374
        %v1377 = vmul.f32 %v1361, %v1375
        %v1378 = vpack.c.bf16 %v1376, %v1376
        %v1379 = vpack.c.bf16 %v1377, %v1377
        %v1380 = vld [vmem:[#allocation10] sm:$0xf]
        %v1381 = vld [vmem:[#allocation10 + $0x4] sm:$0xf]
        %v1382 = vld [vmem:[#allocation10 + $0x8] sm:$0xf]
        %v1383 = vld [vmem:[#allocation10 + $0xc] sm:$0xf]
        %v1384 = vld [vmem:[#allocation10 + $0x10] sm:$0xf]
        %v1385 = vld [vmem:[#allocation10 + $0x14] sm:$0xf]
        %v1386 = vld [vmem:[#allocation10 + $0x18] sm:$0xf]
        %v1387 = vld [vmem:[#allocation10 + $0x1c] sm:$0xf]
        %v1388 = vld [vmem:[#allocation10 + $0x20] sm:$0xf]
        %v1389 = vld [vmem:[#allocation10 + $0x24] sm:$0xf]
        %v1390 = vld [vmem:[#allocation10 + $0x28] sm:$0xf]
        %v1391 = vld [vmem:[#allocation10 + $0x2c] sm:$0xf]
        %v1392 = vld [vmem:[#allocation10 + $0x30] sm:$0xf]
        %v1393 = vld [vmem:[#allocation10 + $0x34] sm:$0xf]
        %v1394 = vld [vmem:[#allocation10 + $0x38] sm:$0xf]
        %v1395 = vld [vmem:[#allocation10 + $0x3c] sm:$0xf]
        %v1396 = vld [vmem:[#allocation10 + $0x40] sm:$0xf]
        %v1397 = vld [vmem:[#allocation10 + $0x44] sm:$0xf]
        %v1398 = vld [vmem:[#allocation10 + $0x48] sm:$0xf]
        %v1399 = vld [vmem:[#allocation10 + $0x4c] sm:$0xf]
        %v1400 = vld [vmem:[#allocation10 + $0x50] sm:$0xf]
        %v1401 = vld [vmem:[#allocation10 + $0x54] sm:$0xf]
        %v1402 = vld [vmem:[#allocation10 + $0x58] sm:$0xf]
        %v1403 = vld [vmem:[#allocation10 + $0x5c] sm:$0xf]
        %v1404 = vld [vmem:[#allocation10 + $0x60] sm:$0xf]
        %v1405 = vld [vmem:[#allocation10 + $0x64] sm:$0xf]
        %v1406 = vld [vmem:[#allocation10 + $0x68] sm:$0xf]
        %v1407 = vld [vmem:[#allocation10 + $0x6c] sm:$0xf]
        %v1408 = vld [vmem:[#allocation10 + $0x70] sm:$0xf]
        %v1409 = vld [vmem:[#allocation10 + $0x74] sm:$0xf]
        %v1410 = vld [vmem:[#allocation10 + $0x78] sm:$0xf]
        %v1411 = vld [vmem:[#allocation10 + $0x7c] sm:$0xf]
        %v1412 = vld [vmem:[#allocation12] sm:$0x1]
        %v1414 = vperm.slane %v1412, 0
        %v1448 = vunpack.c.l.b16 %v1380
        %v1449 = vunpack.c.l.b16 %v1381
        %v1450 = vunpack.c.l.b16 %v1382
        %v1451 = vunpack.c.l.b16 %v1383
        %v1452 = vunpack.c.l.b16 %v1384
        %v1453 = vunpack.c.l.b16 %v1385
        %v1454 = vunpack.c.l.b16 %v1386
        %v1455 = vunpack.c.l.b16 %v1387
        %v1456 = vunpack.c.l.b16 %v1388
        %v1457 = vunpack.c.l.b16 %v1389
        %v1458 = vunpack.c.l.b16 %v1390
        %v1459 = vunpack.c.l.b16 %v1391
        %v1460 = vunpack.c.l.b16 %v1392
        %v1461 = vunpack.c.l.b16 %v1393
        %v1462 = vunpack.c.l.b16 %v1394
        %v1463 = vunpack.c.l.b16 %v1395
        %v1464 = vunpack.c.l.b16 %v1396
        %v1465 = vunpack.c.l.b16 %v1397
        %v1466 = vunpack.c.l.b16 %v1398
        %v1467 = vunpack.c.l.b16 %v1399
        %v1468 = vunpack.c.l.b16 %v1400
        %v1469 = vunpack.c.l.b16 %v1401
        %v1470 = vunpack.c.l.b16 %v1402
        %v1471 = vunpack.c.l.b16 %v1403
        %v1472 = vunpack.c.l.b16 %v1404
        %v1473 = vunpack.c.l.b16 %v1405
        %v1474 = vunpack.c.l.b16 %v1406
        %v1475 = vunpack.c.l.b16 %v1407
        %v1476 = vunpack.c.l.b16 %v1408
        %v1477 = vunpack.c.l.b16 %v1409
        %v1478 = vunpack.c.l.b16 %v1410
        %v1479 = vunpack.c.l.b16 %v1411
        %v1480 = vpack.c.b16 %v1449, %v1448
        %v1481 = vpack.c.b16 %v1451, %v1450
        %v1482 = vpack.c.b16 %v1453, %v1452
        %v1483 = vpack.c.b16 %v1455, %v1454
        %v1484 = vpack.c.b16 %v1457, %v1456
        %v1485 = vpack.c.b16 %v1459, %v1458
        %v1486 = vpack.c.b16 %v1461, %v1460
        %v1487 = vpack.c.b16 %v1463, %v1462
        %v1488 = vpack.c.b16 %v1465, %v1464
        %v1489 = vpack.c.b16 %v1467, %v1466
        %v1490 = vpack.c.b16 %v1469, %v1468
        %v1491 = vpack.c.b16 %v1471, %v1470
        %v1492 = vpack.c.b16 %v1473, %v1472
        %v1493 = vpack.c.b16 %v1475, %v1474
        %v1494 = vpack.c.b16 %v1477, %v1476
        %v1495 = vpack.c.b16 %v1479, %v1478
        %1512 = vmatpush.bf16.msra.mxu0 %v1487
        %1513 = vmatpush.bf16.msra.mxu0 %v1486
        %1514 = vmatpush.bf16.msra.mxu0 %v1485
        %1515 = vmatpush.bf16.msra.mxu0 %v1484
        %1516 = vmatpush.bf16.msra.mxu0 %v1483
        %1517 = vmatpush.bf16.msra.mxu0 %v1482
        %1518 = vmatpush.bf16.msra.mxu0 %v1481
        %1519 = vmatpush.bf16.msra.mxu0 %v1480
        %1520 = vmatmul.bf16.gmra.mxu0 %v1378
        %v1521 = vpop.f32.mrf.mxu0
        %v1522 = vadd.f32 %v1414, %v1521
        %v1523 = vpop.f32.mrf.mxu0
        %1524 = vdwg.mxu0
        %1525 = vmatpush.bf16.msra.mxu0 %v1495
        %1526 = vmatpush.bf16.msra.mxu0 %v1494
        %1527 = vmatpush.bf16.msra.mxu0 %v1493
        %1528 = vmatpush.bf16.msra.mxu0 %v1492
        %1529 = vmatpush.bf16.msra.mxu0 %v1491
        %1530 = vmatpush.bf16.msra.mxu0 %v1490
        %1531 = vmatpush.bf16.msra.mxu0 %v1489
        %1532 = vmatpush.bf16.msra.mxu0 %v1488
        %1533 = vmatmul.bf16.gmra.mxu0 %v1379
        %v1534 = vpop.f32.mrf.mxu0
        %v1535 = vadd.f32 %v1522, %v1534
        %v1536 = vpop.f32.mrf.mxu0
        %1537 = vdwg.mxu0
        %v1538 = vadd.f32 %v1535, %v1230
        %v1539 = vld [vmem:[#allocation13] sm:$0x1]
        %v1540 = vld [vmem:[#allocation15] sm:$0x1]
        %1541 = vadd.xlane.f32.xlu0 %v1538
        %v1542 = vpop.xlane.xlu0 %1541
        %v1543 = vmul.f32 %v1542, %v1204
        %v1544 = vsub.f32 %v1538, %v1543
        %v1545 = vmul.f32 %v1544, %v1544
        %1546 = vadd.xlane.f32.xlu0 %v1545
        %v1547 = vpop.xlane.xlu0 %1546
        %v1548 = vmul.f32 %v1547, %v1204
        %v1549 = vadd.f32 %v1548, 1e-12
        %v1550 = vrsqrt.pop %v1549
        %v1551 = vmul.f32 %v1550, %v1549
        %v1552 = vmul.f32 %v1551, %v1550
        %v1553 = vmul.f32 0.5, %v1552
        %v1554 = vsub.f32 1.5, %v1553
        %v1555 = vmul.f32 %v1550, %v1554
        %vm1556 = vweird.f32 %v1549
        %vm1557 = vweird.f32 %v1550
        %vm1558 = vmor %vm1556, %vm1557
        %v1559 = vsel %vm1558, %v1550, %v1555
        %v1560 = vmul.f32 %v1544, %v1559
        %v1562 = vperm.slane %v1539, 0
        %v1564 = vmul.f32 %v1560, %v1562
        %v1566 = vperm.slane %v1540, 0
        %v1568 = vadd.f32 %v1564, %v1566
        %v1569 = vpack.c.bf16 %v1568, %v1568
        %1570 = vst [vmem:[%s611] sm:$0xf] %v1569
        %p1571 = scmp.lt.s32.totalorder %s30, 1
        %s1572 = scalar_select %p1571, %s30, 1
        %s1573 = smul.addr %s1572, 4
        %s1574 = scalar_lea.vmem %s14, %s1573
        // Predicated region
        $region113: #{bert_encoder_forward.4} parent=75 // pred_check
          %p1575 = pneg %p352
        $region114: #{bert_encoder_forward.4} parent=75 // pred_check_branch
          %1577 = sbr.rel (%p1575) target = $region116
        $region115: #{bert_encoder_forward.4} parent=75 // pred_region
          _
        $region116: #{bert_encoder_forward.4} parent=75 // pred_fallthru
          _
      $region76: #{bert_encoder_forward.4} parent=5 // pred_fallthru
        _
      %p1578 = scmp.le.s32.totalorder 2, %s25
      // Predicated region
      $region117: #{bert_encoder_forward.4} parent=5 // pred_check
        %p1579 = pneg %p1578
      $region118: #{bert_encoder_forward.4} parent=5 // pred_check_branch
        %1581 = sbr.rel (%p1579) target = $region120
      $region119: #{bert_encoder_forward.4} parent=5 // pred_region
        %s1582 = ssub.s32 %s25, 2
        // Predicated region
        $region121: #{bert_encoder_forward.4} parent=119 // pred_check
          %p1583 = pneg %p358
        $region122: #{bert_encoder_forward.4} parent=119 // pred_check_branch
          %1585 = sbr.rel (%p1583) target = $region124
        $region123: #{bert_encoder_forward.4} parent=119 // pred_region
          %p1586 = scmp.lt.s32.totalorder %s31, 1
          %s1587 = scalar_select %p1586, %s31, 1
          %s1588 = smul.addr %s1587, 4
          %s1589 = scalar_lea.vmem %s14, %s1588
        $region124: #{bert_encoder_forward.4} parent=119 // pred_fallthru
          _
      $region120: #{bert_encoder_forward.4} parent=5 // pred_fallthru
        _
    $region6: #{bert_encoder_forward.4} parent=1 // loop_footer
      %s29 = sadd.s32 1, %s25
    $region7: #{bert_encoder_forward.4} parent=1 // loop_footer_branch
      %24 = sbr.rel target = $region3
    $region8: #{bert_encoder_forward.4} parent=1 // loop_exit
      _
    %1590 = vsyncpa [#allocation3], 1
    %s1591 = scalar_lea.sflag [#allocation3], 1
    %1592 = vsyncpa %s1591, 1
    %1593 = vsyncpa [#allocation5], 1
    %1594 = vsyncpa [#allocation8], 1
    %1595 = vsyncpa [#allocation11], 1
    %1596 = vsyncpa [#allocation14], 1

</llo_original>
